<compile_context>
chip_gen: v7x
topology: tpu7x:2x2x1
jax: 0.10.0
libtpu: 0.0.40
codegen_flags: <defaults>
</compile_context>

<pallas_src>
import functools
import math

import jax
import jax.numpy as jnp
from jax.experimental import pallas as pl
from jax.experimental.pallas import tpu as pltpu


_VMEM_LIMIT = 32 * 1024 * 1024  # explicit scoped-VMEM budget; safe on v5e/v6e/v7x
_MASK_NEG = -1e30               # finite "minus infinity" for the causal mask (NaN-safe)


# --------------------------------------------------------------------------- #
# Single fused kernel: one grid step = full decoder forward for one batch elem
# --------------------------------------------------------------------------- #
def _decoder_model_kernel(
    x_ref,
    w_qkv_ref, b_qkv_ref, w_o1_ref, b_o1_ref, g1_ref, be1_ref,
    w_q_ref, b_q_ref, w_kv_ref, b_kv_ref, w_o2_ref, b_o2_ref, g2_ref, be2_ref,
    w1_ref, b1_ref, w2_ref, b2_ref, g3_ref, be3_ref,
    fc_w_ref, fc_b_ref,
    o_ref,
    *, num_layers, num_heads):
  f32 = jnp.float32
  bf16 = jnp.bfloat16

  x = x_ref[0]                         # (S, D) f32 residual stream for this batch element
  S, D = x.shape
  hd = D // num_heads
  scale = 1.0 / math.sqrt(hd)

  def matmul(a, w):                    # bf16 MXU operands, f32 accumulation
    return jnp.dot(a.astype(bf16), w, preferred_element_type=f32)

  def layer_norm(h, g, b):             # f32 statistics, eps matches PyTorch default
    mu = jnp.mean(h, axis=-1, keepdims=True)
    d = h - mu
    var = jnp.mean(d * d, axis=-1, keepdims=True)
    return d * jax.lax.rsqrt(var + 1e-5) * g + b

  row = jax.lax.broadcasted_iota(jnp.int32, (S, S), 0)
  col = jax.lax.broadcasted_iota(jnp.int32, (S, S), 1)
  causal_keep = row >= col

  def mha(q2d, k2d, v2d, causal):
    # Static unrolled loop over heads: all per-head matmuls/softmax stay in vregs (no grid,
    # no DMA); head split/merge is cheap lane slicing / concatenation.
    outs = []
    for h in range(num_heads):
      lo, hi = h * hd, (h + 1) * hd
      qh = q2d[:, lo:hi].astype(bf16)                      # (S, hd)
      kh = k2d[:, lo:hi].astype(bf16)
      vh = v2d[:, lo:hi].astype(bf16)
      # q @ k^T without materializing a transpose (contract last dims on the MXU).
      s = jax.lax.dot_general(qh, kh, (((1,), (1,)), ((), ())),
                              preferred_element_type=f32) * scale   # (S, S) f32
      if causal:
        s = jnp.where(causal_keep, s, jnp.float32(_MASK_NEG))
      m = jnp.max(s, axis=-1, keepdims=True)
      p = jnp.exp(s - m)
      denom = jnp.sum(p, axis=-1, keepdims=True)
      p = p / denom                                        # exact f32 softmax normalization
      outs.append(jnp.dot(p.astype(bf16), vh, preferred_element_type=f32))
    return jnp.concatenate(outs, axis=-1)                  # (S, D)

  mem = x                              # memory = embedded input, fixed for all layers
  for li in range(num_layers):
    # ---- masked self-attention + residual + LayerNorm1 --------------------
    qkv = matmul(x, w_qkv_ref[li]) + b_qkv_ref[li]                   # (S, 3D)
    a = mha(qkv[:, :D], qkv[:, D:2 * D], qkv[:, 2 * D:], causal=True)
    # TODO(synk): dropout (p=0.1 in training) treated as identity (inference).
    x = layer_norm(x + matmul(a, w_o1_ref[li]) + b_o1_ref[li], g1_ref[li], be1_ref[li])

    # ---- cross-attention over memory + residual + LayerNorm2 --------------
    q = matmul(x, w_q_ref[li]) + b_q_ref[li]                         # (S, D)
    kv = matmul(mem, w_kv_ref[li]) + b_kv_ref[li]                    # (S, 2D) (Q/KV fused here)
    a = mha(q, kv[:, :D], kv[:, D:], causal=False)
    x = layer_norm(x + matmul(a, w_o2_ref[li]) + b_o2_ref[li], g2_ref[li], be2_ref[li])

    # ---- position-wise FFN + residual + LayerNorm3 -------------------------
    h = jnp.maximum(matmul(x, w1_ref[li]) + b1_ref[li], 0.0)         # ReLU, f32 epilogue
    x = layer_norm(x + matmul(h, w2_ref[li]) + b2_ref[li], g3_ref[li], be3_ref[li])

  # ---- final vocabulary projection (only HBM store of the whole forward) ---
  o_ref[0] = (matmul(x, fc_w_ref[...]) + fc_b_ref[...]).astype(o_ref.dtype)


# --------------------------------------------------------------------------- #
# Wrapper: one pallas_call for the whole forward
# --------------------------------------------------------------------------- #
def pallas_forward(tokens, params, *, num_heads):
  # TODO(synk): embedding row-gather is data-dependent; left to XLA (jnp.take) instead of a
  # per-token Pallas Element-block gather (pure overhead at these sizes).
  x = jnp.take(params["embed"], tokens, axis=0) + params["pos"][None, None, :]  # (S, B, D)
  S, B, D = x.shape
  xb = jnp.transpose(x, (1, 0, 2))                                   # (B, S, D): grid over batch
  lp = params["layers"]
  L = lp["w_qkv"].shape[0]
  dff = lp["w1"].shape[2]
  V = params["fc_w"].shape[1]

  def rb(a):      # stacked bias/gamma/beta (L, N) -> (L, 1, N) for in-kernel broadcasting
    return a.reshape(a.shape[0], 1, a.shape[1])

  # Argument order must match the kernel signature (after x_ref).
  weights = [
      lp["w_qkv"], rb(lp["b_qkv"]), lp["w_o1"], rb(lp["b_o1"]), rb(lp["g1"]), rb(lp["be1"]),
      lp["w_q"], rb(lp["b_q"]), lp["w_kv"], rb(lp["b_kv"]),
      lp["w_o2"], rb(lp["b_o2"]), rb(lp["g2"]), rb(lp["be2"]),
      lp["w1"], rb(lp["b1"]), lp["w2"], rb(lp["b2"]), rb(lp["g3"]), rb(lp["be3"]),
      params["fc_w"], params["fc_b"].reshape(1, V),
  ]

  def const_spec(a):
    # Whole array resident in VMEM, same block for every grid step (weights stay resident).
    # NOTE: pipeline_mode=pl.Buffered(1) would halve resident-weight buffering at production
    # widths; omitted here (total weights ~50 KiB).
    if a.ndim == 3:
      return pl.BlockSpec(a.shape, lambda b: (0, 0, 0))
    return pl.BlockSpec(a.shape, lambda b: (0, 0))

  in_specs = [pl.BlockSpec((1, S, D), lambda b: (b, 0, 0))] + [const_spec(a) for a in weights]
  out_specs = pl.BlockSpec((1, S, V), lambda b: (b, 0, 0))

  kern = functools.partial(_decoder_model_kernel, num_layers=L, num_heads=num_heads)

  M = B * S
  flops = M * (L * (16 * D * D + 4 * D * dff + 8 * S * D) + 2 * D * V)
  transc = L * 2 * B * num_heads * S * S + 3 * L * M
  bytes_acc = (xb.size * 4
               + sum(int(a.size) * a.dtype.itemsize for a in weights)
               + B * S * V * 4)

  logits_b = pl.pallas_call(
      kern,
      out_shape=jax.ShapeDtypeStruct((B, S, V), jnp.float32),
      grid_spec=pltpu.PrefetchScalarGridSpec(
          num_scalar_prefetch=0,
          grid=(B,),
          in_specs=in_specs,
          out_specs=out_specs,
      ),
      compiler_params=pltpu.CompilerParams(
          dimension_semantics=("parallel",),   # >= 2 parallel steps -> feeds both v7x TCs
          vmem_limit_bytes=_VMEM_LIMIT,
      ),
      cost_estimate=pl.CostEstimate(flops=int(flops), transcendentals=int(transc),
                                    bytes_accessed=int(bytes_acc)),
  )(xb, *weights)

  return jnp.transpose(logits_b, (1, 0, 2))                          # back to (S, B, V)


# --------------------------------------------------------------------------- #
# Pure-JAX f32 reference with identical math (dropout = identity)
# --------------------------------------------------------------------------- #
def reference_forward(tokens, params, *, num_heads):
  f32 = jnp.float32
  x = jnp.take(params["embed"], tokens, axis=0) + params["pos"][None, None, :]  # (S, B, D)
  S, B, D = x.shape
  hd = D // num_heads
  lp = params["layers"]
  L = lp["w_qkv"].shape[0]

  def attn(q, k, v, causal):
    def sh(t):
      return t.reshape(S, B, num_heads, hd).transpose(1, 2, 0, 3)    # (B, H, S, hd)
    qh, kh, vh = sh(q), sh(k), sh(v)
    s = jnp.einsum("bhqd,bhkd->bhqk", qh, kh) / math.sqrt(hd)
    if causal:
      keep = jnp.tril(jnp.ones((S, S), dtype=bool))
      s = jnp.where(keep[None, None], s, -jnp.inf)
    p = jax.nn.softmax(s, axis=-1)
    o = jnp.einsum("bhqk,bhkd->bhqd", p, vh)
    return o.transpose(2, 0, 1, 3).reshape(S, B, D)

  def ln(h, g, b):
    mu = h.mean(-1, keepdims=True)
    var = ((h - mu) ** 2).mean(-1, keepdims=True)
    return (h - mu) * jax.lax.rsqrt(var + 1e-5) * g + b

  mem = x
  for l in range(L):
    W = lambda name: lp[name][l].astype(f32)
    P = lambda name: lp[name][l]
    qkv = x @ W("w_qkv") + P("b_qkv")
    a = attn(qkv[..., :D], qkv[..., D:2 * D], qkv[..., 2 * D:], causal=True)
    x = ln(x + a @ W("w_o1") + P("b_o1"), P("g1"), P("be1"))

    q = x @ W("w_q") + P("b_q")
    kv = mem @ W("w_kv") + P("b_kv")
    a = attn(q, kv[..., :D], kv[..., D:], causal=False)
    x = ln(x + a @ W("w_o2") + P("b_o2"), P("g2"), P("be2"))

    h = jnp.maximum(x @ W("w1") + P("b1"), 0.0)
    x = ln(x + h @ W("w2") + P("b2"), P("g3"), P("be3"))

  return x @ params["fc_w"].astype(f32) + params["fc_b"]


# --------------------------------------------------------------------------- #
# Parameter construction (layer weights stacked along a leading num_layers axis)
# --------------------------------------------------------------------------- #
def init_params(key, vocab, d_model, d_ff, n_layers):
  keys = iter(jax.random.split(key, 64))

  def f32(shape, scale=0.1):
    return jax.random.normal(next(keys), shape, dtype=jnp.float32) * scale

  def bf16(shape, scale=0.1):
    # weights stored in bf16: halves VMEM footprint, MXU-native on v5e/v6e/v7x
    return f32(shape, scale).astype(jnp.bfloat16)

  d, L = d_model, n_layers
  layers = {
      "w_qkv": bf16((L, d, 3 * d)), "b_qkv": f32((L, 3 * d)),
      "w_o1": bf16((L, d, d)), "b_o1": f32((L, d)),
      "g1": 1.0 + f32((L, d)), "be1": f32((L, d)),
      "w_q": bf16((L, d, d)), "b_q": f32((L, d)),
      "w_kv": bf16((L, d, 2 * d)), "b_kv": f32((L, 2 * d)),
      "w_o2": bf16((L, d, d)), "b_o2": f32((L, d)),
      "g2": 1.0 + f32((L, d)), "be2": f32((L, d)),
      "w1": bf16((L, d, d_ff)), "b1": f32((L, d_ff)),
      "w2": bf16((L, d_ff, d)), "b2": f32((L, d)),
      "g3": 1.0 + f32((L, d)), "be3": f32((L, d)),
  }
  return {
      "embed": f32((vocab, d)),
      "pos": f32((d,)),
      "fc_w": bf16((d, vocab)),
      "fc_b": f32((vocab,)),
      "layers": layers,
  }


if __name__ == "__main__":
  # Small shapes consistent with the module:
  # vocab=50, embed_size(d_model)=32, num_heads=4, hidden_dim(d_ff)=64, num_layers=2, seq=8, batch=2
  VOCAB, D_MODEL, N_HEADS, D_FF, N_LAYERS = 50, 32, 4, 64, 2
  SEQ, BATCH = 8, 2

  root = jax.random.PRNGKey(0)
  k_tok, k_par = jax.random.split(root)
  tokens = jax.random.randint(k_tok, (SEQ, BATCH), 0, VOCAB, dtype=jnp.int32)
  params = init_params(k_par, VOCAB, D_MODEL, D_FF, N_LAYERS)

  fwd = jax.jit(functools.partial(pallas_forward, num_heads=N_HEADS))
  out = jax.block_until_ready(fwd(tokens, params))

  ref = reference_forward(tokens, params, num_heads=N_HEADS)

  assert out.shape == (SEQ, BATCH, VOCAB)
  assert bool(jnp.all(jnp.isfinite(out)))
  # bf16 MXU operands vs f32 reference -> expected small drift, not a bug
  assert bool(jnp.allclose(out, ref, atol=5e-2, rtol=5e-2)), float(jnp.max(jnp.abs(out - ref)))

  print("KERNEL_OK")
</pallas_src>

<mosaic_0001>
module attributes {stable_mosaic.version = 11 : i64} {
  func.func @_decoder_model_kernel(%arg0: i32, %arg1: memref<1x8x32xf32, #tpu.memory_space<vmem>>, %arg2: memref<2x32x96xbf16, #tpu.memory_space<vmem>>, %arg3: memref<2x1x96xf32, #tpu.memory_space<vmem>>, %arg4: memref<2x32x32xbf16, #tpu.memory_space<vmem>>, %arg5: memref<2x1x32xf32, #tpu.memory_space<vmem>>, %arg6: memref<2x1x32xf32, #tpu.memory_space<vmem>>, %arg7: memref<2x1x32xf32, #tpu.memory_space<vmem>>, %arg8: memref<2x32x32xbf16, #tpu.memory_space<vmem>>, %arg9: memref<2x1x32xf32, #tpu.memory_space<vmem>>, %arg10: memref<2x32x64xbf16, #tpu.memory_space<vmem>>, %arg11: memref<2x1x64xf32, #tpu.memory_space<vmem>>, %arg12: memref<2x32x32xbf16, #tpu.memory_space<vmem>>, %arg13: memref<2x1x32xf32, #tpu.memory_space<vmem>>, %arg14: memref<2x1x32xf32, #tpu.memory_space<vmem>>, %arg15: memref<2x1x32xf32, #tpu.memory_space<vmem>>, %arg16: memref<2x32x64xbf16, #tpu.memory_space<vmem>>, %arg17: memref<2x1x64xf32, #tpu.memory_space<vmem>>, %arg18: memref<2x64x32xbf16, #tpu.memory_space<vmem>>, %arg19: memref<2x1x32xf32, #tpu.memory_space<vmem>>, %arg20: memref<2x1x32xf32, #tpu.memory_space<vmem>>, %arg21: memref<2x1x32xf32, #tpu.memory_space<vmem>>, %arg22: memref<32x50xbf16, #tpu.memory_space<vmem>>, %arg23: memref<1x50xf32, #tpu.memory_space<vmem>>, %arg24: memref<1x8x50xf32, #tpu.memory_space<vmem>>) attributes {dimension_semantics = [#tpu.dimension_semantics<parallel>], iteration_bounds = array<i64: 2>, scalar_prefetch = 0 : i64, scratch_operands = 0 : i64, tpu.core_type = #tpu.core_type<tc>, window_params = [{transform_indices = @transform_0, window_bounds = array<i64: 1, 8, 32>}, {pipeline_mode = #tpu.pipeline_mode<synchronous>, transform_indices = @transform_1, window_bounds = array<i64: 2, 32, 96>}, {pipeline_mode = #tpu.pipeline_mode<synchronous>, transform_indices = @transform_2, window_bounds = array<i64: 2, 1, 96>}, {pipeline_mode = #tpu.pipeline_mode<synchronous>, transform_indices = @transform_3, window_bounds = array<i64: 2, 32, 32>}, {pipeline_mode = #tpu.pipeline_mode<synchronous>, transform_indices = @transform_4, window_bounds = array<i64: 2, 1, 32>}, {pipeline_mode = #tpu.pipeline_mode<synchronous>, transform_indices = @transform_5, window_bounds = array<i64: 2, 1, 32>}, {pipeline_mode = #tpu.pipeline_mode<synchronous>, transform_indices = @transform_6, window_bounds = array<i64: 2, 1, 32>}, {pipeline_mode = #tpu.pipeline_mode<synchronous>, transform_indices = @transform_7, window_bounds = array<i64: 2, 32, 32>}, {pipeline_mode = #tpu.pipeline_mode<synchronous>, transform_indices = @transform_8, window_bounds = array<i64: 2, 1, 32>}, {pipeline_mode = #tpu.pipeline_mode<synchronous>, transform_indices = @transform_9, window_bounds = array<i64: 2, 32, 64>}, {pipeline_mode = #tpu.pipeline_mode<synchronous>, transform_indices = @transform_10, window_bounds = array<i64: 2, 1, 64>}, {pipeline_mode = #tpu.pipeline_mode<synchronous>, transform_indices = @transform_11, window_bounds = array<i64: 2, 32, 32>}, {pipeline_mode = #tpu.pipeline_mode<synchronous>, transform_indices = @transform_12, window_bounds = array<i64: 2, 1, 32>}, {pipeline_mode = #tpu.pipeline_mode<synchronous>, transform_indices = @transform_13, window_bounds = array<i64: 2, 1, 32>}, {pipeline_mode = #tpu.pipeline_mode<synchronous>, transform_indices = @transform_14, window_bounds = array<i64: 2, 1, 32>}, {pipeline_mode = #tpu.pipeline_mode<synchronous>, transform_indices = @transform_15, window_bounds = array<i64: 2, 32, 64>}, {pipeline_mode = #tpu.pipeline_mode<synchronous>, transform_indices = @transform_16, window_bounds = array<i64: 2, 1, 64>}, {pipeline_mode = #tpu.pipeline_mode<synchronous>, transform_indices = @transform_17, window_bounds = array<i64: 2, 64, 32>}, {pipeline_mode = #tpu.pipeline_mode<synchronous>, transform_indices = @transform_18, window_bounds = array<i64: 2, 1, 32>}, {pipeline_mode = #tpu.pipeline_mode<synchronous>, transform_indices = @transform_19, window_bounds = array<i64: 2, 1, 32>}, {pipeline_mode = #tpu.pipeline_mode<synchronous>, transform_indices = @transform_20, window_bounds = array<i64: 2, 1, 32>}, {pipeline_mode = #tpu.pipeline_mode<synchronous>, transform_indices = @transform_21, window_bounds = array<i64: 32, 50>}, {pipeline_mode = #tpu.pipeline_mode<synchronous>, transform_indices = @transform_22, window_bounds = array<i64: 1, 50>}, {transform_indices = @transform_23, window_bounds = array<i64: 1, 8, 50>}]} {
    %c0 = arith.constant 0 : index
    %c0_0 = arith.constant 0 : index
    %c0_1 = arith.constant 0 : index
    %0 = vector.load %arg1[%c0, %c0_0, %c0_1] : memref<1x8x32xf32, #tpu.memory_space<vmem>>, vector<1x8x32xf32>
    %1 = vector.shape_cast %0 : vector<1x8x32xf32> to vector<8x32xf32>
    %2 = tpu.iota {dimensions = array<i32: 0>} : vector<8x8xi32>
    %3 = tpu.iota {dimensions = array<i32: 1>} : vector<8x8xi32>
    %4 = arith.cmpi sge, %2, %3 : vector<8x8xi32>
    %c0_2 = arith.constant 0 : index
    %c0_3 = arith.constant 0 : index
    %c0_4 = arith.constant 0 : index
    %5 = vector.load %arg2[%c0_2, %c0_3, %c0_4] : memref<2x32x96xbf16, #tpu.memory_space<vmem>>, vector<1x32x96xbf16>
    %6 = vector.shape_cast %5 : vector<1x32x96xbf16> to vector<32x96xbf16>
    %7 = arith.truncf %1 : vector<8x32xf32> to vector<8x32xbf16>
    %cst = arith.constant dense<0.000000e+00> : vector<8x96xf32>
    %8 = tpu.matmul %7, %6, %cst {dimension_numbers = #tpu.dot_dimension_numbers<[1], [0], [0], [1], [0, 0, 1, 1], [], []>} : vector<8x32xbf16>, vector<32x96xbf16>, vector<8x96xf32> -> vector<8x96xf32>
    %c0_5 = arith.constant 0 : index
    %c0_6 = arith.constant 0 : index
    %c0_7 = arith.constant 0 : index
    %9 = vector.load %arg3[%c0_5, %c0_6, %c0_7] : memref<2x1x96xf32, #tpu.memory_space<vmem>>, vector<1x1x96xf32>
    %10 = vector.shape_cast %9 : vector<1x1x96xf32> to vector<1x96xf32>
    %11 = vector.broadcast %10 : vector<1x96xf32> to vector<8x96xf32>
    %12 = arith.addf %8, %11 : vector<8x96xf32>
    %13 = vector.extract_strided_slice %12 {offsets = [0, 0], sizes = [8, 32], strides = [1, 1]} : vector<8x96xf32> to vector<8x32xf32>
    %14 = vector.extract_strided_slice %12 {offsets = [0, 32], sizes = [8, 32], strides = [1, 1]} : vector<8x96xf32> to vector<8x32xf32>
    %15 = vector.extract_strided_slice %12 {offsets = [0, 64], sizes = [8, 32], strides = [1, 1]} : vector<8x96xf32> to vector<8x32xf32>
    %16 = vector.extract_strided_slice %13 {offsets = [0, 0], sizes = [8, 8], strides = [1, 1]} : vector<8x32xf32> to vector<8x8xf32>
    %17 = arith.truncf %16 : vector<8x8xf32> to vector<8x8xbf16>
    %18 = vector.extract_strided_slice %14 {offsets = [0, 0], sizes = [8, 8], strides = [1, 1]} : vector<8x32xf32> to vector<8x8xf32>
    %19 = arith.truncf %18 : vector<8x8xf32> to vector<8x8xbf16>
    %20 = vector.extract_strided_slice %15 {offsets = [0, 0], sizes = [8, 8], strides = [1, 1]} : vector<8x32xf32> to vector<8x8xf32>
    %21 = arith.truncf %20 : vector<8x8xf32> to vector<8x8xbf16>
    %cst_8 = arith.constant dense<0.000000e+00> : vector<8x8xf32>
    %22 = tpu.matmul %17, %19, %cst_8 {dimension_numbers = #tpu.dot_dimension_numbers<[1], [1], [0], [0], [0, 0, 1, 0], [], []>} : vector<8x8xbf16>, vector<8x8xbf16>, vector<8x8xf32> -> vector<8x8xf32>
    %cst_9 = arith.constant 0.353553385 : f32
    %23 = vector.broadcast %cst_9 : f32 to vector<8x8xf32>
    %24 = arith.mulf %22, %23 : vector<8x8xf32>
    %cst_10 = arith.constant -1.000000e+30 : f32
    %25 = vector.broadcast %cst_10 : f32 to vector<8x8xf32>
    %26 = arith.select %4, %24, %25 : vector<8x8xi1>, vector<8x8xf32>
    %cst_11 = arith.constant dense<0xFF800000> : vector<8xf32>
    %27 = vector.multi_reduction <maximumf>, %26, %cst_11 [1] : vector<8x8xf32> to vector<8xf32>
    %28 = vector.shape_cast %27 : vector<8xf32> to vector<8x1xf32>
    %29 = vector.broadcast %28 : vector<8x1xf32> to vector<8x8xf32>
    %30 = arith.subf %26, %29 : vector<8x8xf32>
    %31 = math.exp %30 : vector<8x8xf32>
    %cst_12 = arith.constant dense<0.000000e+00> : vector<8xf32>
    %32 = vector.multi_reduction <add>, %31, %cst_12 [1] : vector<8x8xf32> to vector<8xf32>
    %33 = vector.shape_cast %32 : vector<8xf32> to vector<8x1xf32>
    %34 = vector.broadcast %33 : vector<8x1xf32> to vector<8x8xf32>
    %35 = arith.divf %31, %34 : vector<8x8xf32>
    %36 = arith.truncf %35 : vector<8x8xf32> to vector<8x8xbf16>
    %cst_13 = arith.constant dense<0.000000e+00> : vector<8x8xf32>
    %37 = tpu.matmul %36, %21, %cst_13 {dimension_numbers = #tpu.dot_dimension_numbers<[1], [0], [0], [1], [0, 0, 1, 1], [], []>} : vector<8x8xbf16>, vector<8x8xbf16>, vector<8x8xf32> -> vector<8x8xf32>
    %38 = vector.extract_strided_slice %13 {offsets = [0, 8], sizes = [8, 8], strides = [1, 1]} : vector<8x32xf32> to vector<8x8xf32>
    %39 = arith.truncf %38 : vector<8x8xf32> to vector<8x8xbf16>
    %40 = vector.extract_strided_slice %14 {offsets = [0, 8], sizes = [8, 8], strides = [1, 1]} : vector<8x32xf32> to vector<8x8xf32>
    %41 = arith.truncf %40 : vector<8x8xf32> to vector<8x8xbf16>
    %42 = vector.extract_strided_slice %15 {offsets = [0, 8], sizes = [8, 8], strides = [1, 1]} : vector<8x32xf32> to vector<8x8xf32>
    %43 = arith.truncf %42 : vector<8x8xf32> to vector<8x8xbf16>
    %cst_14 = arith.constant dense<0.000000e+00> : vector<8x8xf32>
    %44 = tpu.matmul %39, %41, %cst_14 {dimension_numbers = #tpu.dot_dimension_numbers<[1], [1], [0], [0], [0, 0, 1, 0], [], []>} : vector<8x8xbf16>, vector<8x8xbf16>, vector<8x8xf32> -> vector<8x8xf32>
    %cst_15 = arith.constant 0.353553385 : f32
    %45 = vector.broadcast %cst_15 : f32 to vector<8x8xf32>
    %46 = arith.mulf %44, %45 : vector<8x8xf32>
    %cst_16 = arith.constant -1.000000e+30 : f32
    %47 = vector.broadcast %cst_16 : f32 to vector<8x8xf32>
    %48 = arith.select %4, %46, %47 : vector<8x8xi1>, vector<8x8xf32>
    %cst_17 = arith.constant dense<0xFF800000> : vector<8xf32>
    %49 = vector.multi_reduction <maximumf>, %48, %cst_17 [1] : vector<8x8xf32> to vector<8xf32>
    %50 = vector.shape_cast %49 : vector<8xf32> to vector<8x1xf32>
    %51 = vector.broadcast %50 : vector<8x1xf32> to vector<8x8xf32>
    %52 = arith.subf %48, %51 : vector<8x8xf32>
    %53 = math.exp %52 : vector<8x8xf32>
    %cst_18 = arith.constant dense<0.000000e+00> : vector<8xf32>
    %54 = vector.multi_reduction <add>, %53, %cst_18 [1] : vector<8x8xf32> to vector<8xf32>
    %55 = vector.shape_cast %54 : vector<8xf32> to vector<8x1xf32>
    %56 = vector.broadcast %55 : vector<8x1xf32> to vector<8x8xf32>
    %57 = arith.divf %53, %56 : vector<8x8xf32>
    %58 = arith.truncf %57 : vector<8x8xf32> to vector<8x8xbf16>
    %cst_19 = arith.constant dense<0.000000e+00> : vector<8x8xf32>
    %59 = tpu.matmul %58, %43, %cst_19 {dimension_numbers = #tpu.dot_dimension_numbers<[1], [0], [0], [1], [0, 0, 1, 1], [], []>} : vector<8x8xbf16>, vector<8x8xbf16>, vector<8x8xf32> -> vector<8x8xf32>
    %60 = vector.extract_strided_slice %13 {offsets = [0, 16], sizes = [8, 8], strides = [1, 1]} : vector<8x32xf32> to vector<8x8xf32>
    %61 = arith.truncf %60 : vector<8x8xf32> to vector<8x8xbf16>
    %62 = vector.extract_strided_slice %14 {offsets = [0, 16], sizes = [8, 8], strides = [1, 1]} : vector<8x32xf32> to vector<8x8xf32>
    %63 = arith.truncf %62 : vector<8x8xf32> to vector<8x8xbf16>
    %64 = vector.extract_strided_slice %15 {offsets = [0, 16], sizes = [8, 8], strides = [1, 1]} : vector<8x32xf32> to vector<8x8xf32>
    %65 = arith.truncf %64 : vector<8x8xf32> to vector<8x8xbf16>
    %cst_20 = arith.constant dense<0.000000e+00> : vector<8x8xf32>
    %66 = tpu.matmul %61, %63, %cst_20 {dimension_numbers = #tpu.dot_dimension_numbers<[1], [1], [0], [0], [0, 0, 1, 0], [], []>} : vector<8x8xbf16>, vector<8x8xbf16>, vector<8x8xf32> -> vector<8x8xf32>
    %cst_21 = arith.constant 0.353553385 : f32
    %67 = vector.broadcast %cst_21 : f32 to vector<8x8xf32>
    %68 = arith.mulf %66, %67 : vector<8x8xf32>
    %cst_22 = arith.constant -1.000000e+30 : f32
    %69 = vector.broadcast %cst_22 : f32 to vector<8x8xf32>
    %70 = arith.select %4, %68, %69 : vector<8x8xi1>, vector<8x8xf32>
    %cst_23 = arith.constant dense<0xFF800000> : vector<8xf32>
    %71 = vector.multi_reduction <maximumf>, %70, %cst_23 [1] : vector<8x8xf32> to vector<8xf32>
    %72 = vector.shape_cast %71 : vector<8xf32> to vector<8x1xf32>
    %73 = vector.broadcast %72 : vector<8x1xf32> to vector<8x8xf32>
    %74 = arith.subf %70, %73 : vector<8x8xf32>
    %75 = math.exp %74 : vector<8x8xf32>
    %cst_24 = arith.constant dense<0.000000e+00> : vector<8xf32>
    %76 = vector.multi_reduction <add>, %75, %cst_24 [1] : vector<8x8xf32> to vector<8xf32>
    %77 = vector.shape_cast %76 : vector<8xf32> to vector<8x1xf32>
    %78 = vector.broadcast %77 : vector<8x1xf32> to vector<8x8xf32>
    %79 = arith.divf %75, %78 : vector<8x8xf32>
    %80 = arith.truncf %79 : vector<8x8xf32> to vector<8x8xbf16>
    %cst_25 = arith.constant dense<0.000000e+00> : vector<8x8xf32>
    %81 = tpu.matmul %80, %65, %cst_25 {dimension_numbers = #tpu.dot_dimension_numbers<[1], [0], [0], [1], [0, 0, 1, 1], [], []>} : vector<8x8xbf16>, vector<8x8xbf16>, vector<8x8xf32> -> vector<8x8xf32>
    %82 = vector.extract_strided_slice %13 {offsets = [0, 24], sizes = [8, 8], strides = [1, 1]} : vector<8x32xf32> to vector<8x8xf32>
    %83 = arith.truncf %82 : vector<8x8xf32> to vector<8x8xbf16>
    %84 = vector.extract_strided_slice %14 {offsets = [0, 24], sizes = [8, 8], strides = [1, 1]} : vector<8x32xf32> to vector<8x8xf32>
    %85 = arith.truncf %84 : vector<8x8xf32> to vector<8x8xbf16>
    %86 = vector.extract_strided_slice %15 {offsets = [0, 24], sizes = [8, 8], strides = [1, 1]} : vector<8x32xf32> to vector<8x8xf32>
    %87 = arith.truncf %86 : vector<8x8xf32> to vector<8x8xbf16>
    %cst_26 = arith.constant dense<0.000000e+00> : vector<8x8xf32>
    %88 = tpu.matmul %83, %85, %cst_26 {dimension_numbers = #tpu.dot_dimension_numbers<[1], [1], [0], [0], [0, 0, 1, 0], [], []>} : vector<8x8xbf16>, vector<8x8xbf16>, vector<8x8xf32> -> vector<8x8xf32>
    %cst_27 = arith.constant 0.353553385 : f32
    %89 = vector.broadcast %cst_27 : f32 to vector<8x8xf32>
    %90 = arith.mulf %88, %89 : vector<8x8xf32>
    %cst_28 = arith.constant -1.000000e+30 : f32
    %91 = vector.broadcast %cst_28 : f32 to vector<8x8xf32>
    %92 = arith.select %4, %90, %91 : vector<8x8xi1>, vector<8x8xf32>
    %cst_29 = arith.constant dense<0xFF800000> : vector<8xf32>
    %93 = vector.multi_reduction <maximumf>, %92, %cst_29 [1] : vector<8x8xf32> to vector<8xf32>
    %94 = vector.shape_cast %93 : vector<8xf32> to vector<8x1xf32>
    %95 = vector.broadcast %94 : vector<8x1xf32> to vector<8x8xf32>
    %96 = arith.subf %92, %95 : vector<8x8xf32>
    %97 = math.exp %96 : vector<8x8xf32>
    %cst_30 = arith.constant dense<0.000000e+00> : vector<8xf32>
    %98 = vector.multi_reduction <add>, %97, %cst_30 [1] : vector<8x8xf32> to vector<8xf32>
    %99 = vector.shape_cast %98 : vector<8xf32> to vector<8x1xf32>
    %100 = vector.broadcast %99 : vector<8x1xf32> to vector<8x8xf32>
    %101 = arith.divf %97, %100 : vector<8x8xf32>
    %102 = arith.truncf %101 : vector<8x8xf32> to vector<8x8xbf16>
    %cst_31 = arith.constant dense<0.000000e+00> : vector<8x8xf32>
    %103 = tpu.matmul %102, %87, %cst_31 {dimension_numbers = #tpu.dot_dimension_numbers<[1], [0], [0], [1], [0, 0, 1, 1], [], []>} : vector<8x8xbf16>, vector<8x8xbf16>, vector<8x8xf32> -> vector<8x8xf32>
    %104 = tpu.concatenate %37, %59, %81, %103 in 1 : vector<8x8xf32>, vector<8x8xf32>, vector<8x8xf32>, vector<8x8xf32> -> vector<8x32xf32>
    %c0_32 = arith.constant 0 : index
    %c0_33 = arith.constant 0 : index
    %c0_34 = arith.constant 0 : index
    %105 = vector.load %arg4[%c0_32, %c0_33, %c0_34] : memref<2x32x32xbf16, #tpu.memory_space<vmem>>, vector<1x32x32xbf16>
    %106 = vector.shape_cast %105 : vector<1x32x32xbf16> to vector<32x32xbf16>
    %107 = arith.truncf %104 : vector<8x32xf32> to vector<8x32xbf16>
    %cst_35 = arith.constant dense<0.000000e+00> : vector<8x32xf32>
    %108 = tpu.matmul %107, %106, %cst_35 {dimension_numbers = #tpu.dot_dimension_numbers<[1], [0], [0], [1], [0, 0, 1, 1], [], []>} : vector<8x32xbf16>, vector<32x32xbf16>, vector<8x32xf32> -> vector<8x32xf32>
    %109 = arith.addf %1, %108 : vector<8x32xf32>
    %c0_36 = arith.constant 0 : index
    %c0_37 = arith.constant 0 : index
    %c0_38 = arith.constant 0 : index
    %110 = vector.load %arg5[%c0_36, %c0_37, %c0_38] : memref<2x1x32xf32, #tpu.memory_space<vmem>>, vector<1x1x32xf32>
    %111 = vector.shape_cast %110 : vector<1x1x32xf32> to vector<1x32xf32>
    %112 = vector.broadcast %111 : vector<1x32xf32> to vector<8x32xf32>
    %113 = arith.addf %109, %112 : vector<8x32xf32>
    %c0_39 = arith.constant 0 : index
    %c0_40 = arith.constant 0 : index
    %c0_41 = arith.constant 0 : index
    %114 = vector.load %arg6[%c0_39, %c0_40, %c0_41] : memref<2x1x32xf32, #tpu.memory_space<vmem>>, vector<1x1x32xf32>
    %115 = vector.shape_cast %114 : vector<1x1x32xf32> to vector<1x32xf32>
    %c0_42 = arith.constant 0 : index
    %c0_43 = arith.constant 0 : index
    %c0_44 = arith.constant 0 : index
    %116 = vector.load %arg7[%c0_42, %c0_43, %c0_44] : memref<2x1x32xf32, #tpu.memory_space<vmem>>, vector<1x1x32xf32>
    %117 = vector.shape_cast %116 : vector<1x1x32xf32> to vector<1x32xf32>
    %cst_45 = arith.constant dense<0.000000e+00> : vector<8xf32>
    %118 = vector.multi_reduction <add>, %113, %cst_45 [1] : vector<8x32xf32> to vector<8xf32>
    %119 = vector.shape_cast %118 : vector<8xf32> to vector<8x1xf32>
    %cst_46 = arith.constant 3.200000e+01 : f32
    %120 = vector.broadcast %cst_46 : f32 to vector<8x1xf32>
    %121 = arith.divf %119, %120 : vector<8x1xf32>
    %122 = vector.broadcast %121 : vector<8x1xf32> to vector<8x32xf32>
    %123 = arith.subf %113, %122 : vector<8x32xf32>
    %124 = arith.mulf %123, %123 : vector<8x32xf32>
    %cst_47 = arith.constant dense<0.000000e+00> : vector<8xf32>
    %125 = vector.multi_reduction <add>, %124, %cst_47 [1] : vector<8x32xf32> to vector<8xf32>
    %126 = vector.shape_cast %125 : vector<8xf32> to vector<8x1xf32>
    %cst_48 = arith.constant 3.200000e+01 : f32
    %127 = vector.broadcast %cst_48 : f32 to vector<8x1xf32>
    %128 = arith.divf %126, %127 : vector<8x1xf32>
    %cst_49 = arith.constant 9.99999974E-6 : f32
    %129 = vector.broadcast %cst_49 : f32 to vector<8x1xf32>
    %130 = arith.addf %128, %129 : vector<8x1xf32>
    %131 = math.rsqrt %130 : vector<8x1xf32>
    %132 = vector.broadcast %131 : vector<8x1xf32> to vector<8x32xf32>
    %133 = arith.mulf %123, %132 : vector<8x32xf32>
    %134 = vector.broadcast %115 : vector<1x32xf32> to vector<8x32xf32>
    %135 = arith.mulf %133, %134 : vector<8x32xf32>
    %136 = vector.broadcast %117 : vector<1x32xf32> to vector<8x32xf32>
    %137 = arith.addf %135, %136 : vector<8x32xf32>
    %c0_50 = arith.constant 0 : index
    %c0_51 = arith.constant 0 : index
    %c0_52 = arith.constant 0 : index
    %138 = vector.load %arg8[%c0_50, %c0_51, %c0_52] : memref<2x32x32xbf16, #tpu.memory_space<vmem>>, vector<1x32x32xbf16>
    %139 = vector.shape_cast %138 : vector<1x32x32xbf16> to vector<32x32xbf16>
    %140 = arith.truncf %137 : vector<8x32xf32> to vector<8x32xbf16>
    %cst_53 = arith.constant dense<0.000000e+00> : vector<8x32xf32>
    %141 = tpu.matmul %140, %139, %cst_53 {dimension_numbers = #tpu.dot_dimension_numbers<[1], [0], [0], [1], [0, 0, 1, 1], [], []>} : vector<8x32xbf16>, vector<32x32xbf16>, vector<8x32xf32> -> vector<8x32xf32>
    %c0_54 = arith.constant 0 : index
    %c0_55 = arith.constant 0 : index
    %c0_56 = arith.constant 0 : index
    %142 = vector.load %arg9[%c0_54, %c0_55, %c0_56] : memref<2x1x32xf32, #tpu.memory_space<vmem>>, vector<1x1x32xf32>
    %143 = vector.shape_cast %142 : vector<1x1x32xf32> to vector<1x32xf32>
    %144 = vector.broadcast %143 : vector<1x32xf32> to vector<8x32xf32>
    %145 = arith.addf %141, %144 : vector<8x32xf32>
    %c0_57 = arith.constant 0 : index
    %c0_58 = arith.constant 0 : index
    %c0_59 = arith.constant 0 : index
    %146 = vector.load %arg10[%c0_57, %c0_58, %c0_59] : memref<2x32x64xbf16, #tpu.memory_space<vmem>>, vector<1x32x64xbf16>
    %147 = vector.shape_cast %146 : vector<1x32x64xbf16> to vector<32x64xbf16>
    %148 = arith.truncf %1 : vector<8x32xf32> to vector<8x32xbf16>
    %cst_60 = arith.constant dense<0.000000e+00> : vector<8x64xf32>
    %149 = tpu.matmul %148, %147, %cst_60 {dimension_numbers = #tpu.dot_dimension_numbers<[1], [0], [0], [1], [0, 0, 1, 1], [], []>} : vector<8x32xbf16>, vector<32x64xbf16>, vector<8x64xf32> -> vector<8x64xf32>
    %c0_61 = arith.constant 0 : index
    %c0_62 = arith.constant 0 : index
    %c0_63 = arith.constant 0 : index
    %150 = vector.load %arg11[%c0_61, %c0_62, %c0_63] : memref<2x1x64xf32, #tpu.memory_space<vmem>>, vector<1x1x64xf32>
    %151 = vector.shape_cast %150 : vector<1x1x64xf32> to vector<1x64xf32>
    %152 = vector.broadcast %151 : vector<1x64xf32> to vector<8x64xf32>
    %153 = arith.addf %149, %152 : vector<8x64xf32>
    %154 = vector.extract_strided_slice %153 {offsets = [0, 0], sizes = [8, 32], strides = [1, 1]} : vector<8x64xf32> to vector<8x32xf32>
    %155 = vector.extract_strided_slice %153 {offsets = [0, 32], sizes = [8, 32], strides = [1, 1]} : vector<8x64xf32> to vector<8x32xf32>
    %156 = vector.extract_strided_slice %145 {offsets = [0, 0], sizes = [8, 8], strides = [1, 1]} : vector<8x32xf32> to vector<8x8xf32>
    %157 = arith.truncf %156 : vector<8x8xf32> to vector<8x8xbf16>
    %158 = vector.extract_strided_slice %154 {offsets = [0, 0], sizes = [8, 8], strides = [1, 1]} : vector<8x32xf32> to vector<8x8xf32>
    %159 = arith.truncf %158 : vector<8x8xf32> to vector<8x8xbf16>
    %160 = vector.extract_strided_slice %155 {offsets = [0, 0], sizes = [8, 8], strides = [1, 1]} : vector<8x32xf32> to vector<8x8xf32>
    %161 = arith.truncf %160 : vector<8x8xf32> to vector<8x8xbf16>
    %cst_64 = arith.constant dense<0.000000e+00> : vector<8x8xf32>
    %162 = tpu.matmul %157, %159, %cst_64 {dimension_numbers = #tpu.dot_dimension_numbers<[1], [1], [0], [0], [0, 0, 1, 0], [], []>} : vector<8x8xbf16>, vector<8x8xbf16>, vector<8x8xf32> -> vector<8x8xf32>
    %cst_65 = arith.constant 0.353553385 : f32
    %163 = vector.broadcast %cst_65 : f32 to vector<8x8xf32>
    %164 = arith.mulf %162, %163 : vector<8x8xf32>
    %cst_66 = arith.constant dense<0xFF800000> : vector<8xf32>
    %165 = vector.multi_reduction <maximumf>, %164, %cst_66 [1] : vector<8x8xf32> to vector<8xf32>
    %166 = vector.shape_cast %165 : vector<8xf32> to vector<8x1xf32>
    %167 = vector.broadcast %166 : vector<8x1xf32> to vector<8x8xf32>
    %168 = arith.subf %164, %167 : vector<8x8xf32>
    %169 = math.exp %168 : vector<8x8xf32>
    %cst_67 = arith.constant dense<0.000000e+00> : vector<8xf32>
    %170 = vector.multi_reduction <add>, %169, %cst_67 [1] : vector<8x8xf32> to vector<8xf32>
    %171 = vector.shape_cast %170 : vector<8xf32> to vector<8x1xf32>
    %172 = vector.broadcast %171 : vector<8x1xf32> to vector<8x8xf32>
    %173 = arith.divf %169, %172 : vector<8x8xf32>
    %174 = arith.truncf %173 : vector<8x8xf32> to vector<8x8xbf16>
    %cst_68 = arith.constant dense<0.000000e+00> : vector<8x8xf32>
    %175 = tpu.matmul %174, %161, %cst_68 {dimension_numbers = #tpu.dot_dimension_numbers<[1], [0], [0], [1], [0, 0, 1, 1], [], []>} : vector<8x8xbf16>, vector<8x8xbf16>, vector<8x8xf32> -> vector<8x8xf32>
    %176 = vector.extract_strided_slice %145 {offsets = [0, 8], sizes = [8, 8], strides = [1, 1]} : vector<8x32xf32> to vector<8x8xf32>
    %177 = arith.truncf %176 : vector<8x8xf32> to vector<8x8xbf16>
    %178 = vector.extract_strided_slice %154 {offsets = [0, 8], sizes = [8, 8], strides = [1, 1]} : vector<8x32xf32> to vector<8x8xf32>
    %179 = arith.truncf %178 : vector<8x8xf32> to vector<8x8xbf16>
    %180 = vector.extract_strided_slice %155 {offsets = [0, 8], sizes = [8, 8], strides = [1, 1]} : vector<8x32xf32> to vector<8x8xf32>
    %181 = arith.truncf %180 : vector<8x8xf32> to vector<8x8xbf16>
    %cst_69 = arith.constant dense<0.000000e+00> : vector<8x8xf32>
    %182 = tpu.matmul %177, %179, %cst_69 {dimension_numbers = #tpu.dot_dimension_numbers<[1], [1], [0], [0], [0, 0, 1, 0], [], []>} : vector<8x8xbf16>, vector<8x8xbf16>, vector<8x8xf32> -> vector<8x8xf32>
    %cst_70 = arith.constant 0.353553385 : f32
    %183 = vector.broadcast %cst_70 : f32 to vector<8x8xf32>
    %184 = arith.mulf %182, %183 : vector<8x8xf32>
    %cst_71 = arith.constant dense<0xFF800000> : vector<8xf32>
    %185 = vector.multi_reduction <maximumf>, %184, %cst_71 [1] : vector<8x8xf32> to vector<8xf32>
    %186 = vector.shape_cast %185 : vector<8xf32> to vector<8x1xf32>
    %187 = vector.broadcast %186 : vector<8x1xf32> to vector<8x8xf32>
    %188 = arith.subf %184, %187 : vector<8x8xf32>
    %189 = math.exp %188 : vector<8x8xf32>
    %cst_72 = arith.constant dense<0.000000e+00> : vector<8xf32>
    %190 = vector.multi_reduction <add>, %189, %cst_72 [1] : vector<8x8xf32> to vector<8xf32>
    %191 = vector.shape_cast %190 : vector<8xf32> to vector<8x1xf32>
    %192 = vector.broadcast %191 : vector<8x1xf32> to vector<8x8xf32>
    %193 = arith.divf %189, %192 : vector<8x8xf32>
    %194 = arith.truncf %193 : vector<8x8xf32> to vector<8x8xbf16>
    %cst_73 = arith.constant dense<0.000000e+00> : vector<8x8xf32>
    %195 = tpu.matmul %194, %181, %cst_73 {dimension_numbers = #tpu.dot_dimension_numbers<[1], [0], [0], [1], [0, 0, 1, 1], [], []>} : vector<8x8xbf16>, vector<8x8xbf16>, vector<8x8xf32> -> vector<8x8xf32>
    %196 = vector.extract_strided_slice %145 {offsets = [0, 16], sizes = [8, 8], strides = [1, 1]} : vector<8x32xf32> to vector<8x8xf32>
    %197 = arith.truncf %196 : vector<8x8xf32> to vector<8x8xbf16>
    %198 = vector.extract_strided_slice %154 {offsets = [0, 16], sizes = [8, 8], strides = [1, 1]} : vector<8x32xf32> to vector<8x8xf32>
    %199 = arith.truncf %198 : vector<8x8xf32> to vector<8x8xbf16>
    %200 = vector.extract_strided_slice %155 {offsets = [0, 16], sizes = [8, 8], strides = [1, 1]} : vector<8x32xf32> to vector<8x8xf32>
    %201 = arith.truncf %200 : vector<8x8xf32> to vector<8x8xbf16>
    %cst_74 = arith.constant dense<0.000000e+00> : vector<8x8xf32>
    %202 = tpu.matmul %197, %199, %cst_74 {dimension_numbers = #tpu.dot_dimension_numbers<[1], [1], [0], [0], [0, 0, 1, 0], [], []>} : vector<8x8xbf16>, vector<8x8xbf16>, vector<8x8xf32> -> vector<8x8xf32>
    %cst_75 = arith.constant 0.353553385 : f32
    %203 = vector.broadcast %cst_75 : f32 to vector<8x8xf32>
    %204 = arith.mulf %202, %203 : vector<8x8xf32>
    %cst_76 = arith.constant dense<0xFF800000> : vector<8xf32>
    %205 = vector.multi_reduction <maximumf>, %204, %cst_76 [1] : vector<8x8xf32> to vector<8xf32>
    %206 = vector.shape_cast %205 : vector<8xf32> to vector<8x1xf32>
    %207 = vector.broadcast %206 : vector<8x1xf32> to vector<8x8xf32>
    %208 = arith.subf %204, %207 : vector<8x8xf32>
    %209 = math.exp %208 : vector<8x8xf32>
    %cst_77 = arith.constant dense<0.000000e+00> : vector<8xf32>
    %210 = vector.multi_reduction <add>, %209, %cst_77 [1] : vector<8x8xf32> to vector<8xf32>
    %211 = vector.shape_cast %210 : vector<8xf32> to vector<8x1xf32>
    %212 = vector.broadcast %211 : vector<8x1xf32> to vector<8x8xf32>
    %213 = arith.divf %209, %212 : vector<8x8xf32>
    %214 = arith.truncf %213 : vector<8x8xf32> to vector<8x8xbf16>
    %cst_78 = arith.constant dense<0.000000e+00> : vector<8x8xf32>
    %215 = tpu.matmul %214, %201, %cst_78 {dimension_numbers = #tpu.dot_dimension_numbers<[1], [0], [0], [1], [0, 0, 1, 1], [], []>} : vector<8x8xbf16>, vector<8x8xbf16>, vector<8x8xf32> -> vector<8x8xf32>
    %216 = vector.extract_strided_slice %145 {offsets = [0, 24], sizes = [8, 8], strides = [1, 1]} : vector<8x32xf32> to vector<8x8xf32>
    %217 = arith.truncf %216 : vector<8x8xf32> to vector<8x8xbf16>
    %218 = vector.extract_strided_slice %154 {offsets = [0, 24], sizes = [8, 8], strides = [1, 1]} : vector<8x32xf32> to vector<8x8xf32>
    %219 = arith.truncf %218 : vector<8x8xf32> to vector<8x8xbf16>
    %220 = vector.extract_strided_slice %155 {offsets = [0, 24], sizes = [8, 8], strides = [1, 1]} : vector<8x32xf32> to vector<8x8xf32>
    %221 = arith.truncf %220 : vector<8x8xf32> to vector<8x8xbf16>
    %cst_79 = arith.constant dense<0.000000e+00> : vector<8x8xf32>
    %222 = tpu.matmul %217, %219, %cst_79 {dimension_numbers = #tpu.dot_dimension_numbers<[1], [1], [0], [0], [0, 0, 1, 0], [], []>} : vector<8x8xbf16>, vector<8x8xbf16>, vector<8x8xf32> -> vector<8x8xf32>
    %cst_80 = arith.constant 0.353553385 : f32
    %223 = vector.broadcast %cst_80 : f32 to vector<8x8xf32>
    %224 = arith.mulf %222, %223 : vector<8x8xf32>
    %cst_81 = arith.constant dense<0xFF800000> : vector<8xf32>
    %225 = vector.multi_reduction <maximumf>, %224, %cst_81 [1] : vector<8x8xf32> to vector<8xf32>
    %226 = vector.shape_cast %225 : vector<8xf32> to vector<8x1xf32>
    %227 = vector.broadcast %226 : vector<8x1xf32> to vector<8x8xf32>
    %228 = arith.subf %224, %227 : vector<8x8xf32>
    %229 = math.exp %228 : vector<8x8xf32>
    %cst_82 = arith.constant dense<0.000000e+00> : vector<8xf32>
    %230 = vector.multi_reduction <add>, %229, %cst_82 [1] : vector<8x8xf32> to vector<8xf32>
    %231 = vector.shape_cast %230 : vector<8xf32> to vector<8x1xf32>
    %232 = vector.broadcast %231 : vector<8x1xf32> to vector<8x8xf32>
    %233 = arith.divf %229, %232 : vector<8x8xf32>
    %234 = arith.truncf %233 : vector<8x8xf32> to vector<8x8xbf16>
    %cst_83 = arith.constant dense<0.000000e+00> : vector<8x8xf32>
    %235 = tpu.matmul %234, %221, %cst_83 {dimension_numbers = #tpu.dot_dimension_numbers<[1], [0], [0], [1], [0, 0, 1, 1], [], []>} : vector<8x8xbf16>, vector<8x8xbf16>, vector<8x8xf32> -> vector<8x8xf32>
    %236 = tpu.concatenate %175, %195, %215, %235 in 1 : vector<8x8xf32>, vector<8x8xf32>, vector<8x8xf32>, vector<8x8xf32> -> vector<8x32xf32>
    %c0_84 = arith.constant 0 : index
    %c0_85 = arith.constant 0 : index
    %c0_86 = arith.constant 0 : index
    %237 = vector.load %arg12[%c0_84, %c0_85, %c0_86] : memref<2x32x32xbf16, #tpu.memory_space<vmem>>, vector<1x32x32xbf16>
    %238 = vector.shape_cast %237 : vector<1x32x32xbf16> to vector<32x32xbf16>
    %239 = arith.truncf %236 : vector<8x32xf32> to vector<8x32xbf16>
    %cst_87 = arith.constant dense<0.000000e+00> : vector<8x32xf32>
    %240 = tpu.matmul %239, %238, %cst_87 {dimension_numbers = #tpu.dot_dimension_numbers<[1], [0], [0], [1], [0, 0, 1, 1], [], []>} : vector<8x32xbf16>, vector<32x32xbf16>, vector<8x32xf32> -> vector<8x32xf32>
    %241 = arith.addf %137, %240 : vector<8x32xf32>
    %c0_88 = arith.constant 0 : index
    %c0_89 = arith.constant 0 : index
    %c0_90 = arith.constant 0 : index
    %242 = vector.load %arg13[%c0_88, %c0_89, %c0_90] : memref<2x1x32xf32, #tpu.memory_space<vmem>>, vector<1x1x32xf32>
    %243 = vector.shape_cast %242 : vector<1x1x32xf32> to vector<1x32xf32>
    %244 = vector.broadcast %243 : vector<1x32xf32> to vector<8x32xf32>
    %245 = arith.addf %241, %244 : vector<8x32xf32>
    %c0_91 = arith.constant 0 : index
    %c0_92 = arith.constant 0 : index
    %c0_93 = arith.constant 0 : index
    %246 = vector.load %arg14[%c0_91, %c0_92, %c0_93] : memref<2x1x32xf32, #tpu.memory_space<vmem>>, vector<1x1x32xf32>
    %247 = vector.shape_cast %246 : vector<1x1x32xf32> to vector<1x32xf32>
    %c0_94 = arith.constant 0 : index
    %c0_95 = arith.constant 0 : index
    %c0_96 = arith.constant 0 : index
    %248 = vector.load %arg15[%c0_94, %c0_95, %c0_96] : memref<2x1x32xf32, #tpu.memory_space<vmem>>, vector<1x1x32xf32>
    %249 = vector.shape_cast %248 : vector<1x1x32xf32> to vector<1x32xf32>
    %cst_97 = arith.constant dense<0.000000e+00> : vector<8xf32>
    %250 = vector.multi_reduction <add>, %245, %cst_97 [1] : vector<8x32xf32> to vector<8xf32>
    %251 = vector.shape_cast %250 : vector<8xf32> to vector<8x1xf32>
    %cst_98 = arith.constant 3.200000e+01 : f32
    %252 = vector.broadcast %cst_98 : f32 to vector<8x1xf32>
    %253 = arith.divf %251, %252 : vector<8x1xf32>
    %254 = vector.broadcast %253 : vector<8x1xf32> to vector<8x32xf32>
    %255 = arith.subf %245, %254 : vector<8x32xf32>
    %256 = arith.mulf %255, %255 : vector<8x32xf32>
    %cst_99 = arith.constant dense<0.000000e+00> : vector<8xf32>
    %257 = vector.multi_reduction <add>, %256, %cst_99 [1] : vector<8x32xf32> to vector<8xf32>
    %258 = vector.shape_cast %257 : vector<8xf32> to vector<8x1xf32>
    %cst_100 = arith.constant 3.200000e+01 : f32
    %259 = vector.broadcast %cst_100 : f32 to vector<8x1xf32>
    %260 = arith.divf %258, %259 : vector<8x1xf32>
    %cst_101 = arith.constant 9.99999974E-6 : f32
    %261 = vector.broadcast %cst_101 : f32 to vector<8x1xf32>
    %262 = arith.addf %260, %261 : vector<8x1xf32>
    %263 = math.rsqrt %262 : vector<8x1xf32>
    %264 = vector.broadcast %263 : vector<8x1xf32> to vector<8x32xf32>
    %265 = arith.mulf %255, %264 : vector<8x32xf32>
    %266 = vector.broadcast %247 : vector<1x32xf32> to vector<8x32xf32>
    %267 = arith.mulf %265, %266 : vector<8x32xf32>
    %268 = vector.broadcast %249 : vector<1x32xf32> to vector<8x32xf32>
    %269 = arith.addf %267, %268 : vector<8x32xf32>
    %c0_102 = arith.constant 0 : index
    %c0_103 = arith.constant 0 : index
    %c0_104 = arith.constant 0 : index
    %270 = vector.load %arg16[%c0_102, %c0_103, %c0_104] : memref<2x32x64xbf16, #tpu.memory_space<vmem>>, vector<1x32x64xbf16>
    %271 = vector.shape_cast %270 : vector<1x32x64xbf16> to vector<32x64xbf16>
    %272 = arith.truncf %269 : vector<8x32xf32> to vector<8x32xbf16>
    %cst_105 = arith.constant dense<0.000000e+00> : vector<8x64xf32>
    %273 = tpu.matmul %272, %271, %cst_105 {dimension_numbers = #tpu.dot_dimension_numbers<[1], [0], [0], [1], [0, 0, 1, 1], [], []>} : vector<8x32xbf16>, vector<32x64xbf16>, vector<8x64xf32> -> vector<8x64xf32>
    %c0_106 = arith.constant 0 : index
    %c0_107 = arith.constant 0 : index
    %c0_108 = arith.constant 0 : index
    %274 = vector.load %arg17[%c0_106, %c0_107, %c0_108] : memref<2x1x64xf32, #tpu.memory_space<vmem>>, vector<1x1x64xf32>
    %275 = vector.shape_cast %274 : vector<1x1x64xf32> to vector<1x64xf32>
    %276 = vector.broadcast %275 : vector<1x64xf32> to vector<8x64xf32>
    %277 = arith.addf %273, %276 : vector<8x64xf32>
    %cst_109 = arith.constant 0.000000e+00 : f32
    %278 = vector.broadcast %cst_109 : f32 to vector<8x64xf32>
    %279 = arith.maximumf %277, %278 : vector<8x64xf32>
    %c0_110 = arith.constant 0 : index
    %c0_111 = arith.constant 0 : index
    %c0_112 = arith.constant 0 : index
    %280 = vector.load %arg18[%c0_110, %c0_111, %c0_112] : memref<2x64x32xbf16, #tpu.memory_space<vmem>>, vector<1x64x32xbf16>
    %281 = vector.shape_cast %280 : vector<1x64x32xbf16> to vector<64x32xbf16>
    %282 = arith.truncf %279 : vector<8x64xf32> to vector<8x64xbf16>
    %cst_113 = arith.constant dense<0.000000e+00> : vector<8x32xf32>
    %283 = tpu.matmul %282, %281, %cst_113 {dimension_numbers = #tpu.dot_dimension_numbers<[1], [0], [0], [1], [0, 0, 1, 1], [], []>} : vector<8x64xbf16>, vector<64x32xbf16>, vector<8x32xf32> -> vector<8x32xf32>
    %284 = arith.addf %269, %283 : vector<8x32xf32>
    %c0_114 = arith.constant 0 : index
    %c0_115 = arith.constant 0 : index
    %c0_116 = arith.constant 0 : index
    %285 = vector.load %arg19[%c0_114, %c0_115, %c0_116] : memref<2x1x32xf32, #tpu.memory_space<vmem>>, vector<1x1x32xf32>
    %286 = vector.shape_cast %285 : vector<1x1x32xf32> to vector<1x32xf32>
    %287 = vector.broadcast %286 : vector<1x32xf32> to vector<8x32xf32>
    %288 = arith.addf %284, %287 : vector<8x32xf32>
    %c0_117 = arith.constant 0 : index
    %c0_118 = arith.constant 0 : index
    %c0_119 = arith.constant 0 : index
    %289 = vector.load %arg20[%c0_117, %c0_118, %c0_119] : memref<2x1x32xf32, #tpu.memory_space<vmem>>, vector<1x1x32xf32>
    %290 = vector.shape_cast %289 : vector<1x1x32xf32> to vector<1x32xf32>
    %c0_120 = arith.constant 0 : index
    %c0_121 = arith.constant 0 : index
    %c0_122 = arith.constant 0 : index
    %291 = vector.load %arg21[%c0_120, %c0_121, %c0_122] : memref<2x1x32xf32, #tpu.memory_space<vmem>>, vector<1x1x32xf32>
    %292 = vector.shape_cast %291 : vector<1x1x32xf32> to vector<1x32xf32>
    %cst_123 = arith.constant dense<0.000000e+00> : vector<8xf32>
    %293 = vector.multi_reduction <add>, %288, %cst_123 [1] : vector<8x32xf32> to vector<8xf32>
    %294 = vector.shape_cast %293 : vector<8xf32> to vector<8x1xf32>
    %cst_124 = arith.constant 3.200000e+01 : f32
    %295 = vector.broadcast %cst_124 : f32 to vector<8x1xf32>
    %296 = arith.divf %294, %295 : vector<8x1xf32>
    %297 = vector.broadcast %296 : vector<8x1xf32> to vector<8x32xf32>
    %298 = arith.subf %288, %297 : vector<8x32xf32>
    %299 = arith.mulf %298, %298 : vector<8x32xf32>
    %cst_125 = arith.constant dense<0.000000e+00> : vector<8xf32>
    %300 = vector.multi_reduction <add>, %299, %cst_125 [1] : vector<8x32xf32> to vector<8xf32>
    %301 = vector.shape_cast %300 : vector<8xf32> to vector<8x1xf32>
    %cst_126 = arith.constant 3.200000e+01 : f32
    %302 = vector.broadcast %cst_126 : f32 to vector<8x1xf32>
    %303 = arith.divf %301, %302 : vector<8x1xf32>
    %cst_127 = arith.constant 9.99999974E-6 : f32
    %304 = vector.broadcast %cst_127 : f32 to vector<8x1xf32>
    %305 = arith.addf %303, %304 : vector<8x1xf32>
    %306 = math.rsqrt %305 : vector<8x1xf32>
    %307 = vector.broadcast %306 : vector<8x1xf32> to vector<8x32xf32>
    %308 = arith.mulf %298, %307 : vector<8x32xf32>
    %309 = vector.broadcast %290 : vector<1x32xf32> to vector<8x32xf32>
    %310 = arith.mulf %308, %309 : vector<8x32xf32>
    %311 = vector.broadcast %292 : vector<1x32xf32> to vector<8x32xf32>
    %312 = arith.addf %310, %311 : vector<8x32xf32>
    %c1 = arith.constant 1 : index
    %c0_128 = arith.constant 0 : index
    %c0_129 = arith.constant 0 : index
    %313 = vector.load %arg2[%c1, %c0_128, %c0_129] : memref<2x32x96xbf16, #tpu.memory_space<vmem>>, vector<1x32x96xbf16>
    %314 = vector.shape_cast %313 : vector<1x32x96xbf16> to vector<32x96xbf16>
    %315 = arith.truncf %312 : vector<8x32xf32> to vector<8x32xbf16>
    %cst_130 = arith.constant dense<0.000000e+00> : vector<8x96xf32>
    %316 = tpu.matmul %315, %314, %cst_130 {dimension_numbers = #tpu.dot_dimension_numbers<[1], [0], [0], [1], [0, 0, 1, 1], [], []>} : vector<8x32xbf16>, vector<32x96xbf16>, vector<8x96xf32> -> vector<8x96xf32>
    %c1_131 = arith.constant 1 : index
    %c0_132 = arith.constant 0 : index
    %c0_133 = arith.constant 0 : index
    %317 = vector.load %arg3[%c1_131, %c0_132, %c0_133] : memref<2x1x96xf32, #tpu.memory_space<vmem>>, vector<1x1x96xf32>
    %318 = vector.shape_cast %317 : vector<1x1x96xf32> to vector<1x96xf32>
    %319 = vector.broadcast %318 : vector<1x96xf32> to vector<8x96xf32>
    %320 = arith.addf %316, %319 : vector<8x96xf32>
    %321 = vector.extract_strided_slice %320 {offsets = [0, 0], sizes = [8, 32], strides = [1, 1]} : vector<8x96xf32> to vector<8x32xf32>
    %322 = vector.extract_strided_slice %320 {offsets = [0, 32], sizes = [8, 32], strides = [1, 1]} : vector<8x96xf32> to vector<8x32xf32>
    %323 = vector.extract_strided_slice %320 {offsets = [0, 64], sizes = [8, 32], strides = [1, 1]} : vector<8x96xf32> to vector<8x32xf32>
    %324 = vector.extract_strided_slice %321 {offsets = [0, 0], sizes = [8, 8], strides = [1, 1]} : vector<8x32xf32> to vector<8x8xf32>
    %325 = arith.truncf %324 : vector<8x8xf32> to vector<8x8xbf16>
    %326 = vector.extract_strided_slice %322 {offsets = [0, 0], sizes = [8, 8], strides = [1, 1]} : vector<8x32xf32> to vector<8x8xf32>
    %327 = arith.truncf %326 : vector<8x8xf32> to vector<8x8xbf16>
    %328 = vector.extract_strided_slice %323 {offsets = [0, 0], sizes = [8, 8], strides = [1, 1]} : vector<8x32xf32> to vector<8x8xf32>
    %329 = arith.truncf %328 : vector<8x8xf32> to vector<8x8xbf16>
    %cst_134 = arith.constant dense<0.000000e+00> : vector<8x8xf32>
    %330 = tpu.matmul %325, %327, %cst_134 {dimension_numbers = #tpu.dot_dimension_numbers<[1], [1], [0], [0], [0, 0, 1, 0], [], []>} : vector<8x8xbf16>, vector<8x8xbf16>, vector<8x8xf32> -> vector<8x8xf32>
    %cst_135 = arith.constant 0.353553385 : f32
    %331 = vector.broadcast %cst_135 : f32 to vector<8x8xf32>
    %332 = arith.mulf %330, %331 : vector<8x8xf32>
    %cst_136 = arith.constant -1.000000e+30 : f32
    %333 = vector.broadcast %cst_136 : f32 to vector<8x8xf32>
    %334 = arith.select %4, %332, %333 : vector<8x8xi1>, vector<8x8xf32>
    %cst_137 = arith.constant dense<0xFF800000> : vector<8xf32>
    %335 = vector.multi_reduction <maximumf>, %334, %cst_137 [1] : vector<8x8xf32> to vector<8xf32>
    %336 = vector.shape_cast %335 : vector<8xf32> to vector<8x1xf32>
    %337 = vector.broadcast %336 : vector<8x1xf32> to vector<8x8xf32>
    %338 = arith.subf %334, %337 : vector<8x8xf32>
    %339 = math.exp %338 : vector<8x8xf32>
    %cst_138 = arith.constant dense<0.000000e+00> : vector<8xf32>
    %340 = vector.multi_reduction <add>, %339, %cst_138 [1] : vector<8x8xf32> to vector<8xf32>
    %341 = vector.shape_cast %340 : vector<8xf32> to vector<8x1xf32>
    %342 = vector.broadcast %341 : vector<8x1xf32> to vector<8x8xf32>
    %343 = arith.divf %339, %342 : vector<8x8xf32>
    %344 = arith.truncf %343 : vector<8x8xf32> to vector<8x8xbf16>
    %cst_139 = arith.constant dense<0.000000e+00> : vector<8x8xf32>
    %345 = tpu.matmul %344, %329, %cst_139 {dimension_numbers = #tpu.dot_dimension_numbers<[1], [0], [0], [1], [0, 0, 1, 1], [], []>} : vector<8x8xbf16>, vector<8x8xbf16>, vector<8x8xf32> -> vector<8x8xf32>
    %346 = vector.extract_strided_slice %321 {offsets = [0, 8], sizes = [8, 8], strides = [1, 1]} : vector<8x32xf32> to vector<8x8xf32>
    %347 = arith.truncf %346 : vector<8x8xf32> to vector<8x8xbf16>
    %348 = vector.extract_strided_slice %322 {offsets = [0, 8], sizes = [8, 8], strides = [1, 1]} : vector<8x32xf32> to vector<8x8xf32>
    %349 = arith.truncf %348 : vector<8x8xf32> to vector<8x8xbf16>
    %350 = vector.extract_strided_slice %323 {offsets = [0, 8], sizes = [8, 8], strides = [1, 1]} : vector<8x32xf32> to vector<8x8xf32>
    %351 = arith.truncf %350 : vector<8x8xf32> to vector<8x8xbf16>
    %cst_140 = arith.constant dense<0.000000e+00> : vector<8x8xf32>
    %352 = tpu.matmul %347, %349, %cst_140 {dimension_numbers = #tpu.dot_dimension_numbers<[1], [1], [0], [0], [0, 0, 1, 0], [], []>} : vector<8x8xbf16>, vector<8x8xbf16>, vector<8x8xf32> -> vector<8x8xf32>
    %cst_141 = arith.constant 0.353553385 : f32
    %353 = vector.broadcast %cst_141 : f32 to vector<8x8xf32>
    %354 = arith.mulf %352, %353 : vector<8x8xf32>
    %cst_142 = arith.constant -1.000000e+30 : f32
    %355 = vector.broadcast %cst_142 : f32 to vector<8x8xf32>
    %356 = arith.select %4, %354, %355 : vector<8x8xi1>, vector<8x8xf32>
    %cst_143 = arith.constant dense<0xFF800000> : vector<8xf32>
    %357 = vector.multi_reduction <maximumf>, %356, %cst_143 [1] : vector<8x8xf32> to vector<8xf32>
    %358 = vector.shape_cast %357 : vector<8xf32> to vector<8x1xf32>
    %359 = vector.broadcast %358 : vector<8x1xf32> to vector<8x8xf32>
    %360 = arith.subf %356, %359 : vector<8x8xf32>
    %361 = math.exp %360 : vector<8x8xf32>
    %cst_144 = arith.constant dense<0.000000e+00> : vector<8xf32>
    %362 = vector.multi_reduction <add>, %361, %cst_144 [1] : vector<8x8xf32> to vector<8xf32>
    %363 = vector.shape_cast %362 : vector<8xf32> to vector<8x1xf32>
    %364 = vector.broadcast %363 : vector<8x1xf32> to vector<8x8xf32>
    %365 = arith.divf %361, %364 : vector<8x8xf32>
    %366 = arith.truncf %365 : vector<8x8xf32> to vector<8x8xbf16>
    %cst_145 = arith.constant dense<0.000000e+00> : vector<8x8xf32>
    %367 = tpu.matmul %366, %351, %cst_145 {dimension_numbers = #tpu.dot_dimension_numbers<[1], [0], [0], [1], [0, 0, 1, 1], [], []>} : vector<8x8xbf16>, vector<8x8xbf16>, vector<8x8xf32> -> vector<8x8xf32>
    %368 = vector.extract_strided_slice %321 {offsets = [0, 16], sizes = [8, 8], strides = [1, 1]} : vector<8x32xf32> to vector<8x8xf32>
    %369 = arith.truncf %368 : vector<8x8xf32> to vector<8x8xbf16>
    %370 = vector.extract_strided_slice %322 {offsets = [0, 16], sizes = [8, 8], strides = [1, 1]} : vector<8x32xf32> to vector<8x8xf32>
    %371 = arith.truncf %370 : vector<8x8xf32> to vector<8x8xbf16>
    %372 = vector.extract_strided_slice %323 {offsets = [0, 16], sizes = [8, 8], strides = [1, 1]} : vector<8x32xf32> to vector<8x8xf32>
    %373 = arith.truncf %372 : vector<8x8xf32> to vector<8x8xbf16>
    %cst_146 = arith.constant dense<0.000000e+00> : vector<8x8xf32>
    %374 = tpu.matmul %369, %371, %cst_146 {dimension_numbers = #tpu.dot_dimension_numbers<[1], [1], [0], [0], [0, 0, 1, 0], [], []>} : vector<8x8xbf16>, vector<8x8xbf16>, vector<8x8xf32> -> vector<8x8xf32>
    %cst_147 = arith.constant 0.353553385 : f32
    %375 = vector.broadcast %cst_147 : f32 to vector<8x8xf32>
    %376 = arith.mulf %374, %375 : vector<8x8xf32>
    %cst_148 = arith.constant -1.000000e+30 : f32
    %377 = vector.broadcast %cst_148 : f32 to vector<8x8xf32>
    %378 = arith.select %4, %376, %377 : vector<8x8xi1>, vector<8x8xf32>
    %cst_149 = arith.constant dense<0xFF800000> : vector<8xf32>
    %379 = vector.multi_reduction <maximumf>, %378, %cst_149 [1] : vector<8x8xf32> to vector<8xf32>
    %380 = vector.shape_cast %379 : vector<8xf32> to vector<8x1xf32>
    %381 = vector.broadcast %380 : vector<8x1xf32> to vector<8x8xf32>
    %382 = arith.subf %378, %381 : vector<8x8xf32>
    %383 = math.exp %382 : vector<8x8xf32>
    %cst_150 = arith.constant dense<0.000000e+00> : vector<8xf32>
    %384 = vector.multi_reduction <add>, %383, %cst_150 [1] : vector<8x8xf32> to vector<8xf32>
    %385 = vector.shape_cast %384 : vector<8xf32> to vector<8x1xf32>
    %386 = vector.broadcast %385 : vector<8x1xf32> to vector<8x8xf32>
    %387 = arith.divf %383, %386 : vector<8x8xf32>
    %388 = arith.truncf %387 : vector<8x8xf32> to vector<8x8xbf16>
    %cst_151 = arith.constant dense<0.000000e+00> : vector<8x8xf32>
    %389 = tpu.matmul %388, %373, %cst_151 {dimension_numbers = #tpu.dot_dimension_numbers<[1], [0], [0], [1], [0, 0, 1, 1], [], []>} : vector<8x8xbf16>, vector<8x8xbf16>, vector<8x8xf32> -> vector<8x8xf32>
    %390 = vector.extract_strided_slice %321 {offsets = [0, 24], sizes = [8, 8], strides = [1, 1]} : vector<8x32xf32> to vector<8x8xf32>
    %391 = arith.truncf %390 : vector<8x8xf32> to vector<8x8xbf16>
    %392 = vector.extract_strided_slice %322 {offsets = [0, 24], sizes = [8, 8], strides = [1, 1]} : vector<8x32xf32> to vector<8x8xf32>
    %393 = arith.truncf %392 : vector<8x8xf32> to vector<8x8xbf16>
    %394 = vector.extract_strided_slice %323 {offsets = [0, 24], sizes = [8, 8], strides = [1, 1]} : vector<8x32xf32> to vector<8x8xf32>
    %395 = arith.truncf %394 : vector<8x8xf32> to vector<8x8xbf16>
    %cst_152 = arith.constant dense<0.000000e+00> : vector<8x8xf32>
    %396 = tpu.matmul %391, %393, %cst_152 {dimension_numbers = #tpu.dot_dimension_numbers<[1], [1], [0], [0], [0, 0, 1, 0], [], []>} : vector<8x8xbf16>, vector<8x8xbf16>, vector<8x8xf32> -> vector<8x8xf32>
    %cst_153 = arith.constant 0.353553385 : f32
    %397 = vector.broadcast %cst_153 : f32 to vector<8x8xf32>
    %398 = arith.mulf %396, %397 : vector<8x8xf32>
    %cst_154 = arith.constant -1.000000e+30 : f32
    %399 = vector.broadcast %cst_154 : f32 to vector<8x8xf32>
    %400 = arith.select %4, %398, %399 : vector<8x8xi1>, vector<8x8xf32>
    %cst_155 = arith.constant dense<0xFF800000> : vector<8xf32>
    %401 = vector.multi_reduction <maximumf>, %400, %cst_155 [1] : vector<8x8xf32> to vector<8xf32>
    %402 = vector.shape_cast %401 : vector<8xf32> to vector<8x1xf32>
    %403 = vector.broadcast %402 : vector<8x1xf32> to vector<8x8xf32>
    %404 = arith.subf %400, %403 : vector<8x8xf32>
    %405 = math.exp %404 : vector<8x8xf32>
    %cst_156 = arith.constant dense<0.000000e+00> : vector<8xf32>
    %406 = vector.multi_reduction <add>, %405, %cst_156 [1] : vector<8x8xf32> to vector<8xf32>
    %407 = vector.shape_cast %406 : vector<8xf32> to vector<8x1xf32>
    %408 = vector.broadcast %407 : vector<8x1xf32> to vector<8x8xf32>
    %409 = arith.divf %405, %408 : vector<8x8xf32>
    %410 = arith.truncf %409 : vector<8x8xf32> to vector<8x8xbf16>
    %cst_157 = arith.constant dense<0.000000e+00> : vector<8x8xf32>
    %411 = tpu.matmul %410, %395, %cst_157 {dimension_numbers = #tpu.dot_dimension_numbers<[1], [0], [0], [1], [0, 0, 1, 1], [], []>} : vector<8x8xbf16>, vector<8x8xbf16>, vector<8x8xf32> -> vector<8x8xf32>
    %412 = tpu.concatenate %345, %367, %389, %411 in 1 : vector<8x8xf32>, vector<8x8xf32>, vector<8x8xf32>, vector<8x8xf32> -> vector<8x32xf32>
    %c1_158 = arith.constant 1 : index
    %c0_159 = arith.constant 0 : index
    %c0_160 = arith.constant 0 : index
    %413 = vector.load %arg4[%c1_158, %c0_159, %c0_160] : memref<2x32x32xbf16, #tpu.memory_space<vmem>>, vector<1x32x32xbf16>
    %414 = vector.shape_cast %413 : vector<1x32x32xbf16> to vector<32x32xbf16>
    %415 = arith.truncf %412 : vector<8x32xf32> to vector<8x32xbf16>
    %cst_161 = arith.constant dense<0.000000e+00> : vector<8x32xf32>
    %416 = tpu.matmul %415, %414, %cst_161 {dimension_numbers = #tpu.dot_dimension_numbers<[1], [0], [0], [1], [0, 0, 1, 1], [], []>} : vector<8x32xbf16>, vector<32x32xbf16>, vector<8x32xf32> -> vector<8x32xf32>
    %417 = arith.addf %312, %416 : vector<8x32xf32>
    %c1_162 = arith.constant 1 : index
    %c0_163 = arith.constant 0 : index
    %c0_164 = arith.constant 0 : index
    %418 = vector.load %arg5[%c1_162, %c0_163, %c0_164] : memref<2x1x32xf32, #tpu.memory_space<vmem>>, vector<1x1x32xf32>
    %419 = vector.shape_cast %418 : vector<1x1x32xf32> to vector<1x32xf32>
    %420 = vector.broadcast %419 : vector<1x32xf32> to vector<8x32xf32>
    %421 = arith.addf %417, %420 : vector<8x32xf32>
    %c1_165 = arith.constant 1 : index
    %c0_166 = arith.constant 0 : index
    %c0_167 = arith.constant 0 : index
    %422 = vector.load %arg6[%c1_165, %c0_166, %c0_167] : memref<2x1x32xf32, #tpu.memory_space<vmem>>, vector<1x1x32xf32>
    %423 = vector.shape_cast %422 : vector<1x1x32xf32> to vector<1x32xf32>
    %c1_168 = arith.constant 1 : index
    %c0_169 = arith.constant 0 : index
    %c0_170 = arith.constant 0 : index
    %424 = vector.load %arg7[%c1_168, %c0_169, %c0_170] : memref<2x1x32xf32, #tpu.memory_space<vmem>>, vector<1x1x32xf32>
    %425 = vector.shape_cast %424 : vector<1x1x32xf32> to vector<1x32xf32>
    %cst_171 = arith.constant dense<0.000000e+00> : vector<8xf32>
    %426 = vector.multi_reduction <add>, %421, %cst_171 [1] : vector<8x32xf32> to vector<8xf32>
    %427 = vector.shape_cast %426 : vector<8xf32> to vector<8x1xf32>
    %cst_172 = arith.constant 3.200000e+01 : f32
    %428 = vector.broadcast %cst_172 : f32 to vector<8x1xf32>
    %429 = arith.divf %427, %428 : vector<8x1xf32>
    %430 = vector.broadcast %429 : vector<8x1xf32> to vector<8x32xf32>
    %431 = arith.subf %421, %430 : vector<8x32xf32>
    %432 = arith.mulf %431, %431 : vector<8x32xf32>
    %cst_173 = arith.constant dense<0.000000e+00> : vector<8xf32>
    %433 = vector.multi_reduction <add>, %432, %cst_173 [1] : vector<8x32xf32> to vector<8xf32>
    %434 = vector.shape_cast %433 : vector<8xf32> to vector<8x1xf32>
    %cst_174 = arith.constant 3.200000e+01 : f32
    %435 = vector.broadcast %cst_174 : f32 to vector<8x1xf32>
    %436 = arith.divf %434, %435 : vector<8x1xf32>
    %cst_175 = arith.constant 9.99999974E-6 : f32
    %437 = vector.broadcast %cst_175 : f32 to vector<8x1xf32>
    %438 = arith.addf %436, %437 : vector<8x1xf32>
    %439 = math.rsqrt %438 : vector<8x1xf32>
    %440 = vector.broadcast %439 : vector<8x1xf32> to vector<8x32xf32>
    %441 = arith.mulf %431, %440 : vector<8x32xf32>
    %442 = vector.broadcast %423 : vector<1x32xf32> to vector<8x32xf32>
    %443 = arith.mulf %441, %442 : vector<8x32xf32>
    %444 = vector.broadcast %425 : vector<1x32xf32> to vector<8x32xf32>
    %445 = arith.addf %443, %444 : vector<8x32xf32>
    %c1_176 = arith.constant 1 : index
    %c0_177 = arith.constant 0 : index
    %c0_178 = arith.constant 0 : index
    %446 = vector.load %arg8[%c1_176, %c0_177, %c0_178] : memref<2x32x32xbf16, #tpu.memory_space<vmem>>, vector<1x32x32xbf16>
    %447 = vector.shape_cast %446 : vector<1x32x32xbf16> to vector<32x32xbf16>
    %448 = arith.truncf %445 : vector<8x32xf32> to vector<8x32xbf16>
    %cst_179 = arith.constant dense<0.000000e+00> : vector<8x32xf32>
    %449 = tpu.matmul %448, %447, %cst_179 {dimension_numbers = #tpu.dot_dimension_numbers<[1], [0], [0], [1], [0, 0, 1, 1], [], []>} : vector<8x32xbf16>, vector<32x32xbf16>, vector<8x32xf32> -> vector<8x32xf32>
    %c1_180 = arith.constant 1 : index
    %c0_181 = arith.constant 0 : index
    %c0_182 = arith.constant 0 : index
    %450 = vector.load %arg9[%c1_180, %c0_181, %c0_182] : memref<2x1x32xf32, #tpu.memory_space<vmem>>, vector<1x1x32xf32>
    %451 = vector.shape_cast %450 : vector<1x1x32xf32> to vector<1x32xf32>
    %452 = vector.broadcast %451 : vector<1x32xf32> to vector<8x32xf32>
    %453 = arith.addf %449, %452 : vector<8x32xf32>
    %c1_183 = arith.constant 1 : index
    %c0_184 = arith.constant 0 : index
    %c0_185 = arith.constant 0 : index
    %454 = vector.load %arg10[%c1_183, %c0_184, %c0_185] : memref<2x32x64xbf16, #tpu.memory_space<vmem>>, vector<1x32x64xbf16>
    %455 = vector.shape_cast %454 : vector<1x32x64xbf16> to vector<32x64xbf16>
    %456 = arith.truncf %1 : vector<8x32xf32> to vector<8x32xbf16>
    %cst_186 = arith.constant dense<0.000000e+00> : vector<8x64xf32>
    %457 = tpu.matmul %456, %455, %cst_186 {dimension_numbers = #tpu.dot_dimension_numbers<[1], [0], [0], [1], [0, 0, 1, 1], [], []>} : vector<8x32xbf16>, vector<32x64xbf16>, vector<8x64xf32> -> vector<8x64xf32>
    %c1_187 = arith.constant 1 : index
    %c0_188 = arith.constant 0 : index
    %c0_189 = arith.constant 0 : index
    %458 = vector.load %arg11[%c1_187, %c0_188, %c0_189] : memref<2x1x64xf32, #tpu.memory_space<vmem>>, vector<1x1x64xf32>
    %459 = vector.shape_cast %458 : vector<1x1x64xf32> to vector<1x64xf32>
    %460 = vector.broadcast %459 : vector<1x64xf32> to vector<8x64xf32>
    %461 = arith.addf %457, %460 : vector<8x64xf32>
    %462 = vector.extract_strided_slice %461 {offsets = [0, 0], sizes = [8, 32], strides = [1, 1]} : vector<8x64xf32> to vector<8x32xf32>
    %463 = vector.extract_strided_slice %461 {offsets = [0, 32], sizes = [8, 32], strides = [1, 1]} : vector<8x64xf32> to vector<8x32xf32>
    %464 = vector.extract_strided_slice %453 {offsets = [0, 0], sizes = [8, 8], strides = [1, 1]} : vector<8x32xf32> to vector<8x8xf32>
    %465 = arith.truncf %464 : vector<8x8xf32> to vector<8x8xbf16>
    %466 = vector.extract_strided_slice %462 {offsets = [0, 0], sizes = [8, 8], strides = [1, 1]} : vector<8x32xf32> to vector<8x8xf32>
    %467 = arith.truncf %466 : vector<8x8xf32> to vector<8x8xbf16>
    %468 = vector.extract_strided_slice %463 {offsets = [0, 0], sizes = [8, 8], strides = [1, 1]} : vector<8x32xf32> to vector<8x8xf32>
    %469 = arith.truncf %468 : vector<8x8xf32> to vector<8x8xbf16>
    %cst_190 = arith.constant dense<0.000000e+00> : vector<8x8xf32>
    %470 = tpu.matmul %465, %467, %cst_190 {dimension_numbers = #tpu.dot_dimension_numbers<[1], [1], [0], [0], [0, 0, 1, 0], [], []>} : vector<8x8xbf16>, vector<8x8xbf16>, vector<8x8xf32> -> vector<8x8xf32>
    %cst_191 = arith.constant 0.353553385 : f32
    %471 = vector.broadcast %cst_191 : f32 to vector<8x8xf32>
    %472 = arith.mulf %470, %471 : vector<8x8xf32>
    %cst_192 = arith.constant dense<0xFF800000> : vector<8xf32>
    %473 = vector.multi_reduction <maximumf>, %472, %cst_192 [1] : vector<8x8xf32> to vector<8xf32>
    %474 = vector.shape_cast %473 : vector<8xf32> to vector<8x1xf32>
    %475 = vector.broadcast %474 : vector<8x1xf32> to vector<8x8xf32>
    %476 = arith.subf %472, %475 : vector<8x8xf32>
    %477 = math.exp %476 : vector<8x8xf32>
    %cst_193 = arith.constant dense<0.000000e+00> : vector<8xf32>
    %478 = vector.multi_reduction <add>, %477, %cst_193 [1] : vector<8x8xf32> to vector<8xf32>
    %479 = vector.shape_cast %478 : vector<8xf32> to vector<8x1xf32>
    %480 = vector.broadcast %479 : vector<8x1xf32> to vector<8x8xf32>
    %481 = arith.divf %477, %480 : vector<8x8xf32>
    %482 = arith.truncf %481 : vector<8x8xf32> to vector<8x8xbf16>
    %cst_194 = arith.constant dense<0.000000e+00> : vector<8x8xf32>
    %483 = tpu.matmul %482, %469, %cst_194 {dimension_numbers = #tpu.dot_dimension_numbers<[1], [0], [0], [1], [0, 0, 1, 1], [], []>} : vector<8x8xbf16>, vector<8x8xbf16>, vector<8x8xf32> -> vector<8x8xf32>
    %484 = vector.extract_strided_slice %453 {offsets = [0, 8], sizes = [8, 8], strides = [1, 1]} : vector<8x32xf32> to vector<8x8xf32>
    %485 = arith.truncf %484 : vector<8x8xf32> to vector<8x8xbf16>
    %486 = vector.extract_strided_slice %462 {offsets = [0, 8], sizes = [8, 8], strides = [1, 1]} : vector<8x32xf32> to vector<8x8xf32>
    %487 = arith.truncf %486 : vector<8x8xf32> to vector<8x8xbf16>
    %488 = vector.extract_strided_slice %463 {offsets = [0, 8], sizes = [8, 8], strides = [1, 1]} : vector<8x32xf32> to vector<8x8xf32>
    %489 = arith.truncf %488 : vector<8x8xf32> to vector<8x8xbf16>
    %cst_195 = arith.constant dense<0.000000e+00> : vector<8x8xf32>
    %490 = tpu.matmul %485, %487, %cst_195 {dimension_numbers = #tpu.dot_dimension_numbers<[1], [1], [0], [0], [0, 0, 1, 0], [], []>} : vector<8x8xbf16>, vector<8x8xbf16>, vector<8x8xf32> -> vector<8x8xf32>
    %cst_196 = arith.constant 0.353553385 : f32
    %491 = vector.broadcast %cst_196 : f32 to vector<8x8xf32>
    %492 = arith.mulf %490, %491 : vector<8x8xf32>
    %cst_197 = arith.constant dense<0xFF800000> : vector<8xf32>
    %493 = vector.multi_reduction <maximumf>, %492, %cst_197 [1] : vector<8x8xf32> to vector<8xf32>
    %494 = vector.shape_cast %493 : vector<8xf32> to vector<8x1xf32>
    %495 = vector.broadcast %494 : vector<8x1xf32> to vector<8x8xf32>
    %496 = arith.subf %492, %495 : vector<8x8xf32>
    %497 = math.exp %496 : vector<8x8xf32>
    %cst_198 = arith.constant dense<0.000000e+00> : vector<8xf32>
    %498 = vector.multi_reduction <add>, %497, %cst_198 [1] : vector<8x8xf32> to vector<8xf32>
    %499 = vector.shape_cast %498 : vector<8xf32> to vector<8x1xf32>
    %500 = vector.broadcast %499 : vector<8x1xf32> to vector<8x8xf32>
    %501 = arith.divf %497, %500 : vector<8x8xf32>
    %502 = arith.truncf %501 : vector<8x8xf32> to vector<8x8xbf16>
    %cst_199 = arith.constant dense<0.000000e+00> : vector<8x8xf32>
    %503 = tpu.matmul %502, %489, %cst_199 {dimension_numbers = #tpu.dot_dimension_numbers<[1], [0], [0], [1], [0, 0, 1, 1], [], []>} : vector<8x8xbf16>, vector<8x8xbf16>, vector<8x8xf32> -> vector<8x8xf32>
    %504 = vector.extract_strided_slice %453 {offsets = [0, 16], sizes = [8, 8], strides = [1, 1]} : vector<8x32xf32> to vector<8x8xf32>
    %505 = arith.truncf %504 : vector<8x8xf32> to vector<8x8xbf16>
    %506 = vector.extract_strided_slice %462 {offsets = [0, 16], sizes = [8, 8], strides = [1, 1]} : vector<8x32xf32> to vector<8x8xf32>
    %507 = arith.truncf %506 : vector<8x8xf32> to vector<8x8xbf16>
    %508 = vector.extract_strided_slice %463 {offsets = [0, 16], sizes = [8, 8], strides = [1, 1]} : vector<8x32xf32> to vector<8x8xf32>
    %509 = arith.truncf %508 : vector<8x8xf32> to vector<8x8xbf16>
    %cst_200 = arith.constant dense<0.000000e+00> : vector<8x8xf32>
    %510 = tpu.matmul %505, %507, %cst_200 {dimension_numbers = #tpu.dot_dimension_numbers<[1], [1], [0], [0], [0, 0, 1, 0], [], []>} : vector<8x8xbf16>, vector<8x8xbf16>, vector<8x8xf32> -> vector<8x8xf32>
    %cst_201 = arith.constant 0.353553385 : f32
    %511 = vector.broadcast %cst_201 : f32 to vector<8x8xf32>
    %512 = arith.mulf %510, %511 : vector<8x8xf32>
    %cst_202 = arith.constant dense<0xFF800000> : vector<8xf32>
    %513 = vector.multi_reduction <maximumf>, %512, %cst_202 [1] : vector<8x8xf32> to vector<8xf32>
    %514 = vector.shape_cast %513 : vector<8xf32> to vector<8x1xf32>
    %515 = vector.broadcast %514 : vector<8x1xf32> to vector<8x8xf32>
    %516 = arith.subf %512, %515 : vector<8x8xf32>
    %517 = math.exp %516 : vector<8x8xf32>
    %cst_203 = arith.constant dense<0.000000e+00> : vector<8xf32>
    %518 = vector.multi_reduction <add>, %517, %cst_203 [1] : vector<8x8xf32> to vector<8xf32>
    %519 = vector.shape_cast %518 : vector<8xf32> to vector<8x1xf32>
    %520 = vector.broadcast %519 : vector<8x1xf32> to vector<8x8xf32>
    %521 = arith.divf %517, %520 : vector<8x8xf32>
    %522 = arith.truncf %521 : vector<8x8xf32> to vector<8x8xbf16>
    %cst_204 = arith.constant dense<0.000000e+00> : vector<8x8xf32>
    %523 = tpu.matmul %522, %509, %cst_204 {dimension_numbers = #tpu.dot_dimension_numbers<[1], [0], [0], [1], [0, 0, 1, 1], [], []>} : vector<8x8xbf16>, vector<8x8xbf16>, vector<8x8xf32> -> vector<8x8xf32>
    %524 = vector.extract_strided_slice %453 {offsets = [0, 24], sizes = [8, 8], strides = [1, 1]} : vector<8x32xf32> to vector<8x8xf32>
    %525 = arith.truncf %524 : vector<8x8xf32> to vector<8x8xbf16>
    %526 = vector.extract_strided_slice %462 {offsets = [0, 24], sizes = [8, 8], strides = [1, 1]} : vector<8x32xf32> to vector<8x8xf32>
    %527 = arith.truncf %526 : vector<8x8xf32> to vector<8x8xbf16>
    %528 = vector.extract_strided_slice %463 {offsets = [0, 24], sizes = [8, 8], strides = [1, 1]} : vector<8x32xf32> to vector<8x8xf32>
    %529 = arith.truncf %528 : vector<8x8xf32> to vector<8x8xbf16>
    %cst_205 = arith.constant dense<0.000000e+00> : vector<8x8xf32>
    %530 = tpu.matmul %525, %527, %cst_205 {dimension_numbers = #tpu.dot_dimension_numbers<[1], [1], [0], [0], [0, 0, 1, 0], [], []>} : vector<8x8xbf16>, vector<8x8xbf16>, vector<8x8xf32> -> vector<8x8xf32>
    %cst_206 = arith.constant 0.353553385 : f32
    %531 = vector.broadcast %cst_206 : f32 to vector<8x8xf32>
    %532 = arith.mulf %530, %531 : vector<8x8xf32>
    %cst_207 = arith.constant dense<0xFF800000> : vector<8xf32>
    %533 = vector.multi_reduction <maximumf>, %532, %cst_207 [1] : vector<8x8xf32> to vector<8xf32>
    %534 = vector.shape_cast %533 : vector<8xf32> to vector<8x1xf32>
    %535 = vector.broadcast %534 : vector<8x1xf32> to vector<8x8xf32>
    %536 = arith.subf %532, %535 : vector<8x8xf32>
    %537 = math.exp %536 : vector<8x8xf32>
    %cst_208 = arith.constant dense<0.000000e+00> : vector<8xf32>
    %538 = vector.multi_reduction <add>, %537, %cst_208 [1] : vector<8x8xf32> to vector<8xf32>
    %539 = vector.shape_cast %538 : vector<8xf32> to vector<8x1xf32>
    %540 = vector.broadcast %539 : vector<8x1xf32> to vector<8x8xf32>
    %541 = arith.divf %537, %540 : vector<8x8xf32>
    %542 = arith.truncf %541 : vector<8x8xf32> to vector<8x8xbf16>
    %cst_209 = arith.constant dense<0.000000e+00> : vector<8x8xf32>
    %543 = tpu.matmul %542, %529, %cst_209 {dimension_numbers = #tpu.dot_dimension_numbers<[1], [0], [0], [1], [0, 0, 1, 1], [], []>} : vector<8x8xbf16>, vector<8x8xbf16>, vector<8x8xf32> -> vector<8x8xf32>
    %544 = tpu.concatenate %483, %503, %523, %543 in 1 : vector<8x8xf32>, vector<8x8xf32>, vector<8x8xf32>, vector<8x8xf32> -> vector<8x32xf32>
    %c1_210 = arith.constant 1 : index
    %c0_211 = arith.constant 0 : index
    %c0_212 = arith.constant 0 : index
    %545 = vector.load %arg12[%c1_210, %c0_211, %c0_212] : memref<2x32x32xbf16, #tpu.memory_space<vmem>>, vector<1x32x32xbf16>
    %546 = vector.shape_cast %545 : vector<1x32x32xbf16> to vector<32x32xbf16>
    %547 = arith.truncf %544 : vector<8x32xf32> to vector<8x32xbf16>
    %cst_213 = arith.constant dense<0.000000e+00> : vector<8x32xf32>
    %548 = tpu.matmul %547, %546, %cst_213 {dimension_numbers = #tpu.dot_dimension_numbers<[1], [0], [0], [1], [0, 0, 1, 1], [], []>} : vector<8x32xbf16>, vector<32x32xbf16>, vector<8x32xf32> -> vector<8x32xf32>
    %549 = arith.addf %445, %548 : vector<8x32xf32>
    %c1_214 = arith.constant 1 : index
    %c0_215 = arith.constant 0 : index
    %c0_216 = arith.constant 0 : index
    %550 = vector.load %arg13[%c1_214, %c0_215, %c0_216] : memref<2x1x32xf32, #tpu.memory_space<vmem>>, vector<1x1x32xf32>
    %551 = vector.shape_cast %550 : vector<1x1x32xf32> to vector<1x32xf32>
    %552 = vector.broadcast %551 : vector<1x32xf32> to vector<8x32xf32>
    %553 = arith.addf %549, %552 : vector<8x32xf32>
    %c1_217 = arith.constant 1 : index
    %c0_218 = arith.constant 0 : index
    %c0_219 = arith.constant 0 : index
    %554 = vector.load %arg14[%c1_217, %c0_218, %c0_219] : memref<2x1x32xf32, #tpu.memory_space<vmem>>, vector<1x1x32xf32>
    %555 = vector.shape_cast %554 : vector<1x1x32xf32> to vector<1x32xf32>
    %c1_220 = arith.constant 1 : index
    %c0_221 = arith.constant 0 : index
    %c0_222 = arith.constant 0 : index
    %556 = vector.load %arg15[%c1_220, %c0_221, %c0_222] : memref<2x1x32xf32, #tpu.memory_space<vmem>>, vector<1x1x32xf32>
    %557 = vector.shape_cast %556 : vector<1x1x32xf32> to vector<1x32xf32>
    %cst_223 = arith.constant dense<0.000000e+00> : vector<8xf32>
    %558 = vector.multi_reduction <add>, %553, %cst_223 [1] : vector<8x32xf32> to vector<8xf32>
    %559 = vector.shape_cast %558 : vector<8xf32> to vector<8x1xf32>
    %cst_224 = arith.constant 3.200000e+01 : f32
    %560 = vector.broadcast %cst_224 : f32 to vector<8x1xf32>
    %561 = arith.divf %559, %560 : vector<8x1xf32>
    %562 = vector.broadcast %561 : vector<8x1xf32> to vector<8x32xf32>
    %563 = arith.subf %553, %562 : vector<8x32xf32>
    %564 = arith.mulf %563, %563 : vector<8x32xf32>
    %cst_225 = arith.constant dense<0.000000e+00> : vector<8xf32>
    %565 = vector.multi_reduction <add>, %564, %cst_225 [1] : vector<8x32xf32> to vector<8xf32>
    %566 = vector.shape_cast %565 : vector<8xf32> to vector<8x1xf32>
    %cst_226 = arith.constant 3.200000e+01 : f32
    %567 = vector.broadcast %cst_226 : f32 to vector<8x1xf32>
    %568 = arith.divf %566, %567 : vector<8x1xf32>
    %cst_227 = arith.constant 9.99999974E-6 : f32
    %569 = vector.broadcast %cst_227 : f32 to vector<8x1xf32>
    %570 = arith.addf %568, %569 : vector<8x1xf32>
    %571 = math.rsqrt %570 : vector<8x1xf32>
    %572 = vector.broadcast %571 : vector<8x1xf32> to vector<8x32xf32>
    %573 = arith.mulf %563, %572 : vector<8x32xf32>
    %574 = vector.broadcast %555 : vector<1x32xf32> to vector<8x32xf32>
    %575 = arith.mulf %573, %574 : vector<8x32xf32>
    %576 = vector.broadcast %557 : vector<1x32xf32> to vector<8x32xf32>
    %577 = arith.addf %575, %576 : vector<8x32xf32>
    %c1_228 = arith.constant 1 : index
    %c0_229 = arith.constant 0 : index
    %c0_230 = arith.constant 0 : index
    %578 = vector.load %arg16[%c1_228, %c0_229, %c0_230] : memref<2x32x64xbf16, #tpu.memory_space<vmem>>, vector<1x32x64xbf16>
    %579 = vector.shape_cast %578 : vector<1x32x64xbf16> to vector<32x64xbf16>
    %580 = arith.truncf %577 : vector<8x32xf32> to vector<8x32xbf16>
    %cst_231 = arith.constant dense<0.000000e+00> : vector<8x64xf32>
    %581 = tpu.matmul %580, %579, %cst_231 {dimension_numbers = #tpu.dot_dimension_numbers<[1], [0], [0], [1], [0, 0, 1, 1], [], []>} : vector<8x32xbf16>, vector<32x64xbf16>, vector<8x64xf32> -> vector<8x64xf32>
    %c1_232 = arith.constant 1 : index
    %c0_233 = arith.constant 0 : index
    %c0_234 = arith.constant 0 : index
    %582 = vector.load %arg17[%c1_232, %c0_233, %c0_234] : memref<2x1x64xf32, #tpu.memory_space<vmem>>, vector<1x1x64xf32>
    %583 = vector.shape_cast %582 : vector<1x1x64xf32> to vector<1x64xf32>
    %584 = vector.broadcast %583 : vector<1x64xf32> to vector<8x64xf32>
    %585 = arith.addf %581, %584 : vector<8x64xf32>
    %cst_235 = arith.constant 0.000000e+00 : f32
    %586 = vector.broadcast %cst_235 : f32 to vector<8x64xf32>
    %587 = arith.maximumf %585, %586 : vector<8x64xf32>
    %c1_236 = arith.constant 1 : index
    %c0_237 = arith.constant 0 : index
    %c0_238 = arith.constant 0 : index
    %588 = vector.load %arg18[%c1_236, %c0_237, %c0_238] : memref<2x64x32xbf16, #tpu.memory_space<vmem>>, vector<1x64x32xbf16>
    %589 = vector.shape_cast %588 : vector<1x64x32xbf16> to vector<64x32xbf16>
    %590 = arith.truncf %587 : vector<8x64xf32> to vector<8x64xbf16>
    %cst_239 = arith.constant dense<0.000000e+00> : vector<8x32xf32>
    %591 = tpu.matmul %590, %589, %cst_239 {dimension_numbers = #tpu.dot_dimension_numbers<[1], [0], [0], [1], [0, 0, 1, 1], [], []>} : vector<8x64xbf16>, vector<64x32xbf16>, vector<8x32xf32> -> vector<8x32xf32>
    %592 = arith.addf %577, %591 : vector<8x32xf32>
    %c1_240 = arith.constant 1 : index
    %c0_241 = arith.constant 0 : index
    %c0_242 = arith.constant 0 : index
    %593 = vector.load %arg19[%c1_240, %c0_241, %c0_242] : memref<2x1x32xf32, #tpu.memory_space<vmem>>, vector<1x1x32xf32>
    %594 = vector.shape_cast %593 : vector<1x1x32xf32> to vector<1x32xf32>
    %595 = vector.broadcast %594 : vector<1x32xf32> to vector<8x32xf32>
    %596 = arith.addf %592, %595 : vector<8x32xf32>
    %c1_243 = arith.constant 1 : index
    %c0_244 = arith.constant 0 : index
    %c0_245 = arith.constant 0 : index
    %597 = vector.load %arg20[%c1_243, %c0_244, %c0_245] : memref<2x1x32xf32, #tpu.memory_space<vmem>>, vector<1x1x32xf32>
    %598 = vector.shape_cast %597 : vector<1x1x32xf32> to vector<1x32xf32>
    %c1_246 = arith.constant 1 : index
    %c0_247 = arith.constant 0 : index
    %c0_248 = arith.constant 0 : index
    %599 = vector.load %arg21[%c1_246, %c0_247, %c0_248] : memref<2x1x32xf32, #tpu.memory_space<vmem>>, vector<1x1x32xf32>
    %600 = vector.shape_cast %599 : vector<1x1x32xf32> to vector<1x32xf32>
    %cst_249 = arith.constant dense<0.000000e+00> : vector<8xf32>
    %601 = vector.multi_reduction <add>, %596, %cst_249 [1] : vector<8x32xf32> to vector<8xf32>
    %602 = vector.shape_cast %601 : vector<8xf32> to vector<8x1xf32>
    %cst_250 = arith.constant 3.200000e+01 : f32
    %603 = vector.broadcast %cst_250 : f32 to vector<8x1xf32>
    %604 = arith.divf %602, %603 : vector<8x1xf32>
    %605 = vector.broadcast %604 : vector<8x1xf32> to vector<8x32xf32>
    %606 = arith.subf %596, %605 : vector<8x32xf32>
    %607 = arith.mulf %606, %606 : vector<8x32xf32>
    %cst_251 = arith.constant dense<0.000000e+00> : vector<8xf32>
    %608 = vector.multi_reduction <add>, %607, %cst_251 [1] : vector<8x32xf32> to vector<8xf32>
    %609 = vector.shape_cast %608 : vector<8xf32> to vector<8x1xf32>
    %cst_252 = arith.constant 3.200000e+01 : f32
    %610 = vector.broadcast %cst_252 : f32 to vector<8x1xf32>
    %611 = arith.divf %609, %610 : vector<8x1xf32>
    %cst_253 = arith.constant 9.99999974E-6 : f32
    %612 = vector.broadcast %cst_253 : f32 to vector<8x1xf32>
    %613 = arith.addf %611, %612 : vector<8x1xf32>
    %614 = math.rsqrt %613 : vector<8x1xf32>
    %615 = vector.broadcast %614 : vector<8x1xf32> to vector<8x32xf32>
    %616 = arith.mulf %606, %615 : vector<8x32xf32>
    %617 = vector.broadcast %598 : vector<1x32xf32> to vector<8x32xf32>
    %618 = arith.mulf %616, %617 : vector<8x32xf32>
    %619 = vector.broadcast %600 : vector<1x32xf32> to vector<8x32xf32>
    %620 = arith.addf %618, %619 : vector<8x32xf32>
    %c0_254 = arith.constant 0 : index
    %c0_255 = arith.constant 0 : index
    %621 = vector.load %arg22[%c0_254, %c0_255] : memref<32x50xbf16, #tpu.memory_space<vmem>>, vector<32x50xbf16>
    %622 = arith.truncf %620 : vector<8x32xf32> to vector<8x32xbf16>
    %cst_256 = arith.constant dense<0.000000e+00> : vector<8x50xf32>
    %623 = tpu.matmul %622, %621, %cst_256 {dimension_numbers = #tpu.dot_dimension_numbers<[1], [0], [0], [1], [0, 0, 1, 1], [], []>} : vector<8x32xbf16>, vector<32x50xbf16>, vector<8x50xf32> -> vector<8x50xf32>
    %c0_257 = arith.constant 0 : index
    %c0_258 = arith.constant 0 : index
    %624 = vector.load %arg23[%c0_257, %c0_258] : memref<1x50xf32, #tpu.memory_space<vmem>>, vector<1x50xf32>
    %625 = vector.broadcast %624 : vector<1x50xf32> to vector<8x50xf32>
    %626 = arith.addf %623, %625 : vector<8x50xf32>
    %c0_259 = arith.constant 0 : index
    %c0_260 = arith.constant 0 : index
    %c0_261 = arith.constant 0 : index
    %627 = vector.load %arg24[%c0_259, %c0_260, %c0_261] : memref<1x8x50xf32, #tpu.memory_space<vmem>>, vector<1x8x50xf32>
    %628 = vector.shape_cast %627 : vector<1x8x50xf32> to vector<8x50xf32>
    %629 = vector.shape_cast %626 : vector<8x50xf32> to vector<1x8x50xf32>
    tpu.vector_store %arg24[%c0_259, %c0_260, %c0_261], %629 {strides = array<i32>} : memref<1x8x50xf32, #tpu.memory_space<vmem>>, vector<1x8x50xf32>,
    return
  }
  func.func @transform_0(%arg0: i32) -> (i32, i32, i32) {
    %c0_i32 = arith.constant 0 : i32
    %c0_i32_0 = arith.constant 0 : i32
    %c0_i32_1 = arith.constant 0 : i32
    return %arg0, %c0_i32, %c0_i32_0 : i32, i32, i32
  }
  func.func @transform_1(%arg0: i32) -> (i32, i32, i32) {
    %c0_i32 = arith.constant 0 : i32
    %c0_i32_0 = arith.constant 0 : i32
    %c0_i32_1 = arith.constant 0 : i32
    %c0_i32_2 = arith.constant 0 : i32
    return %c0_i32, %c0_i32_0, %c0_i32_1 : i32, i32, i32
  }
  func.func @transform_2(%arg0: i32) -> (i32, i32, i32) {
    %c0_i32 = arith.constant 0 : i32
    %c0_i32_0 = arith.constant 0 : i32
    %c0_i32_1 = arith.constant 0 : i32
    %c0_i32_2 = arith.constant 0 : i32
    return %c0_i32, %c0_i32_0, %c0_i32_1 : i32, i32, i32
  }
  func.func @transform_3(%arg0: i32) -> (i32, i32, i32) {
    %c0_i32 = arith.constant 0 : i32
    %c0_i32_0 = arith.constant 0 : i32
    %c0_i32_1 = arith.constant 0 : i32
    %c0_i32_2 = arith.constant 0 : i32
    return %c0_i32, %c0_i32_0, %c0_i32_1 : i32, i32, i32
  }
  func.func @transform_4(%arg0: i32) -> (i32, i32, i32) {
    %c0_i32 = arith.constant 0 : i32
    %c0_i32_0 = arith.constant 0 : i32
    %c0_i32_1 = arith.constant 0 : i32
    %c0_i32_2 = arith.constant 0 : i32
    return %c0_i32, %c0_i32_0, %c0_i32_1 : i32, i32, i32
  }
  func.func @transform_5(%arg0: i32) -> (i32, i32, i32) {
    %c0_i32 = arith.constant 0 : i32
    %c0_i32_0 = arith.constant 0 : i32
    %c0_i32_1 = arith.constant 0 : i32
    %c0_i32_2 = arith.constant 0 : i32
    return %c0_i32, %c0_i32_0, %c0_i32_1 : i32, i32, i32
  }
  func.func @transform_6(%arg0: i32) -> (i32, i32, i32) {
    %c0_i32 = arith.constant 0 : i32
    %c0_i32_0 = arith.constant 0 : i32
    %c0_i32_1 = arith.constant 0 : i32
    %c0_i32_2 = arith.constant 0 : i32
    return %c0_i32, %c0_i32_0, %c0_i32_1 : i32, i32, i32
  }
  func.func @transform_7(%arg0: i32) -> (i32, i32, i32) {
    %c0_i32 = arith.constant 0 : i32
    %c0_i32_0 = arith.constant 0 : i32
    %c0_i32_1 = arith.constant 0 : i32
    %c0_i32_2 = arith.constant 0 : i32
    return %c0_i32, %c0_i32_0, %c0_i32_1 : i32, i32, i32
  }
  func.func @transform_8(%arg0: i32) -> (i32, i32, i32) {
    %c0_i32 = arith.constant 0 : i32
    %c0_i32_0 = arith.constant 0 : i32
    %c0_i32_1 = arith.constant 0 : i32
    %c0_i32_2 = arith.constant 0 : i32
    return %c0_i32, %c0_i32_0, %c0_i32_1 : i32, i32, i32
  }
  func.func @transform_9(%arg0: i32) -> (i32, i32, i32) {
    %c0_i32 = arith.constant 0 : i32
    %c0_i32_0 = arith.constant 0 : i32
    %c0_i32_1 = arith.constant 0 : i32
    %c0_i32_2 = arith.constant 0 : i32
    return %c0_i32, %c0_i32_0, %c0_i32_1 : i32, i32, i32
  }
  func.func @transform_10(%arg0: i32) -> (i32, i32, i32) {
    %c0_i32 = arith.constant 0 : i32
    %c0_i32_0 = arith.constant 0 : i32
    %c0_i32_1 = arith.constant 0 : i32
    %c0_i32_2 = arith.constant 0 : i32
    return %c0_i32, %c0_i32_0, %c0_i32_1 : i32, i32, i32
  }
  func.func @transform_11(%arg0: i32) -> (i32, i32, i32) {
    %c0_i32 = arith.constant 0 : i32
    %c0_i32_0 = arith.constant 0 : i32
    %c0_i32_1 = arith.constant 0 : i32
    %c0_i32_2 = arith.constant 0 : i32
    return %c0_i32, %c0_i32_0, %c0_i32_1 : i32, i32, i32
  }
  func.func @transform_12(%arg0: i32) -> (i32, i32, i32) {
    %c0_i32 = arith.constant 0 : i32
    %c0_i32_0 = arith.constant 0 : i32
    %c0_i32_1 = arith.constant 0 : i32
    %c0_i32_2 = arith.constant 0 : i32
    return %c0_i32, %c0_i32_0, %c0_i32_1 : i32, i32, i32
  }
  func.func @transform_13(%arg0: i32) -> (i32, i32, i32) {
    %c0_i32 = arith.constant 0 : i32
    %c0_i32_0 = arith.constant 0 : i32
    %c0_i32_1 = arith.constant 0 : i32
    %c0_i32_2 = arith.constant 0 : i32
    return %c0_i32, %c0_i32_0, %c0_i32_1 : i32, i32, i32
  }
  func.func @transform_14(%arg0: i32) -> (i32, i32, i32) {
    %c0_i32 = arith.constant 0 : i32
    %c0_i32_0 = arith.constant 0 : i32
    %c0_i32_1 = arith.constant 0 : i32
    %c0_i32_2 = arith.constant 0 : i32
    return %c0_i32, %c0_i32_0, %c0_i32_1 : i32, i32, i32
  }
  func.func @transform_15(%arg0: i32) -> (i32, i32, i32) {
    %c0_i32 = arith.constant 0 : i32
    %c0_i32_0 = arith.constant 0 : i32
    %c0_i32_1 = arith.constant 0 : i32
    %c0_i32_2 = arith.constant 0 : i32
    return %c0_i32, %c0_i32_0, %c0_i32_1 : i32, i32, i32
  }
  func.func @transform_16(%arg0: i32) -> (i32, i32, i32) {
    %c0_i32 = arith.constant 0 : i32
    %c0_i32_0 = arith.constant 0 : i32
    %c0_i32_1 = arith.constant 0 : i32
    %c0_i32_2 = arith.constant 0 : i32
    return %c0_i32, %c0_i32_0, %c0_i32_1 : i32, i32, i32
  }
  func.func @transform_17(%arg0: i32) -> (i32, i32, i32) {
    %c0_i32 = arith.constant 0 : i32
    %c0_i32_0 = arith.constant 0 : i32
    %c0_i32_1 = arith.constant 0 : i32
    %c0_i32_2 = arith.constant 0 : i32
    return %c0_i32, %c0_i32_0, %c0_i32_1 : i32, i32, i32
  }
  func.func @transform_18(%arg0: i32) -> (i32, i32, i32) {
    %c0_i32 = arith.constant 0 : i32
    %c0_i32_0 = arith.constant 0 : i32
    %c0_i32_1 = arith.constant 0 : i32
    %c0_i32_2 = arith.constant 0 : i32
    return %c0_i32, %c0_i32_0, %c0_i32_1 : i32, i32, i32
  }
  func.func @transform_19(%arg0: i32) -> (i32, i32, i32) {
    %c0_i32 = arith.constant 0 : i32
    %c0_i32_0 = arith.constant 0 : i32
    %c0_i32_1 = arith.constant 0 : i32
    %c0_i32_2 = arith.constant 0 : i32
    return %c0_i32, %c0_i32_0, %c0_i32_1 : i32, i32, i32
  }
  func.func @transform_20(%arg0: i32) -> (i32, i32, i32) {
    %c0_i32 = arith.constant 0 : i32
    %c0_i32_0 = arith.constant 0 : i32
    %c0_i32_1 = arith.constant 0 : i32
    %c0_i32_2 = arith.constant 0 : i32
    return %c0_i32, %c0_i32_0, %c0_i32_1 : i32, i32, i32
  }
  func.func @transform_21(%arg0: i32) -> (i32, i32) {
    %c0_i32 = arith.constant 0 : i32
    %c0_i32_0 = arith.constant 0 : i32
    %c0_i32_1 = arith.constant 0 : i32
    return %c0_i32, %c0_i32_0 : i32, i32
  }
  func.func @transform_22(%arg0: i32) -> (i32, i32) {
    %c0_i32 = arith.constant 0 : i32
    %c0_i32_0 = arith.constant 0 : i32
    %c0_i32_1 = arith.constant 0 : i32
    return %c0_i32, %c0_i32_0 : i32, i32
  }
  func.func @transform_23(%arg0: i32) -> (i32, i32, i32) {
    %c0_i32 = arith.constant 0 : i32
    %c0_i32_0 = arith.constant 0 : i32
    %c0_i32_1 = arith.constant 0 : i32
    return %arg0, %c0_i32, %c0_i32_0 : i32, i32, i32
  }
}

</mosaic_0001>

<llo_original>
// kernel: pallas_forward.1
$region0: #{pallas_forward.1}
  #allocation0 [shape = 'u32[]', space=smem, size = 0x4, offset = 0x4, fixed_abs, tag = 'smem constant byte address 0x4 - core index']
  #allocation1 [shape = 'u32[144,128]{1,0:T(1,128)}', space=vmem, size = 0x12000, scoped, tag = 'internal scratch']
  %s0 = inlined_call_operand.vmem [shape: f32[2,8,32], index: 0, kind: input, shape index: {}]
  %s1 = inlined_call_operand.vmem [shape: bf16[2,32,96], index: 1, kind: input, shape index: {}]
  %s2 = inlined_call_operand.vmem [shape: f32[2,1,96], index: 2, kind: input, shape index: {}]
  %s3 = inlined_call_operand.vmem [shape: bf16[2,32,32], index: 3, kind: input, shape index: {}]
  %s4 = inlined_call_operand.vmem [shape: f32[2,1,32], index: 4, kind: input, shape index: {}]
  %s5 = inlined_call_operand.vmem [shape: f32[2,1,32], index: 5, kind: input, shape index: {}]
  %s6 = inlined_call_operand.vmem [shape: f32[2,1,32], index: 6, kind: input, shape index: {}]
  %s7 = inlined_call_operand.vmem [shape: bf16[2,32,32], index: 7, kind: input, shape index: {}]
  %s8 = inlined_call_operand.vmem [shape: f32[2,1,32], index: 8, kind: input, shape index: {}]
  %s9 = inlined_call_operand.vmem [shape: bf16[2,32,64], index: 9, kind: input, shape index: {}]
  %s10 = inlined_call_operand.vmem [shape: f32[2,1,64], index: 10, kind: input, shape index: {}]
  %s11 = inlined_call_operand.vmem [shape: bf16[2,32,32], index: 11, kind: input, shape index: {}]
  %s12 = inlined_call_operand.vmem [shape: f32[2,1,32], index: 12, kind: input, shape index: {}]
  %s13 = inlined_call_operand.vmem [shape: f32[2,1,32], index: 13, kind: input, shape index: {}]
  %s14 = inlined_call_operand.vmem [shape: f32[2,1,32], index: 14, kind: input, shape index: {}]
  %s15 = inlined_call_operand.vmem [shape: bf16[2,32,64], index: 15, kind: input, shape index: {}]
  %s16 = inlined_call_operand.vmem [shape: f32[2,1,64], index: 16, kind: input, shape index: {}]
  %s17 = inlined_call_operand.vmem [shape: bf16[2,64,32], index: 17, kind: input, shape index: {}]
  %s18 = inlined_call_operand.vmem [shape: f32[2,1,32], index: 18, kind: input, shape index: {}]
  %s19 = inlined_call_operand.vmem [shape: f32[2,1,32], index: 19, kind: input, shape index: {}]
  %s20 = inlined_call_operand.vmem [shape: f32[2,1,32], index: 20, kind: input, shape index: {}]
  %s21 = inlined_call_operand.vmem [shape: bf16[32,50], index: 21, kind: input, shape index: {}]
  %s22 = inlined_call_operand.vmem [shape: f32[1,50], index: 22, kind: input, shape index: {}]
  %s23 = inlined_call_operand.vmem [shape: f32[2,8,50], index: 23, kind: output, shape index: {}]
  %s24 = sld [smem:[#allocation0]]
  $region125: #{pallas_forward.1} parent=0
    _
  %s26 = ssub.s32 1, %s24
  %s27 = scalar_select 0, %s26, %s24
  loop: start=0, step=1, limit=4
  $region2: #{pallas_forward.1} parent=0 // loop_pre_header
    _
  $region3: #{pallas_forward.1} parent=0 // loop_header
    %s29 = sphi 0, %s33
    %p30 = scmp.ge.s32.totalorder %s29, 4
    %s39 = sphi 0, %s41
    %s42 = sphi 0, %s39
    %s43 = sphi 0, %s42
    %s59 = sphi 0, %s43
    %s63 = sphi 0, %s63
    %s65 = sphi 0, %s63
    %s66 = sphi 0, %s65
    %s80 = sphi 0, %s66
    %s84 = sphi 0, %s84
    %s86 = sphi 0, %s84
    %s87 = sphi 0, %s86
    %s101 = sphi 0, %s87
    %s105 = sphi 0, %s105
    %s107 = sphi 0, %s105
    %s108 = sphi 0, %s107
    %s122 = sphi 0, %s108
    %s126 = sphi 0, %s126
    %s128 = sphi 0, %s126
    %s129 = sphi 0, %s128
    %s143 = sphi 0, %s129
    %s147 = sphi 0, %s147
    %s149 = sphi 0, %s147
    %s150 = sphi 0, %s149
    %s164 = sphi 0, %s150
    %s168 = sphi 0, %s168
    %s170 = sphi 0, %s168
    %s171 = sphi 0, %s170
    %s185 = sphi 0, %s171
    %s189 = sphi 0, %s189
    %s191 = sphi 0, %s189
    %s192 = sphi 0, %s191
    %s206 = sphi 0, %s192
    %s210 = sphi 0, %s210
    %s212 = sphi 0, %s210
    %s213 = sphi 0, %s212
    %s227 = sphi 0, %s213
    %s231 = sphi 0, %s231
    %s233 = sphi 0, %s231
    %s234 = sphi 0, %s233
    %s248 = sphi 0, %s234
    %s252 = sphi 0, %s252
    %s254 = sphi 0, %s252
    %s255 = sphi 0, %s254
    %s269 = sphi 0, %s255
    %s273 = sphi 0, %s273
    %s275 = sphi 0, %s273
    %s276 = sphi 0, %s275
    %s290 = sphi 0, %s276
    %s294 = sphi 0, %s294
    %s296 = sphi 0, %s294
    %s297 = sphi 0, %s296
    %s311 = sphi 0, %s297
    %s315 = sphi 0, %s315
    %s317 = sphi 0, %s315
    %s318 = sphi 0, %s317
    %s332 = sphi 0, %s318
    %s336 = sphi 0, %s336
    %s338 = sphi 0, %s336
    %s339 = sphi 0, %s338
    %s353 = sphi 0, %s339
    %s357 = sphi 0, %s357
    %s359 = sphi 0, %s357
    %s360 = sphi 0, %s359
    %s374 = sphi 0, %s360
    %s378 = sphi 0, %s378
    %s380 = sphi 0, %s378
    %s381 = sphi 0, %s380
    %s395 = sphi 0, %s381
    %s399 = sphi 0, %s399
    %s401 = sphi 0, %s399
    %s402 = sphi 0, %s401
    %s416 = sphi 0, %s402
    %s420 = sphi 0, %s420
    %s422 = sphi 0, %s420
    %s423 = sphi 0, %s422
    %s437 = sphi 0, %s423
    %s441 = sphi 0, %s441
    %s443 = sphi 0, %s441
    %s444 = sphi 0, %s443
    %s458 = sphi 0, %s444
    %s462 = sphi 0, %s462
    %s464 = sphi 0, %s462
    %s465 = sphi 0, %s464
    %s479 = sphi 0, %s465
    %s483 = sphi 0, %s483
    %s485 = sphi 0, %s483
    %s486 = sphi 0, %s485
    %s500 = sphi 0, %s486
    %s504 = sphi 0, %s504
    %s506 = sphi 0, %s504
    %s507 = sphi 0, %s506
    %s521 = sphi 0, %s507
    %s527 = sphi 0, %s529
    %s530 = sphi 0, %s527
    %s531 = sphi 0, %s530
    %s547 = sphi 0, %s531
  $region4: #{pallas_forward.1} parent=0 // loop_header_branch
    %32 = sbr.rel (%p30) target = $region8
  $region5: #{pallas_forward.1} parent=0 // loop_body
    %s34 = ssub.s32 %s29, 1
    %s35 = ssub.s32 %s29, 2
    %s36 = sadd.s32 %s29, 1
    %s37 = ssub.s32 %s29, %s36
    %p38 = scmp.eq.s32.totalorder %s37, 0
    %s40 = sadd.s32 %s39, 1
    %s41 = scalar_select %p38, %s39, %s40
    %p44 = pneg %p38
    %p45 = scmp.eq.s32.totalorder %s29, 1
    %p46 = por %p44, %p45
    %p47 = scmp.ne.s32.totalorder %s39, %s42
    %p48 = scmp.eq.s32.totalorder %s29, 0
    %p49 = por %p47, %p48
    %p50 = scmp.ne.s32.totalorder %s39, %s42
    %p51 = scmp.eq.s32.totalorder %s34, 1
    %p52 = por %p50, %p51
    %p53 = scmp.ne.s32.totalorder %s42, %s43
    %p54 = scmp.eq.s32.totalorder %s34, 0
    %p55 = por %p53, %p54
    %p56 = scmp.ne.s32.totalorder %s42, %s43
    %p57 = scmp.eq.s32.totalorder %s35, 1
    %p58 = por %p56, %p57
    %p60 = scmp.ne.s32.totalorder %s43, %s59
    %p61 = scmp.eq.s32.totalorder %s35, 0
    %p62 = por %p60, %p61
    %s64 = sadd.s32 %s63, 1
    %p67 = scmp.eq.s32.totalorder %s29, 1
    %p68 = scmp.ne.s32.totalorder %s63, %s65
    %p69 = scmp.eq.s32.totalorder %s29, 0
    %p70 = por %p68, %p69
    %p71 = scmp.ne.s32.totalorder %s63, %s65
    %p72 = scmp.eq.s32.totalorder %s34, 1
    %p73 = por %p71, %p72
    %p74 = scmp.ne.s32.totalorder %s65, %s66
    %p75 = scmp.eq.s32.totalorder %s34, 0
    %p76 = por %p74, %p75
    %p77 = scmp.ne.s32.totalorder %s65, %s66
    %p78 = scmp.eq.s32.totalorder %s35, 1
    %p79 = por %p77, %p78
    %p81 = scmp.ne.s32.totalorder %s66, %s80
    %p82 = scmp.eq.s32.totalorder %s35, 0
    %p83 = por %p81, %p82
    %s85 = sadd.s32 %s84, 1
    %p88 = scmp.eq.s32.totalorder %s29, 1
    %p89 = scmp.ne.s32.totalorder %s84, %s86
    %p90 = scmp.eq.s32.totalorder %s29, 0
    %p91 = por %p89, %p90
    %p92 = scmp.ne.s32.totalorder %s84, %s86
    %p93 = scmp.eq.s32.totalorder %s34, 1
    %p94 = por %p92, %p93
    %p95 = scmp.ne.s32.totalorder %s86, %s87
    %p96 = scmp.eq.s32.totalorder %s34, 0
    %p97 = por %p95, %p96
    %p98 = scmp.ne.s32.totalorder %s86, %s87
    %p99 = scmp.eq.s32.totalorder %s35, 1
    %p100 = por %p98, %p99
    %p102 = scmp.ne.s32.totalorder %s87, %s101
    %p103 = scmp.eq.s32.totalorder %s35, 0
    %p104 = por %p102, %p103
    %s106 = sadd.s32 %s105, 1
    %p109 = scmp.eq.s32.totalorder %s29, 1
    %p110 = scmp.ne.s32.totalorder %s105, %s107
    %p111 = scmp.eq.s32.totalorder %s29, 0
    %p112 = por %p110, %p111
    %p113 = scmp.ne.s32.totalorder %s105, %s107
    %p114 = scmp.eq.s32.totalorder %s34, 1
    %p115 = por %p113, %p114
    %p116 = scmp.ne.s32.totalorder %s107, %s108
    %p117 = scmp.eq.s32.totalorder %s34, 0
    %p118 = por %p116, %p117
    %p119 = scmp.ne.s32.totalorder %s107, %s108
    %p120 = scmp.eq.s32.totalorder %s35, 1
    %p121 = por %p119, %p120
    %p123 = scmp.ne.s32.totalorder %s108, %s122
    %p124 = scmp.eq.s32.totalorder %s35, 0
    %p125 = por %p123, %p124
    %s127 = sadd.s32 %s126, 1
    %p130 = scmp.eq.s32.totalorder %s29, 1
    %p131 = scmp.ne.s32.totalorder %s126, %s128
    %p132 = scmp.eq.s32.totalorder %s29, 0
    %p133 = por %p131, %p132
    %p134 = scmp.ne.s32.totalorder %s126, %s128
    %p135 = scmp.eq.s32.totalorder %s34, 1
    %p136 = por %p134, %p135
    %p137 = scmp.ne.s32.totalorder %s128, %s129
    %p138 = scmp.eq.s32.totalorder %s34, 0
    %p139 = por %p137, %p138
    %p140 = scmp.ne.s32.totalorder %s128, %s129
    %p141 = scmp.eq.s32.totalorder %s35, 1
    %p142 = por %p140, %p141
    %p144 = scmp.ne.s32.totalorder %s129, %s143
    %p145 = scmp.eq.s32.totalorder %s35, 0
    %p146 = por %p144, %p145
    %s148 = sadd.s32 %s147, 1
    %p151 = scmp.eq.s32.totalorder %s29, 1
    %p152 = scmp.ne.s32.totalorder %s147, %s149
    %p153 = scmp.eq.s32.totalorder %s29, 0
    %p154 = por %p152, %p153
    %p155 = scmp.ne.s32.totalorder %s147, %s149
    %p156 = scmp.eq.s32.totalorder %s34, 1
    %p157 = por %p155, %p156
    %p158 = scmp.ne.s32.totalorder %s149, %s150
    %p159 = scmp.eq.s32.totalorder %s34, 0
    %p160 = por %p158, %p159
    %p161 = scmp.ne.s32.totalorder %s149, %s150
    %p162 = scmp.eq.s32.totalorder %s35, 1
    %p163 = por %p161, %p162
    %p165 = scmp.ne.s32.totalorder %s150, %s164
    %p166 = scmp.eq.s32.totalorder %s35, 0
    %p167 = por %p165, %p166
    %s169 = sadd.s32 %s168, 1
    %p172 = scmp.eq.s32.totalorder %s29, 1
    %p173 = scmp.ne.s32.totalorder %s168, %s170
    %p174 = scmp.eq.s32.totalorder %s29, 0
    %p175 = por %p173, %p174
    %p176 = scmp.ne.s32.totalorder %s168, %s170
    %p177 = scmp.eq.s32.totalorder %s34, 1
    %p178 = por %p176, %p177
    %p179 = scmp.ne.s32.totalorder %s170, %s171
    %p180 = scmp.eq.s32.totalorder %s34, 0
    %p181 = por %p179, %p180
    %p182 = scmp.ne.s32.totalorder %s170, %s171
    %p183 = scmp.eq.s32.totalorder %s35, 1
    %p184 = por %p182, %p183
    %p186 = scmp.ne.s32.totalorder %s171, %s185
    %p187 = scmp.eq.s32.totalorder %s35, 0
    %p188 = por %p186, %p187
    %s190 = sadd.s32 %s189, 1
    %p193 = scmp.eq.s32.totalorder %s29, 1
    %p194 = scmp.ne.s32.totalorder %s189, %s191
    %p195 = scmp.eq.s32.totalorder %s29, 0
    %p196 = por %p194, %p195
    %p197 = scmp.ne.s32.totalorder %s189, %s191
    %p198 = scmp.eq.s32.totalorder %s34, 1
    %p199 = por %p197, %p198
    %p200 = scmp.ne.s32.totalorder %s191, %s192
    %p201 = scmp.eq.s32.totalorder %s34, 0
    %p202 = por %p200, %p201
    %p203 = scmp.ne.s32.totalorder %s191, %s192
    %p204 = scmp.eq.s32.totalorder %s35, 1
    %p205 = por %p203, %p204
    %p207 = scmp.ne.s32.totalorder %s192, %s206
    %p208 = scmp.eq.s32.totalorder %s35, 0
    %p209 = por %p207, %p208
    %s211 = sadd.s32 %s210, 1
    %p214 = scmp.eq.s32.totalorder %s29, 1
    %p215 = scmp.ne.s32.totalorder %s210, %s212
    %p216 = scmp.eq.s32.totalorder %s29, 0
    %p217 = por %p215, %p216
    %p218 = scmp.ne.s32.totalorder %s210, %s212
    %p219 = scmp.eq.s32.totalorder %s34, 1
    %p220 = por %p218, %p219
    %p221 = scmp.ne.s32.totalorder %s212, %s213
    %p222 = scmp.eq.s32.totalorder %s34, 0
    %p223 = por %p221, %p222
    %p224 = scmp.ne.s32.totalorder %s212, %s213
    %p225 = scmp.eq.s32.totalorder %s35, 1
    %p226 = por %p224, %p225
    %p228 = scmp.ne.s32.totalorder %s213, %s227
    %p229 = scmp.eq.s32.totalorder %s35, 0
    %p230 = por %p228, %p229
    %s232 = sadd.s32 %s231, 1
    %p235 = scmp.eq.s32.totalorder %s29, 1
    %p236 = scmp.ne.s32.totalorder %s231, %s233
    %p237 = scmp.eq.s32.totalorder %s29, 0
    %p238 = por %p236, %p237
    %p239 = scmp.ne.s32.totalorder %s231, %s233
    %p240 = scmp.eq.s32.totalorder %s34, 1
    %p241 = por %p239, %p240
    %p242 = scmp.ne.s32.totalorder %s233, %s234
    %p243 = scmp.eq.s32.totalorder %s34, 0
    %p244 = por %p242, %p243
    %p245 = scmp.ne.s32.totalorder %s233, %s234
    %p246 = scmp.eq.s32.totalorder %s35, 1
    %p247 = por %p245, %p246
    %p249 = scmp.ne.s32.totalorder %s234, %s248
    %p250 = scmp.eq.s32.totalorder %s35, 0
    %p251 = por %p249, %p250
    %s253 = sadd.s32 %s252, 1
    %p256 = scmp.eq.s32.totalorder %s29, 1
    %p257 = scmp.ne.s32.totalorder %s252, %s254
    %p258 = scmp.eq.s32.totalorder %s29, 0
    %p259 = por %p257, %p258
    %p260 = scmp.ne.s32.totalorder %s252, %s254
    %p261 = scmp.eq.s32.totalorder %s34, 1
    %p262 = por %p260, %p261
    %p263 = scmp.ne.s32.totalorder %s254, %s255
    %p264 = scmp.eq.s32.totalorder %s34, 0
    %p265 = por %p263, %p264
    %p266 = scmp.ne.s32.totalorder %s254, %s255
    %p267 = scmp.eq.s32.totalorder %s35, 1
    %p268 = por %p266, %p267
    %p270 = scmp.ne.s32.totalorder %s255, %s269
    %p271 = scmp.eq.s32.totalorder %s35, 0
    %p272 = por %p270, %p271
    %s274 = sadd.s32 %s273, 1
    %p277 = scmp.eq.s32.totalorder %s29, 1
    %p278 = scmp.ne.s32.totalorder %s273, %s275
    %p279 = scmp.eq.s32.totalorder %s29, 0
    %p280 = por %p278, %p279
    %p281 = scmp.ne.s32.totalorder %s273, %s275
    %p282 = scmp.eq.s32.totalorder %s34, 1
    %p283 = por %p281, %p282
    %p284 = scmp.ne.s32.totalorder %s275, %s276
    %p285 = scmp.eq.s32.totalorder %s34, 0
    %p286 = por %p284, %p285
    %p287 = scmp.ne.s32.totalorder %s275, %s276
    %p288 = scmp.eq.s32.totalorder %s35, 1
    %p289 = por %p287, %p288
    %p291 = scmp.ne.s32.totalorder %s276, %s290
    %p292 = scmp.eq.s32.totalorder %s35, 0
    %p293 = por %p291, %p292
    %s295 = sadd.s32 %s294, 1
    %p298 = scmp.eq.s32.totalorder %s29, 1
    %p299 = scmp.ne.s32.totalorder %s294, %s296
    %p300 = scmp.eq.s32.totalorder %s29, 0
    %p301 = por %p299, %p300
    %p302 = scmp.ne.s32.totalorder %s294, %s296
    %p303 = scmp.eq.s32.totalorder %s34, 1
    %p304 = por %p302, %p303
    %p305 = scmp.ne.s32.totalorder %s296, %s297
    %p306 = scmp.eq.s32.totalorder %s34, 0
    %p307 = por %p305, %p306
    %p308 = scmp.ne.s32.totalorder %s296, %s297
    %p309 = scmp.eq.s32.totalorder %s35, 1
    %p310 = por %p308, %p309
    %p312 = scmp.ne.s32.totalorder %s297, %s311
    %p313 = scmp.eq.s32.totalorder %s35, 0
    %p314 = por %p312, %p313
    %s316 = sadd.s32 %s315, 1
    %p319 = scmp.eq.s32.totalorder %s29, 1
    %p320 = scmp.ne.s32.totalorder %s315, %s317
    %p321 = scmp.eq.s32.totalorder %s29, 0
    %p322 = por %p320, %p321
    %p323 = scmp.ne.s32.totalorder %s315, %s317
    %p324 = scmp.eq.s32.totalorder %s34, 1
    %p325 = por %p323, %p324
    %p326 = scmp.ne.s32.totalorder %s317, %s318
    %p327 = scmp.eq.s32.totalorder %s34, 0
    %p328 = por %p326, %p327
    %p329 = scmp.ne.s32.totalorder %s317, %s318
    %p330 = scmp.eq.s32.totalorder %s35, 1
    %p331 = por %p329, %p330
    %p333 = scmp.ne.s32.totalorder %s318, %s332
    %p334 = scmp.eq.s32.totalorder %s35, 0
    %p335 = por %p333, %p334
    %s337 = sadd.s32 %s336, 1
    %p340 = scmp.eq.s32.totalorder %s29, 1
    %p341 = scmp.ne.s32.totalorder %s336, %s338
    %p342 = scmp.eq.s32.totalorder %s29, 0
    %p343 = por %p341, %p342
    %p344 = scmp.ne.s32.totalorder %s336, %s338
    %p345 = scmp.eq.s32.totalorder %s34, 1
    %p346 = por %p344, %p345
    %p347 = scmp.ne.s32.totalorder %s338, %s339
    %p348 = scmp.eq.s32.totalorder %s34, 0
    %p349 = por %p347, %p348
    %p350 = scmp.ne.s32.totalorder %s338, %s339
    %p351 = scmp.eq.s32.totalorder %s35, 1
    %p352 = por %p350, %p351
    %p354 = scmp.ne.s32.totalorder %s339, %s353
    %p355 = scmp.eq.s32.totalorder %s35, 0
    %p356 = por %p354, %p355
    %s358 = sadd.s32 %s357, 1
    %p361 = scmp.eq.s32.totalorder %s29, 1
    %p362 = scmp.ne.s32.totalorder %s357, %s359
    %p363 = scmp.eq.s32.totalorder %s29, 0
    %p364 = por %p362, %p363
    %p365 = scmp.ne.s32.totalorder %s357, %s359
    %p366 = scmp.eq.s32.totalorder %s34, 1
    %p367 = por %p365, %p366
    %p368 = scmp.ne.s32.totalorder %s359, %s360
    %p369 = scmp.eq.s32.totalorder %s34, 0
    %p370 = por %p368, %p369
    %p371 = scmp.ne.s32.totalorder %s359, %s360
    %p372 = scmp.eq.s32.totalorder %s35, 1
    %p373 = por %p371, %p372
    %p375 = scmp.ne.s32.totalorder %s360, %s374
    %p376 = scmp.eq.s32.totalorder %s35, 0
    %p377 = por %p375, %p376
    %s379 = sadd.s32 %s378, 1
    %p382 = scmp.eq.s32.totalorder %s29, 1
    %p383 = scmp.ne.s32.totalorder %s378, %s380
    %p384 = scmp.eq.s32.totalorder %s29, 0
    %p385 = por %p383, %p384
    %p386 = scmp.ne.s32.totalorder %s378, %s380
    %p387 = scmp.eq.s32.totalorder %s34, 1
    %p388 = por %p386, %p387
    %p389 = scmp.ne.s32.totalorder %s380, %s381
    %p390 = scmp.eq.s32.totalorder %s34, 0
    %p391 = por %p389, %p390
    %p392 = scmp.ne.s32.totalorder %s380, %s381
    %p393 = scmp.eq.s32.totalorder %s35, 1
    %p394 = por %p392, %p393
    %p396 = scmp.ne.s32.totalorder %s381, %s395
    %p397 = scmp.eq.s32.totalorder %s35, 0
    %p398 = por %p396, %p397
    %s400 = sadd.s32 %s399, 1
    %p403 = scmp.eq.s32.totalorder %s29, 1
    %p404 = scmp.ne.s32.totalorder %s399, %s401
    %p405 = scmp.eq.s32.totalorder %s29, 0
    %p406 = por %p404, %p405
    %p407 = scmp.ne.s32.totalorder %s399, %s401
    %p408 = scmp.eq.s32.totalorder %s34, 1
    %p409 = por %p407, %p408
    %p410 = scmp.ne.s32.totalorder %s401, %s402
    %p411 = scmp.eq.s32.totalorder %s34, 0
    %p412 = por %p410, %p411
    %p413 = scmp.ne.s32.totalorder %s401, %s402
    %p414 = scmp.eq.s32.totalorder %s35, 1
    %p415 = por %p413, %p414
    %p417 = scmp.ne.s32.totalorder %s402, %s416
    %p418 = scmp.eq.s32.totalorder %s35, 0
    %p419 = por %p417, %p418
    %s421 = sadd.s32 %s420, 1
    %p424 = scmp.eq.s32.totalorder %s29, 1
    %p425 = scmp.ne.s32.totalorder %s420, %s422
    %p426 = scmp.eq.s32.totalorder %s29, 0
    %p427 = por %p425, %p426
    %p428 = scmp.ne.s32.totalorder %s420, %s422
    %p429 = scmp.eq.s32.totalorder %s34, 1
    %p430 = por %p428, %p429
    %p431 = scmp.ne.s32.totalorder %s422, %s423
    %p432 = scmp.eq.s32.totalorder %s34, 0
    %p433 = por %p431, %p432
    %p434 = scmp.ne.s32.totalorder %s422, %s423
    %p435 = scmp.eq.s32.totalorder %s35, 1
    %p436 = por %p434, %p435
    %p438 = scmp.ne.s32.totalorder %s423, %s437
    %p439 = scmp.eq.s32.totalorder %s35, 0
    %p440 = por %p438, %p439
    %s442 = sadd.s32 %s441, 1
    %p445 = scmp.eq.s32.totalorder %s29, 1
    %p446 = scmp.ne.s32.totalorder %s441, %s443
    %p447 = scmp.eq.s32.totalorder %s29, 0
    %p448 = por %p446, %p447
    %p449 = scmp.ne.s32.totalorder %s441, %s443
    %p450 = scmp.eq.s32.totalorder %s34, 1
    %p451 = por %p449, %p450
    %p452 = scmp.ne.s32.totalorder %s443, %s444
    %p453 = scmp.eq.s32.totalorder %s34, 0
    %p454 = por %p452, %p453
    %p455 = scmp.ne.s32.totalorder %s443, %s444
    %p456 = scmp.eq.s32.totalorder %s35, 1
    %p457 = por %p455, %p456
    %p459 = scmp.ne.s32.totalorder %s444, %s458
    %p460 = scmp.eq.s32.totalorder %s35, 0
    %p461 = por %p459, %p460
    %s463 = sadd.s32 %s462, 1
    %p466 = scmp.eq.s32.totalorder %s29, 1
    %p467 = scmp.ne.s32.totalorder %s462, %s464
    %p468 = scmp.eq.s32.totalorder %s29, 0
    %p469 = por %p467, %p468
    %p470 = scmp.ne.s32.totalorder %s462, %s464
    %p471 = scmp.eq.s32.totalorder %s34, 1
    %p472 = por %p470, %p471
    %p473 = scmp.ne.s32.totalorder %s464, %s465
    %p474 = scmp.eq.s32.totalorder %s34, 0
    %p475 = por %p473, %p474
    %p476 = scmp.ne.s32.totalorder %s464, %s465
    %p477 = scmp.eq.s32.totalorder %s35, 1
    %p478 = por %p476, %p477
    %p480 = scmp.ne.s32.totalorder %s465, %s479
    %p481 = scmp.eq.s32.totalorder %s35, 0
    %p482 = por %p480, %p481
    %s484 = sadd.s32 %s483, 1
    %p487 = scmp.eq.s32.totalorder %s29, 1
    %p488 = scmp.ne.s32.totalorder %s483, %s485
    %p489 = scmp.eq.s32.totalorder %s29, 0
    %p490 = por %p488, %p489
    %p491 = scmp.ne.s32.totalorder %s483, %s485
    %p492 = scmp.eq.s32.totalorder %s34, 1
    %p493 = por %p491, %p492
    %p494 = scmp.ne.s32.totalorder %s485, %s486
    %p495 = scmp.eq.s32.totalorder %s34, 0
    %p496 = por %p494, %p495
    %p497 = scmp.ne.s32.totalorder %s485, %s486
    %p498 = scmp.eq.s32.totalorder %s35, 1
    %p499 = por %p497, %p498
    %p501 = scmp.ne.s32.totalorder %s486, %s500
    %p502 = scmp.eq.s32.totalorder %s35, 0
    %p503 = por %p501, %p502
    %s505 = sadd.s32 %s504, 1
    %p508 = scmp.eq.s32.totalorder %s29, 1
    %p509 = scmp.ne.s32.totalorder %s504, %s506
    %p510 = scmp.eq.s32.totalorder %s29, 0
    %p511 = por %p509, %p510
    %p512 = scmp.ne.s32.totalorder %s504, %s506
    %p513 = scmp.eq.s32.totalorder %s34, 1
    %p514 = por %p512, %p513
    %p515 = scmp.ne.s32.totalorder %s506, %s507
    %p516 = scmp.eq.s32.totalorder %s34, 0
    %p517 = por %p515, %p516
    %p518 = scmp.ne.s32.totalorder %s506, %s507
    %p519 = scmp.eq.s32.totalorder %s35, 1
    %p520 = por %p518, %p519
    %p522 = scmp.ne.s32.totalorder %s507, %s521
    %p523 = scmp.eq.s32.totalorder %s35, 0
    %p524 = por %p522, %p523
    %s525 = ssub.s32 %s29, %s36
    %p526 = scmp.eq.s32.totalorder %s525, 0
    %s528 = sadd.s32 %s527, 1
    %s529 = scalar_select %p526, %s527, %s528
    %p532 = pneg %p526
    %p533 = scmp.eq.s32.totalorder %s29, 1
    %p534 = por %p532, %p533
    %p535 = scmp.ne.s32.totalorder %s527, %s530
    %p536 = scmp.eq.s32.totalorder %s29, 0
    %p537 = por %p535, %p536
    %p538 = scmp.ne.s32.totalorder %s527, %s530
    %p539 = scmp.eq.s32.totalorder %s34, 1
    %p540 = por %p538, %p539
    %p541 = scmp.ne.s32.totalorder %s530, %s531
    %p542 = scmp.eq.s32.totalorder %s34, 0
    %p543 = por %p541, %p542
    %p544 = scmp.ne.s32.totalorder %s530, %s531
    %p545 = scmp.eq.s32.totalorder %s35, 1
    %p546 = por %p544, %p545
    %p548 = scmp.ne.s32.totalorder %s531, %s547
    %p549 = scmp.eq.s32.totalorder %s35, 0
    %p550 = por %p548, %p549
    %p551 = scmp.le.s32.totalorder 1, %s29
    %p552 = scmp.lt.s32.totalorder %s29, 3
    %p553 = pnand %p551, %p552
    %p554 = pneg %p553
    // Predicated region
    $region9: #{pallas_forward.1} parent=5 // pred_check
      _
    $region10: #{pallas_forward.1} parent=5 // pred_check_branch
      %556 = sbr.rel (%p553) target = $region12
    $region11: #{pallas_forward.1} parent=5 // pred_region
      %s557 = ssub.s32 %s29, 1
      // Predicated region
      $region13: #{pallas_forward.1} parent=11 // pred_check
        %p558 = pneg %p76
      $region14: #{pallas_forward.1} parent=11 // pred_check_branch
        %560 = sbr.rel (%p558) target = $region16
      $region15: #{pallas_forward.1} parent=11 // pred_region
        _
      $region16: #{pallas_forward.1} parent=11 // pred_fallthru
        _
      // Predicated region
      $region17: #{pallas_forward.1} parent=11 // pred_check
        %p561 = pneg %p97
      $region18: #{pallas_forward.1} parent=11 // pred_check_branch
        %563 = sbr.rel (%p561) target = $region20
      $region19: #{pallas_forward.1} parent=11 // pred_region
        _
      $region20: #{pallas_forward.1} parent=11 // pred_fallthru
        _
      // Predicated region
      $region21: #{pallas_forward.1} parent=11 // pred_check
        %p564 = pneg %p118
      $region22: #{pallas_forward.1} parent=11 // pred_check_branch
        %566 = sbr.rel (%p564) target = $region24
      $region23: #{pallas_forward.1} parent=11 // pred_region
        _
      $region24: #{pallas_forward.1} parent=11 // pred_fallthru
        _
      // Predicated region
      $region25: #{pallas_forward.1} parent=11 // pred_check
        %p567 = pneg %p139
      $region26: #{pallas_forward.1} parent=11 // pred_check_branch
        %569 = sbr.rel (%p567) target = $region28
      $region27: #{pallas_forward.1} parent=11 // pred_region
        _
      $region28: #{pallas_forward.1} parent=11 // pred_fallthru
        _
      // Predicated region
      $region29: #{pallas_forward.1} parent=11 // pred_check
        %p570 = pneg %p160
      $region30: #{pallas_forward.1} parent=11 // pred_check_branch
        %572 = sbr.rel (%p570) target = $region32
      $region31: #{pallas_forward.1} parent=11 // pred_region
        _
      $region32: #{pallas_forward.1} parent=11 // pred_fallthru
        _
      // Predicated region
      $region33: #{pallas_forward.1} parent=11 // pred_check
        %p573 = pneg %p181
      $region34: #{pallas_forward.1} parent=11 // pred_check_branch
        %575 = sbr.rel (%p573) target = $region36
      $region35: #{pallas_forward.1} parent=11 // pred_region
        _
      $region36: #{pallas_forward.1} parent=11 // pred_fallthru
        _
      // Predicated region
      $region37: #{pallas_forward.1} parent=11 // pred_check
        %p576 = pneg %p202
      $region38: #{pallas_forward.1} parent=11 // pred_check_branch
        %578 = sbr.rel (%p576) target = $region40
      $region39: #{pallas_forward.1} parent=11 // pred_region
        _
      $region40: #{pallas_forward.1} parent=11 // pred_fallthru
        _
      // Predicated region
      $region41: #{pallas_forward.1} parent=11 // pred_check
        %p579 = pneg %p223
      $region42: #{pallas_forward.1} parent=11 // pred_check_branch
        %581 = sbr.rel (%p579) target = $region44
      $region43: #{pallas_forward.1} parent=11 // pred_region
        _
      $region44: #{pallas_forward.1} parent=11 // pred_fallthru
        _
      // Predicated region
      $region45: #{pallas_forward.1} parent=11 // pred_check
        %p582 = pneg %p244
      $region46: #{pallas_forward.1} parent=11 // pred_check_branch
        %584 = sbr.rel (%p582) target = $region48
      $region47: #{pallas_forward.1} parent=11 // pred_region
        _
      $region48: #{pallas_forward.1} parent=11 // pred_fallthru
        _
      // Predicated region
      $region49: #{pallas_forward.1} parent=11 // pred_check
        %p585 = pneg %p265
      $region50: #{pallas_forward.1} parent=11 // pred_check_branch
        %587 = sbr.rel (%p585) target = $region52
      $region51: #{pallas_forward.1} parent=11 // pred_region
        _
      $region52: #{pallas_forward.1} parent=11 // pred_fallthru
        _
      // Predicated region
      $region53: #{pallas_forward.1} parent=11 // pred_check
        %p588 = pneg %p286
      $region54: #{pallas_forward.1} parent=11 // pred_check_branch
        %590 = sbr.rel (%p588) target = $region56
      $region55: #{pallas_forward.1} parent=11 // pred_region
        _
      $region56: #{pallas_forward.1} parent=11 // pred_fallthru
        _
      // Predicated region
      $region57: #{pallas_forward.1} parent=11 // pred_check
        %p591 = pneg %p307
      $region58: #{pallas_forward.1} parent=11 // pred_check_branch
        %593 = sbr.rel (%p591) target = $region60
      $region59: #{pallas_forward.1} parent=11 // pred_region
        _
      $region60: #{pallas_forward.1} parent=11 // pred_fallthru
        _
      // Predicated region
      $region61: #{pallas_forward.1} parent=11 // pred_check
        %p594 = pneg %p328
      $region62: #{pallas_forward.1} parent=11 // pred_check_branch
        %596 = sbr.rel (%p594) target = $region64
      $region63: #{pallas_forward.1} parent=11 // pred_region
        _
      $region64: #{pallas_forward.1} parent=11 // pred_fallthru
        _
      // Predicated region
      $region65: #{pallas_forward.1} parent=11 // pred_check
        %p597 = pneg %p349
      $region66: #{pallas_forward.1} parent=11 // pred_check_branch
        %599 = sbr.rel (%p597) target = $region68
      $region67: #{pallas_forward.1} parent=11 // pred_region
        _
      $region68: #{pallas_forward.1} parent=11 // pred_fallthru
        _
      // Predicated region
      $region69: #{pallas_forward.1} parent=11 // pred_check
        %p600 = pneg %p370
      $region70: #{pallas_forward.1} parent=11 // pred_check_branch
        %602 = sbr.rel (%p600) target = $region72
      $region71: #{pallas_forward.1} parent=11 // pred_region
        _
      $region72: #{pallas_forward.1} parent=11 // pred_fallthru
        _
      // Predicated region
      $region73: #{pallas_forward.1} parent=11 // pred_check
        %p603 = pneg %p391
      $region74: #{pallas_forward.1} parent=11 // pred_check_branch
        %605 = sbr.rel (%p603) target = $region76
      $region75: #{pallas_forward.1} parent=11 // pred_region
        _
      $region76: #{pallas_forward.1} parent=11 // pred_fallthru
        _
      // Predicated region
      $region77: #{pallas_forward.1} parent=11 // pred_check
        %p606 = pneg %p412
      $region78: #{pallas_forward.1} parent=11 // pred_check_branch
        %608 = sbr.rel (%p606) target = $region80
      $region79: #{pallas_forward.1} parent=11 // pred_region
        _
      $region80: #{pallas_forward.1} parent=11 // pred_fallthru
        _
      // Predicated region
      $region81: #{pallas_forward.1} parent=11 // pred_check
        %p609 = pneg %p433
      $region82: #{pallas_forward.1} parent=11 // pred_check_branch
        %611 = sbr.rel (%p609) target = $region84
      $region83: #{pallas_forward.1} parent=11 // pred_region
        _
      $region84: #{pallas_forward.1} parent=11 // pred_fallthru
        _
      // Predicated region
      $region85: #{pallas_forward.1} parent=11 // pred_check
        %p612 = pneg %p454
      $region86: #{pallas_forward.1} parent=11 // pred_check_branch
        %614 = sbr.rel (%p612) target = $region88
      $region87: #{pallas_forward.1} parent=11 // pred_region
        _
      $region88: #{pallas_forward.1} parent=11 // pred_fallthru
        _
      // Predicated region
      $region89: #{pallas_forward.1} parent=11 // pred_check
        %p615 = pneg %p475
      $region90: #{pallas_forward.1} parent=11 // pred_check_branch
        %617 = sbr.rel (%p615) target = $region92
      $region91: #{pallas_forward.1} parent=11 // pred_region
        _
      $region92: #{pallas_forward.1} parent=11 // pred_fallthru
        _
      // Predicated region
      $region93: #{pallas_forward.1} parent=11 // pred_check
        %p618 = pneg %p496
      $region94: #{pallas_forward.1} parent=11 // pred_check_branch
        %620 = sbr.rel (%p618) target = $region96
      $region95: #{pallas_forward.1} parent=11 // pred_region
        _
      $region96: #{pallas_forward.1} parent=11 // pred_fallthru
        _
      // Predicated region
      $region97: #{pallas_forward.1} parent=11 // pred_check
        %p621 = pneg %p517
      $region98: #{pallas_forward.1} parent=11 // pred_check_branch
        %623 = sbr.rel (%p621) target = $region100
      $region99: #{pallas_forward.1} parent=11 // pred_region
        _
      $region100: #{pallas_forward.1} parent=11 // pred_fallthru
        _
    $region12: #{pallas_forward.1} parent=5 // pred_fallthru
      _
    %p624 = scmp.lt.s32.totalorder %s29, 2
    // Predicated region
    $region101: #{pallas_forward.1} parent=5 // pred_check
      %p625 = pneg %p624
    $region102: #{pallas_forward.1} parent=5 // pred_check_branch
      %627 = sbr.rel (%p625) target = $region104
    $region103: #{pallas_forward.1} parent=5 // pred_region
      // Predicated region
      $region105: #{pallas_forward.1} parent=103 // pred_check
        %p628 = pneg %p49
      $region106: #{pallas_forward.1} parent=103 // pred_check_branch
        %630 = sbr.rel (%p628) target = $region108
      $region107: #{pallas_forward.1} parent=103 // pred_region
        %p631 = scmp.lt.s32.totalorder %s29, 1
        %s632 = scalar_select %p631, %s29, 1
        %s633 = smul.addr %s632, 8
        %s634 = scalar_lea.vmem %s0, %s633
      $region108: #{pallas_forward.1} parent=103 // pred_fallthru
        _
    $region104: #{pallas_forward.1} parent=5 // pred_fallthru
      _
    %p635 = scmp.le.s32.totalorder 1, %s29
    %p636 = scmp.lt.s32.totalorder %s29, 3
    %p637 = pnand %p635, %p636
    %p638 = pneg %p637
    // Predicated region
    $region109: #{pallas_forward.1} parent=5 // pred_check
      _
    $region110: #{pallas_forward.1} parent=5 // pred_check_branch
      %640 = sbr.rel (%p637) target = $region112
    $region111: #{pallas_forward.1} parent=5 // pred_region
      %s641 = ssub.s32 %s29, 1
      %p642 = scmp.lt.s32.totalorder %s34, 1
      %s643 = scalar_select %p642, %s34, 1
      %s644 = smul.addr %s643, 8
      %s645 = scalar_lea.vmem %s0, %s644
      %p646 = pneg %p55
      %p647 = pneg %p52
      %p648 = pneg %p76
      %p649 = pneg %p73
      %p650 = pneg %p97
      %p651 = pneg %p94
      %p652 = pneg %p118
      %p653 = pneg %p115
      %p654 = pneg %p139
      %p655 = pneg %p136
      %p656 = pneg %p160
      %p657 = pneg %p157
      %p658 = pneg %p181
      %p659 = pneg %p178
      %p660 = pneg %p202
      %p661 = pneg %p199
      %p662 = pneg %p223
      %p663 = pneg %p220
      %p664 = pneg %p244
      %p665 = pneg %p241
      %p666 = pneg %p265
      %p667 = pneg %p262
      %p668 = pneg %p286
      %p669 = pneg %p283
      %p670 = pneg %p307
      %p671 = pneg %p304
      %p672 = pneg %p328
      %p673 = pneg %p325
      %p674 = pneg %p349
      %p675 = pneg %p346
      %p676 = pneg %p370
      %p677 = pneg %p367
      %p678 = pneg %p391
      %p679 = pneg %p388
      %p680 = pneg %p412
      %p681 = pneg %p409
      %p682 = pneg %p433
      %p683 = pneg %p430
      %p684 = pneg %p454
      %p685 = pneg %p451
      %p686 = pneg %p475
      %p687 = pneg %p472
      %p688 = pneg %p496
      %p689 = pneg %p493
      %p690 = pneg %p517
      %p691 = pneg %p514
      %p692 = pneg %p543
      %p693 = pneg %p540
      %p694 = scmp.lt.s32.totalorder %s34, 1
      %s695 = scalar_select %p694, %s34, 1
      %s696 = smul.addr %s695, 8
      %s697 = scalar_lea.vmem %s23, %s696
      %p698 = scmp.lt.s32.totalorder %s34, 1
      %s699 = scalar_select %p698, %s34, 1
      %s700 = smul.addr %s699, 8
      %s701 = scalar_lea.vmem %s0, %s700
      %p702 = scmp.lt.s32.totalorder %s34, 1
      %s703 = scalar_select %p702, %s34, 1
      %s704 = smul.addr %s703, 8
      %s705 = scalar_lea.vmem %s23, %s704
      %v707 = vld [vmem:[%s701] sm:$0xff]
      %v708 = vlaneseq
      %v709 = vshrl.u32 %v708, 7
      %v710 = vlaneseq
      %v711 = vand.u32 %v710, 127
      %vm712 = vcmp.ge.s32.totalorder %v709, %v711
      %v713 = vld [vmem:[%s1] sm:$0xf]
      %v714 = vld [vmem:[%s1 + $0x4] sm:$0xf]
      %v715 = vld [vmem:[%s1 + $0x8] sm:$0xf]
      %v716 = vld [vmem:[%s1 + $0xc] sm:$0xf]
      %v717 = vpack.c.bf16 %v707, %v707
      %v718 = vld [vmem:[%s2] sm:$0x1]
      %v720 = vlaneseq
      %v721 = vshrl.u32 %v720, 7
      %v722 = vsub.s32 0, %v721
      %v723 = vrot.slane %v718, %v722
      %v729 = vunpack.c.l.b16 %v713
      %v730 = vunpack.c.l.b16 %v714
      %v731 = vunpack.c.l.b16 %v715
      %v732 = vunpack.c.l.b16 %v716
      %v733 = vpack.c.b16 %v730, %v729
      %v734 = vpack.c.b16 %v732, %v731
      %vm737 = vcmask 261120
      %v739 = vsel %vm737, %v717, 0
      %741 = vmatprep.subr.bf16.mxu0 0
      %742 = vmatpush1.bf16.msra.mxu0 %v733
      %743 = vmatprep.subr.bf16.mxu0 0
      %744 = vmatpush1.bf16.msra.mxu0 %v734
      %745 = vmatprep.subr.bf16.mxu0 0
      %746 = vmatpush1.bf16.msra.mxu0 0
      %747 = vmatprep.subr.bf16.mxu0 0
      %748 = vmatpush1.bf16.msra.mxu0 0
      %749 = vmatprep.subr.bf16.mxu0 0
      %750 = vmatpush1.bf16.msra.mxu0 0
      %751 = vmatprep.subr.bf16.mxu0 0
      %752 = vmatpush1.bf16.msra.mxu0 0
      %753 = vmatprep.subr.bf16.mxu0 0
      %754 = vmatpush1.bf16.msra.mxu0 0
      %755 = vmatprep.subr.bf16.mxu0 0
      %756 = vmatpush1.bf16.msra.mxu0 0
      %757 = vmatprep.subr.bf16.mxu0 0
      %758 = vmatpush1.bf16.msra.mxu0 0
      %759 = vmatprep.subr.bf16.mxu0 0
      %760 = vmatpush1.bf16.msra.mxu0 0
      %761 = vmatprep.subr.bf16.mxu0 0
      %762 = vmatpush1.bf16.msra.mxu0 0
      %763 = vmatprep.subr.bf16.mxu0 0
      %764 = vmatpush1.bf16.msra.mxu0 0
      %765 = vmatprep.subr.bf16.mxu0 0
      %766 = vmatpush1.bf16.msra.mxu0 0
      %767 = vmatprep.subr.bf16.mxu0 0
      %768 = vmatpush1.bf16.msra.mxu0 0
      %769 = vmatprep.subr.bf16.mxu0 0
      %770 = vmatpush1.bf16.msra.mxu0 0
      %771 = vmatprep.subr.bf16.mxu0 0
      %772 = vmatpush1.bf16.msra.mxu0 0
      %773 = vmatprep.mubr.bf16.mxu0 0
      %774 = vmatmul.mubr.bf16.gmra.mrb[0].mxu0 %v739
      %v775 = vpop.f32.mrb[0].mxu0
      %v776 = vadd.f32 %v723, %v775
      %v777 = vpop.f32.mrb[0].mxu0
      %v778 = vpop.f32.mrb[0].mxu0
      %v779 = vpop.f32.mrb[0].mxu0
      %780 = vdwg.mxu0
      %v781 = vpack.c.bf16 %v776, %v776
      %783 = vrot.lane.b32.xlu0 %v781, 96
      %v784 = vpop.permute.xlu0 %783
      %vm785 = vcmask 64512
      %v787 = vsel %vm785, %v781, 0
      %v790 = vsel %vm785, %v784, 0
      %792 = vmatprep.subr.bf16.mxu0 0
      %793 = vmatpush1.bf16.xpose.msra.mxu0 %v790
      %794 = vmatprep.subr.bf16.mxu0 0
      %795 = vmatpush1.bf16.xpose.msra.mxu0 0
      %796 = vmatprep.subr.bf16.mxu0 0
      %797 = vmatpush1.bf16.xpose.msra.mxu0 0
      %798 = vmatprep.subr.bf16.mxu0 0
      %799 = vmatpush1.bf16.xpose.msra.mxu0 0
      %800 = vmatprep.subr.bf16.mxu0 0
      %801 = vmatpush1.bf16.xpose.msra.mxu0 0
      %802 = vmatprep.subr.bf16.mxu0 0
      %803 = vmatpush1.bf16.xpose.msra.mxu0 0
      %804 = vmatprep.subr.bf16.mxu0 0
      %805 = vmatpush1.bf16.xpose.msra.mxu0 0
      %806 = vmatprep.subr.bf16.mxu0 0
      %807 = vmatpush1.bf16.xpose.msra.mxu0 0
      %808 = vmatprep.subr.bf16.mxu0 0
      %809 = vmatpush1.bf16.xpose.msra.mxu0 0
      %810 = vmatprep.subr.bf16.mxu0 0
      %811 = vmatpush1.bf16.xpose.msra.mxu0 0
      %812 = vmatprep.subr.bf16.mxu0 0
      %813 = vmatpush1.bf16.xpose.msra.mxu0 0
      %814 = vmatprep.subr.bf16.mxu0 0
      %815 = vmatpush1.bf16.xpose.msra.mxu0 0
      %816 = vmatprep.subr.bf16.mxu0 0
      %817 = vmatpush1.bf16.xpose.msra.mxu0 0
      %818 = vmatprep.subr.bf16.mxu0 0
      %819 = vmatpush1.bf16.xpose.msra.mxu0 0
      %820 = vmatprep.subr.bf16.mxu0 0
      %821 = vmatpush1.bf16.xpose.msra.mxu0 0
      %822 = vmatprep.subr.bf16.mxu0 0
      %823 = vmatpush1.bf16.xpose.msra.mxu0 0
      %824 = vmatprep.mubr.bf16.mxu0 0
      %825 = vmatmul.mubr.bf16.gmra.mrb[0].mxu0 %v787
      %v826 = vpop.f32.mrb[0].mxu0
      %v827 = vadd.f32 0.0, %v826
      %v828 = vpop.f32.mrb[0].mxu0
      %v829 = vpop.f32.mrb[0].mxu0
      %v830 = vpop.f32.mrb[0].mxu0
      %831 = vdwg.mxu0
      %v832 = vmul.f32 %v827, 0.35355338
      %v833 = vsel %vm712, %v832, -1e+30
      %v834 = vsel %vm785, %v833, -inf
      %835 = vmax.xlane.f32.xlu0 %v834
      %v836 = vpop.xlane.xlu0 %835
      %v837 = vsub.f32 %v833, %v836
      %v838 = vmul.f32 %v837, 1.442695
      %v839 = vpow.pop %v838
      %v840 = vsel %vm785, %v839, 0.0
      %841 = vadd.xlane.f32.xlu0 %v840
      %v842 = vpop.xlane.xlu0 %841
      %v843 = vrcp.pop %v842
      %v844 = vmul.f32 %v839, %v843
      %v845 = vpack.c.bf16 %v844, %v844
      %846 = vrot.lane.b32.xlu0 %v781, 64
      %v847 = vpop.permute.xlu0 %846
      %v849 = vsel %vm785, %v845, 0
      %vm851 = vcmask 1043456
      %v853 = vsel %vm851, %v847, 0
      %855 = vmatprep.subr.bf16.mxu0 0
      %856 = vmatpush1.bf16.msra.mxu0 %v853
      %857 = vmatprep.subr.bf16.mxu0 0
      %858 = vmatpush1.bf16.msra.mxu0 0
      %859 = vmatprep.subr.bf16.mxu0 0
      %860 = vmatpush1.bf16.msra.mxu0 0
      %861 = vmatprep.subr.bf16.mxu0 0
      %862 = vmatpush1.bf16.msra.mxu0 0
      %863 = vmatprep.subr.bf16.mxu0 0
      %864 = vmatpush1.bf16.msra.mxu0 0
      %865 = vmatprep.subr.bf16.mxu0 0
      %866 = vmatpush1.bf16.msra.mxu0 0
      %867 = vmatprep.subr.bf16.mxu0 0
      %868 = vmatpush1.bf16.msra.mxu0 0
      %869 = vmatprep.subr.bf16.mxu0 0
      %870 = vmatpush1.bf16.msra.mxu0 0
      %871 = vmatprep.subr.bf16.mxu0 0
      %872 = vmatpush1.bf16.msra.mxu0 0
      %873 = vmatprep.subr.bf16.mxu0 0
      %874 = vmatpush1.bf16.msra.mxu0 0
      %875 = vmatprep.subr.bf16.mxu0 0
      %876 = vmatpush1.bf16.msra.mxu0 0
      %877 = vmatprep.subr.bf16.mxu0 0
      %878 = vmatpush1.bf16.msra.mxu0 0
      %879 = vmatprep.subr.bf16.mxu0 0
      %880 = vmatpush1.bf16.msra.mxu0 0
      %881 = vmatprep.subr.bf16.mxu0 0
      %882 = vmatpush1.bf16.msra.mxu0 0
      %883 = vmatprep.subr.bf16.mxu0 0
      %884 = vmatpush1.bf16.msra.mxu0 0
      %885 = vmatprep.subr.bf16.mxu0 0
      %886 = vmatpush1.bf16.msra.mxu0 0
      %887 = vmatprep.mubr.bf16.mxu0 0
      %888 = vmatmul.mubr.bf16.gmra.mrb[0].mxu0 %v849
      %v889 = vpop.f32.mrb[0].mxu0
      %v890 = vadd.f32 0.0, %v889
      %v891 = vpop.f32.mrb[0].mxu0
      %v892 = vpop.f32.mrb[0].mxu0
      %v893 = vpop.f32.mrb[0].mxu0
      %894 = vdwg.mxu0
      %895 = vrot.lane.b32.xlu0 %v781, 120
      %v896 = vpop.permute.xlu0 %895
      %897 = vrot.lane.b32.xlu0 %v781, 88
      %v898 = vpop.permute.xlu0 %897
      %v900 = vsel %vm785, %v896, 0
      %v903 = vsel %vm785, %v898, 0
      %905 = vmatprep.subr.bf16.mxu0 0
      %906 = vmatpush1.bf16.xpose.msra.mxu0 %v903
      %907 = vmatprep.subr.bf16.mxu0 0
      %908 = vmatpush1.bf16.xpose.msra.mxu0 0
      %909 = vmatprep.subr.bf16.mxu0 0
      %910 = vmatpush1.bf16.xpose.msra.mxu0 0
      %911 = vmatprep.subr.bf16.mxu0 0
      %912 = vmatpush1.bf16.xpose.msra.mxu0 0
      %913 = vmatprep.subr.bf16.mxu0 0
      %914 = vmatpush1.bf16.xpose.msra.mxu0 0
      %915 = vmatprep.subr.bf16.mxu0 0
      %916 = vmatpush1.bf16.xpose.msra.mxu0 0
      %917 = vmatprep.subr.bf16.mxu0 0
      %918 = vmatpush1.bf16.xpose.msra.mxu0 0
      %919 = vmatprep.subr.bf16.mxu0 0
      %920 = vmatpush1.bf16.xpose.msra.mxu0 0
      %921 = vmatprep.subr.bf16.mxu0 0
      %922 = vmatpush1.bf16.xpose.msra.mxu0 0
      %923 = vmatprep.subr.bf16.mxu0 0
      %924 = vmatpush1.bf16.xpose.msra.mxu0 0
      %925 = vmatprep.subr.bf16.mxu0 0
      %926 = vmatpush1.bf16.xpose.msra.mxu0 0
      %927 = vmatprep.subr.bf16.mxu0 0
      %928 = vmatpush1.bf16.xpose.msra.mxu0 0
      %929 = vmatprep.subr.bf16.mxu0 0
      %930 = vmatpush1.bf16.xpose.msra.mxu0 0
      %931 = vmatprep.subr.bf16.mxu0 0
      %932 = vmatpush1.bf16.xpose.msra.mxu0 0
      %933 = vmatprep.subr.bf16.mxu0 0
      %934 = vmatpush1.bf16.xpose.msra.mxu0 0
      %935 = vmatprep.subr.bf16.mxu0 0
      %936 = vmatpush1.bf16.xpose.msra.mxu0 0
      %937 = vmatprep.mubr.bf16.mxu0 0
      %938 = vmatmul.mubr.bf16.gmra.mrb[0].mxu0 %v900
      %v939 = vpop.f32.mrb[0].mxu0
      %v940 = vadd.f32 0.0, %v939
      %v941 = vpop.f32.mrb[0].mxu0
      %v942 = vpop.f32.mrb[0].mxu0
      %v943 = vpop.f32.mrb[0].mxu0
      %944 = vdwg.mxu0
      %v945 = vmul.f32 %v940, 0.35355338
      %v946 = vsel %vm712, %v945, -1e+30
      %v947 = vsel %vm785, %v946, -inf
      %948 = vmax.xlane.f32.xlu0 %v947
      %v949 = vpop.xlane.xlu0 %948
      %v950 = vsub.f32 %v946, %v949
      %v951 = vmul.f32 %v950, 1.442695
      %v952 = vpow.pop %v951
      %v953 = vsel %vm785, %v952, 0.0
      %954 = vadd.xlane.f32.xlu0 %v953
      %v955 = vpop.xlane.xlu0 %954
      %v956 = vrcp.pop %v955
      %v957 = vmul.f32 %v952, %v956
      %v958 = vpack.c.bf16 %v957, %v957
      %959 = vrot.lane.b32.xlu0 %v781, 56
      %v960 = vpop.permute.xlu0 %959
      %v962 = vsel %vm785, %v958, 0
      %v965 = vsel %vm851, %v960, 0
      %967 = vmatprep.subr.bf16.mxu0 0
      %968 = vmatpush1.bf16.msra.mxu0 %v965
      %969 = vmatprep.subr.bf16.mxu0 0
      %970 = vmatpush1.bf16.msra.mxu0 0
      %971 = vmatprep.subr.bf16.mxu0 0
      %972 = vmatpush1.bf16.msra.mxu0 0
      %973 = vmatprep.subr.bf16.mxu0 0
      %974 = vmatpush1.bf16.msra.mxu0 0
      %975 = vmatprep.subr.bf16.mxu0 0
      %976 = vmatpush1.bf16.msra.mxu0 0
      %977 = vmatprep.subr.bf16.mxu0 0
      %978 = vmatpush1.bf16.msra.mxu0 0
      %979 = vmatprep.subr.bf16.mxu0 0
      %980 = vmatpush1.bf16.msra.mxu0 0
      %981 = vmatprep.subr.bf16.mxu0 0
      %982 = vmatpush1.bf16.msra.mxu0 0
      %983 = vmatprep.subr.bf16.mxu0 0
      %984 = vmatpush1.bf16.msra.mxu0 0
      %985 = vmatprep.subr.bf16.mxu0 0
      %986 = vmatpush1.bf16.msra.mxu0 0
      %987 = vmatprep.subr.bf16.mxu0 0
      %988 = vmatpush1.bf16.msra.mxu0 0
      %989 = vmatprep.subr.bf16.mxu0 0
      %990 = vmatpush1.bf16.msra.mxu0 0
      %991 = vmatprep.subr.bf16.mxu0 0
      %992 = vmatpush1.bf16.msra.mxu0 0
      %993 = vmatprep.subr.bf16.mxu0 0
      %994 = vmatpush1.bf16.msra.mxu0 0
      %995 = vmatprep.subr.bf16.mxu0 0
      %996 = vmatpush1.bf16.msra.mxu0 0
      %997 = vmatprep.subr.bf16.mxu0 0
      %998 = vmatpush1.bf16.msra.mxu0 0
      %999 = vmatprep.mubr.bf16.mxu0 0
      %1000 = vmatmul.mubr.bf16.gmra.mrb[0].mxu0 %v962
      %v1001 = vpop.f32.mrb[0].mxu0
      %v1002 = vadd.f32 0.0, %v1001
      %v1003 = vpop.f32.mrb[0].mxu0
      %v1004 = vpop.f32.mrb[0].mxu0
      %v1005 = vpop.f32.mrb[0].mxu0
      %1006 = vdwg.mxu0
      %1007 = vrot.lane.b32.xlu0 %v781, 112
      %v1008 = vpop.permute.xlu0 %1007
      %1009 = vrot.lane.b32.xlu0 %v781, 80
      %v1010 = vpop.permute.xlu0 %1009
      %v1012 = vsel %vm785, %v1008, 0
      %v1015 = vsel %vm785, %v1010, 0
      %1017 = vmatprep.subr.bf16.mxu0 0
      %1018 = vmatpush1.bf16.xpose.msra.mxu0 %v1015
      %1019 = vmatprep.subr.bf16.mxu0 0
      %1020 = vmatpush1.bf16.xpose.msra.mxu0 0
      %1021 = vmatprep.subr.bf16.mxu0 0
      %1022 = vmatpush1.bf16.xpose.msra.mxu0 0
      %1023 = vmatprep.subr.bf16.mxu0 0
      %1024 = vmatpush1.bf16.xpose.msra.mxu0 0
      %1025 = vmatprep.subr.bf16.mxu0 0
      %1026 = vmatpush1.bf16.xpose.msra.mxu0 0
      %1027 = vmatprep.subr.bf16.mxu0 0
      %1028 = vmatpush1.bf16.xpose.msra.mxu0 0
      %1029 = vmatprep.subr.bf16.mxu0 0
      %1030 = vmatpush1.bf16.xpose.msra.mxu0 0
      %1031 = vmatprep.subr.bf16.mxu0 0
      %1032 = vmatpush1.bf16.xpose.msra.mxu0 0
      %1033 = vmatprep.subr.bf16.mxu0 0
      %1034 = vmatpush1.bf16.xpose.msra.mxu0 0
      %1035 = vmatprep.subr.bf16.mxu0 0
      %1036 = vmatpush1.bf16.xpose.msra.mxu0 0
      %1037 = vmatprep.subr.bf16.mxu0 0
      %1038 = vmatpush1.bf16.xpose.msra.mxu0 0
      %1039 = vmatprep.subr.bf16.mxu0 0
      %1040 = vmatpush1.bf16.xpose.msra.mxu0 0
      %1041 = vmatprep.subr.bf16.mxu0 0
      %1042 = vmatpush1.bf16.xpose.msra.mxu0 0
      %1043 = vmatprep.subr.bf16.mxu0 0
      %1044 = vmatpush1.bf16.xpose.msra.mxu0 0
      %1045 = vmatprep.subr.bf16.mxu0 0
      %1046 = vmatpush1.bf16.xpose.msra.mxu0 0
      %1047 = vmatprep.subr.bf16.mxu0 0
      %1048 = vmatpush1.bf16.xpose.msra.mxu0 0
      %1049 = vmatprep.mubr.bf16.mxu0 0
      %1050 = vmatmul.mubr.bf16.gmra.mrb[0].mxu0 %v1012
      %v1051 = vpop.f32.mrb[0].mxu0
      %v1052 = vadd.f32 0.0, %v1051
      %v1053 = vpop.f32.mrb[0].mxu0
      %v1054 = vpop.f32.mrb[0].mxu0
      %v1055 = vpop.f32.mrb[0].mxu0
      %1056 = vdwg.mxu0
      %v1057 = vmul.f32 %v1052, 0.35355338
      %v1058 = vsel %vm712, %v1057, -1e+30
      %v1059 = vsel %vm785, %v1058, -inf
      %1060 = vmax.xlane.f32.xlu0 %v1059
      %v1061 = vpop.xlane.xlu0 %1060
      %v1062 = vsub.f32 %v1058, %v1061
      %v1063 = vmul.f32 %v1062, 1.442695
      %v1064 = vpow.pop %v1063
      %v1065 = vsel %vm785, %v1064, 0.0
      %1066 = vadd.xlane.f32.xlu0 %v1065
      %v1067 = vpop.xlane.xlu0 %1066
      %v1068 = vrcp.pop %v1067
      %v1069 = vmul.f32 %v1064, %v1068
      %v1070 = vpack.c.bf16 %v1069, %v1069
      %1071 = vrot.lane.b32.xlu0 %v781, 48
      %v1072 = vpop.permute.xlu0 %1071
      %v1074 = vsel %vm785, %v1070, 0
      %v1077 = vsel %vm851, %v1072, 0
      %1079 = vmatprep.subr.bf16.mxu0 0
      %1080 = vmatpush1.bf16.msra.mxu0 %v1077
      %1081 = vmatprep.subr.bf16.mxu0 0
      %1082 = vmatpush1.bf16.msra.mxu0 0
      %1083 = vmatprep.subr.bf16.mxu0 0
      %1084 = vmatpush1.bf16.msra.mxu0 0
      %1085 = vmatprep.subr.bf16.mxu0 0
      %1086 = vmatpush1.bf16.msra.mxu0 0
      %1087 = vmatprep.subr.bf16.mxu0 0
      %1088 = vmatpush1.bf16.msra.mxu0 0
      %1089 = vmatprep.subr.bf16.mxu0 0
      %1090 = vmatpush1.bf16.msra.mxu0 0
      %1091 = vmatprep.subr.bf16.mxu0 0
      %1092 = vmatpush1.bf16.msra.mxu0 0
      %1093 = vmatprep.subr.bf16.mxu0 0
      %1094 = vmatpush1.bf16.msra.mxu0 0
      %1095 = vmatprep.subr.bf16.mxu0 0
      %1096 = vmatpush1.bf16.msra.mxu0 0
      %1097 = vmatprep.subr.bf16.mxu0 0
      %1098 = vmatpush1.bf16.msra.mxu0 0
      %1099 = vmatprep.subr.bf16.mxu0 0
      %1100 = vmatpush1.bf16.msra.mxu0 0
      %1101 = vmatprep.subr.bf16.mxu0 0
      %1102 = vmatpush1.bf16.msra.mxu0 0
      %1103 = vmatprep.subr.bf16.mxu0 0
      %1104 = vmatpush1.bf16.msra.mxu0 0
      %1105 = vmatprep.subr.bf16.mxu0 0
      %1106 = vmatpush1.bf16.msra.mxu0 0
      %1107 = vmatprep.subr.bf16.mxu0 0
      %1108 = vmatpush1.bf16.msra.mxu0 0
      %1109 = vmatprep.subr.bf16.mxu0 0
      %1110 = vmatpush1.bf16.msra.mxu0 0
      %1111 = vmatprep.mubr.bf16.mxu0 0
      %1112 = vmatmul.mubr.bf16.gmra.mrb[0].mxu0 %v1074
      %v1113 = vpop.f32.mrb[0].mxu0
      %v1114 = vadd.f32 0.0, %v1113
      %v1115 = vpop.f32.mrb[0].mxu0
      %v1116 = vpop.f32.mrb[0].mxu0
      %v1117 = vpop.f32.mrb[0].mxu0
      %1118 = vdwg.mxu0
      %1119 = vrot.lane.b32.xlu0 %v781, 104
      %v1120 = vpop.permute.xlu0 %1119
      %1121 = vrot.lane.b32.xlu0 %v781, 72
      %v1122 = vpop.permute.xlu0 %1121
      %v1124 = vsel %vm785, %v1120, 0
      %v1127 = vsel %vm785, %v1122, 0
      %1129 = vmatprep.subr.bf16.mxu0 0
      %1130 = vmatpush1.bf16.xpose.msra.mxu0 %v1127
      %1131 = vmatprep.subr.bf16.mxu0 0
      %1132 = vmatpush1.bf16.xpose.msra.mxu0 0
      %1133 = vmatprep.subr.bf16.mxu0 0
      %1134 = vmatpush1.bf16.xpose.msra.mxu0 0
      %1135 = vmatprep.subr.bf16.mxu0 0
      %1136 = vmatpush1.bf16.xpose.msra.mxu0 0
      %1137 = vmatprep.subr.bf16.mxu0 0
      %1138 = vmatpush1.bf16.xpose.msra.mxu0 0
      %1139 = vmatprep.subr.bf16.mxu0 0
      %1140 = vmatpush1.bf16.xpose.msra.mxu0 0
      %1141 = vmatprep.subr.bf16.mxu0 0
      %1142 = vmatpush1.bf16.xpose.msra.mxu0 0
      %1143 = vmatprep.subr.bf16.mxu0 0
      %1144 = vmatpush1.bf16.xpose.msra.mxu0 0
      %1145 = vmatprep.subr.bf16.mxu0 0
      %1146 = vmatpush1.bf16.xpose.msra.mxu0 0
      %1147 = vmatprep.subr.bf16.mxu0 0
      %1148 = vmatpush1.bf16.xpose.msra.mxu0 0
      %1149 = vmatprep.subr.bf16.mxu0 0
      %1150 = vmatpush1.bf16.xpose.msra.mxu0 0
      %1151 = vmatprep.subr.bf16.mxu0 0
      %1152 = vmatpush1.bf16.xpose.msra.mxu0 0
      %1153 = vmatprep.subr.bf16.mxu0 0
      %1154 = vmatpush1.bf16.xpose.msra.mxu0 0
      %1155 = vmatprep.subr.bf16.mxu0 0
      %1156 = vmatpush1.bf16.xpose.msra.mxu0 0
      %1157 = vmatprep.subr.bf16.mxu0 0
      %1158 = vmatpush1.bf16.xpose.msra.mxu0 0
      %1159 = vmatprep.subr.bf16.mxu0 0
      %1160 = vmatpush1.bf16.xpose.msra.mxu0 0
      %1161 = vmatprep.mubr.bf16.mxu0 0
      %1162 = vmatmul.mubr.bf16.gmra.mrb[0].mxu0 %v1124
      %v1163 = vpop.f32.mrb[0].mxu0
      %v1164 = vadd.f32 0.0, %v1163
      %v1165 = vpop.f32.mrb[0].mxu0
      %v1166 = vpop.f32.mrb[0].mxu0
      %v1167 = vpop.f32.mrb[0].mxu0
      %1168 = vdwg.mxu0
      %v1169 = vmul.f32 %v1164, 0.35355338
      %v1170 = vsel %vm712, %v1169, -1e+30
      %v1171 = vsel %vm785, %v1170, -inf
      %1172 = vmax.xlane.f32.xlu0 %v1171
      %v1173 = vpop.xlane.xlu0 %1172
      %v1174 = vsub.f32 %v1170, %v1173
      %v1175 = vmul.f32 %v1174, 1.442695
      %v1176 = vpow.pop %v1175
      %v1177 = vsel %vm785, %v1176, 0.0
      %1178 = vadd.xlane.f32.xlu0 %v1177
      %v1179 = vpop.xlane.xlu0 %1178
      %v1180 = vrcp.pop %v1179
      %v1181 = vmul.f32 %v1176, %v1180
      %v1182 = vpack.c.bf16 %v1181, %v1181
      %1183 = vrot.lane.b32.xlu0 %v781, 40
      %v1184 = vpop.permute.xlu0 %1183
      %v1186 = vsel %vm785, %v1182, 0
      %v1189 = vsel %vm851, %v1184, 0
      %1191 = vmatprep.subr.bf16.mxu0 0
      %1192 = vmatpush1.bf16.msra.mxu0 %v1189
      %1193 = vmatprep.subr.bf16.mxu0 0
      %1194 = vmatpush1.bf16.msra.mxu0 0
      %1195 = vmatprep.subr.bf16.mxu0 0
      %1196 = vmatpush1.bf16.msra.mxu0 0
      %1197 = vmatprep.subr.bf16.mxu0 0
      %1198 = vmatpush1.bf16.msra.mxu0 0
      %1199 = vmatprep.subr.bf16.mxu0 0
      %1200 = vmatpush1.bf16.msra.mxu0 0
      %1201 = vmatprep.subr.bf16.mxu0 0
      %1202 = vmatpush1.bf16.msra.mxu0 0
      %1203 = vmatprep.subr.bf16.mxu0 0
      %1204 = vmatpush1.bf16.msra.mxu0 0
      %1205 = vmatprep.subr.bf16.mxu0 0
      %1206 = vmatpush1.bf16.msra.mxu0 0
      %1207 = vmatprep.subr.bf16.mxu0 0
      %1208 = vmatpush1.bf16.msra.mxu0 0
      %1209 = vmatprep.subr.bf16.mxu0 0
      %1210 = vmatpush1.bf16.msra.mxu0 0
      %1211 = vmatprep.subr.bf16.mxu0 0
      %1212 = vmatpush1.bf16.msra.mxu0 0
      %1213 = vmatprep.subr.bf16.mxu0 0
      %1214 = vmatpush1.bf16.msra.mxu0 0
      %1215 = vmatprep.subr.bf16.mxu0 0
      %1216 = vmatpush1.bf16.msra.mxu0 0
      %1217 = vmatprep.subr.bf16.mxu0 0
      %1218 = vmatpush1.bf16.msra.mxu0 0
      %1219 = vmatprep.subr.bf16.mxu0 0
      %1220 = vmatpush1.bf16.msra.mxu0 0
      %1221 = vmatprep.subr.bf16.mxu0 0
      %1222 = vmatpush1.bf16.msra.mxu0 0
      %1223 = vmatprep.mubr.bf16.mxu0 0
      %1224 = vmatmul.mubr.bf16.gmra.mrb[0].mxu0 %v1186
      %v1225 = vpop.f32.mrb[0].mxu0
      %v1226 = vadd.f32 0.0, %v1225
      %v1227 = vpop.f32.mrb[0].mxu0
      %v1228 = vpop.f32.mrb[0].mxu0
      %v1229 = vpop.f32.mrb[0].mxu0
      %1230 = vdwg.mxu0
      %1232 = vrot.lane.b32.xlu0 %v1002, 8
      %v1233 = vpop.permute.xlu0 %1232
      %1236 = vrot.lane.b32.xlu0 %v1114, 16
      %v1237 = vpop.permute.xlu0 %1236
      %1240 = vrot.lane.b32.xlu0 %v1226, 24
      %v1241 = vpop.permute.xlu0 %1240
      %v1243 = vsel %vm785, %v890, %v1233
      %vm1244 = vcmask 130048
      %v1245 = vsel %vm1244, %v1243, %v1237
      %vm1246 = vcmask 195584
      %v1247 = vsel %vm1246, %v1245, %v1241
      %v1248 = vld [vmem:[%s3] sm:$0xf]
      %v1249 = vld [vmem:[%s3 + $0x4] sm:$0xf]
      %v1250 = vld [vmem:[%s3 + $0x8] sm:$0xf]
      %v1251 = vld [vmem:[%s3 + $0xc] sm:$0xf]
      %v1252 = vpack.c.bf16 %v1247, %v1247
      %v1257 = vunpack.c.l.b16 %v1248
      %v1258 = vunpack.c.l.b16 %v1249
      %v1259 = vunpack.c.l.b16 %v1250
      %v1260 = vunpack.c.l.b16 %v1251
      %v1261 = vpack.c.b16 %v1258, %v1257
      %v1262 = vpack.c.b16 %v1260, %v1259
      %v1266 = vsel %vm737, %v1252, 0
      %1268 = vmatprep.subr.bf16.mxu0 0
      %1269 = vmatpush1.bf16.msra.mxu0 %v1261
      %1270 = vmatprep.subr.bf16.mxu0 0
      %1271 = vmatpush1.bf16.msra.mxu0 %v1262
      %1272 = vmatprep.subr.bf16.mxu0 0
      %1273 = vmatpush1.bf16.msra.mxu0 0
      %1274 = vmatprep.subr.bf16.mxu0 0
      %1275 = vmatpush1.bf16.msra.mxu0 0
      %1276 = vmatprep.subr.bf16.mxu0 0
      %1277 = vmatpush1.bf16.msra.mxu0 0
      %1278 = vmatprep.subr.bf16.mxu0 0
      %1279 = vmatpush1.bf16.msra.mxu0 0
      %1280 = vmatprep.subr.bf16.mxu0 0
      %1281 = vmatpush1.bf16.msra.mxu0 0
      %1282 = vmatprep.subr.bf16.mxu0 0
      %1283 = vmatpush1.bf16.msra.mxu0 0
      %1284 = vmatprep.subr.bf16.mxu0 0
      %1285 = vmatpush1.bf16.msra.mxu0 0
      %1286 = vmatprep.subr.bf16.mxu0 0
      %1287 = vmatpush1.bf16.msra.mxu0 0
      %1288 = vmatprep.subr.bf16.mxu0 0
      %1289 = vmatpush1.bf16.msra.mxu0 0
      %1290 = vmatprep.subr.bf16.mxu0 0
      %1291 = vmatpush1.bf16.msra.mxu0 0
      %1292 = vmatprep.subr.bf16.mxu0 0
      %1293 = vmatpush1.bf16.msra.mxu0 0
      %1294 = vmatprep.subr.bf16.mxu0 0
      %1295 = vmatpush1.bf16.msra.mxu0 0
      %1296 = vmatprep.subr.bf16.mxu0 0
      %1297 = vmatpush1.bf16.msra.mxu0 0
      %1298 = vmatprep.subr.bf16.mxu0 0
      %1299 = vmatpush1.bf16.msra.mxu0 0
      %1300 = vmatprep.mubr.bf16.mxu0 0
      %1301 = vmatmul.mubr.bf16.gmra.mrb[0].mxu0 %v1266
      %v1302 = vpop.f32.mrb[0].mxu0
      %v1303 = vadd.f32 0.0, %v1302
      %v1304 = vpop.f32.mrb[0].mxu0
      %v1305 = vpop.f32.mrb[0].mxu0
      %v1306 = vpop.f32.mrb[0].mxu0
      %1307 = vdwg.mxu0
      %v1308 = vadd.f32 %v707, %v1303
      %v1309 = vld [vmem:[%s4] sm:$0x1]
      %v1311 = vlaneseq
      %v1312 = vshrl.u32 %v1311, 7
      %v1313 = vsub.s32 0, %v1312
      %v1314 = vrot.slane %v1309, %v1313
      %v1316 = vadd.f32 %v1308, %v1314
      %v1317 = vld [vmem:[%s5] sm:$0x1]
      %v1318 = vld [vmem:[%s6] sm:$0x1]
      %v1319 = vsel %vm737, %v1316, 0.0
      %1320 = vadd.xlane.f32.xlu0 %v1319
      %v1321 = vpop.xlane.xlu0 %1320
      %v1322 = vrcp.pop 32.0
      %v1323 = vmul.f32 %v1321, %v1322
      %v1324 = vsub.f32 %v1316, %v1323
      %v1325 = vmul.f32 %v1324, %v1324
      %v1326 = vsel %vm737, %v1325, 0.0
      %1327 = vadd.xlane.f32.xlu0 %v1326
      %v1328 = vpop.xlane.xlu0 %1327
      %v1329 = vmul.f32 %v1328, %v1322
      %v1330 = vadd.f32 %v1329, 1e-05
      %v1331 = vrsqrt.pop %v1330
      %v1332 = vmul.f32 %v1324, %v1331
      %v1334 = vlaneseq
      %v1335 = vshrl.u32 %v1334, 7
      %v1336 = vsub.s32 0, %v1335
      %v1337 = vrot.slane %v1317, %v1336
      %v1339 = vmul.f32 %v1332, %v1337
      %v1341 = vlaneseq
      %v1342 = vshrl.u32 %v1341, 7
      %v1343 = vsub.s32 0, %v1342
      %v1344 = vrot.slane %v1318, %v1343
      %v1346 = vadd.f32 %v1339, %v1344
      %v1347 = vld [vmem:[%s7] sm:$0xf]
      %v1348 = vld [vmem:[%s7 + $0x4] sm:$0xf]
      %v1349 = vld [vmem:[%s7 + $0x8] sm:$0xf]
      %v1350 = vld [vmem:[%s7 + $0xc] sm:$0xf]
      %v1351 = vpack.c.bf16 %v1346, %v1346
      %v1352 = vld [vmem:[%s8] sm:$0x1]
      %v1354 = vlaneseq
      %v1355 = vshrl.u32 %v1354, 7
      %v1356 = vsub.s32 0, %v1355
      %v1357 = vrot.slane %v1352, %v1356
      %v1363 = vunpack.c.l.b16 %v1347
      %v1364 = vunpack.c.l.b16 %v1348
      %v1365 = vunpack.c.l.b16 %v1349
      %v1366 = vunpack.c.l.b16 %v1350
      %v1367 = vpack.c.b16 %v1364, %v1363
      %v1368 = vpack.c.b16 %v1366, %v1365
      %v1372 = vsel %vm737, %v1351, 0
      %1374 = vmatprep.subr.bf16.mxu0 0
      %1375 = vmatpush1.bf16.msra.mxu0 %v1367
      %1376 = vmatprep.subr.bf16.mxu0 0
      %1377 = vmatpush1.bf16.msra.mxu0 %v1368
      %1378 = vmatprep.subr.bf16.mxu0 0
      %1379 = vmatpush1.bf16.msra.mxu0 0
      %1380 = vmatprep.subr.bf16.mxu0 0
      %1381 = vmatpush1.bf16.msra.mxu0 0
      %1382 = vmatprep.subr.bf16.mxu0 0
      %1383 = vmatpush1.bf16.msra.mxu0 0
      %1384 = vmatprep.subr.bf16.mxu0 0
      %1385 = vmatpush1.bf16.msra.mxu0 0
      %1386 = vmatprep.subr.bf16.mxu0 0
      %1387 = vmatpush1.bf16.msra.mxu0 0
      %1388 = vmatprep.subr.bf16.mxu0 0
      %1389 = vmatpush1.bf16.msra.mxu0 0
      %1390 = vmatprep.subr.bf16.mxu0 0
      %1391 = vmatpush1.bf16.msra.mxu0 0
      %1392 = vmatprep.subr.bf16.mxu0 0
      %1393 = vmatpush1.bf16.msra.mxu0 0
      %1394 = vmatprep.subr.bf16.mxu0 0
      %1395 = vmatpush1.bf16.msra.mxu0 0
      %1396 = vmatprep.subr.bf16.mxu0 0
      %1397 = vmatpush1.bf16.msra.mxu0 0
      %1398 = vmatprep.subr.bf16.mxu0 0
      %1399 = vmatpush1.bf16.msra.mxu0 0
      %1400 = vmatprep.subr.bf16.mxu0 0
      %1401 = vmatpush1.bf16.msra.mxu0 0
      %1402 = vmatprep.subr.bf16.mxu0 0
      %1403 = vmatpush1.bf16.msra.mxu0 0
      %1404 = vmatprep.subr.bf16.mxu0 0
      %1405 = vmatpush1.bf16.msra.mxu0 0
      %1406 = vmatprep.mubr.bf16.mxu0 0
      %1407 = vmatmul.mubr.bf16.gmra.mrb[0].mxu0 %v1372
      %v1408 = vpop.f32.mrb[0].mxu0
      %v1409 = vadd.f32 %v1357, %v1408
      %v1410 = vpop.f32.mrb[0].mxu0
      %v1411 = vpop.f32.mrb[0].mxu0
      %v1412 = vpop.f32.mrb[0].mxu0
      %1413 = vdwg.mxu0
      %v1414 = vld [vmem:[%s9] sm:$0xf]
      %v1415 = vld [vmem:[%s9 + $0x4] sm:$0xf]
      %v1416 = vld [vmem:[%s9 + $0x8] sm:$0xf]
      %v1417 = vld [vmem:[%s9 + $0xc] sm:$0xf]
      %v1418 = vld [vmem:[%s10] sm:$0x1]
      %v1420 = vlaneseq
      %v1421 = vshrl.u32 %v1420, 7
      %v1422 = vsub.s32 0, %v1421
      %v1423 = vrot.slane %v1418, %v1422
      %v1429 = vunpack.c.l.b16 %v1414
      %v1430 = vunpack.c.l.b16 %v1415
      %v1431 = vunpack.c.l.b16 %v1416
      %v1432 = vunpack.c.l.b16 %v1417
      %v1433 = vpack.c.b16 %v1430, %v1429
      %v1434 = vpack.c.b16 %v1432, %v1431
      %1437 = vmatprep.subr.bf16.mxu0 0
      %1438 = vmatpush1.bf16.msra.mxu0 %v1433
      %1439 = vmatprep.subr.bf16.mxu0 0
      %1440 = vmatpush1.bf16.msra.mxu0 %v1434
      %1441 = vmatprep.subr.bf16.mxu0 0
      %1442 = vmatpush1.bf16.msra.mxu0 0
      %1443 = vmatprep.subr.bf16.mxu0 0
      %1444 = vmatpush1.bf16.msra.mxu0 0
      %1445 = vmatprep.subr.bf16.mxu0 0
      %1446 = vmatpush1.bf16.msra.mxu0 0
      %1447 = vmatprep.subr.bf16.mxu0 0
      %1448 = vmatpush1.bf16.msra.mxu0 0
      %1449 = vmatprep.subr.bf16.mxu0 0
      %1450 = vmatpush1.bf16.msra.mxu0 0
      %1451 = vmatprep.subr.bf16.mxu0 0
      %1452 = vmatpush1.bf16.msra.mxu0 0
      %1453 = vmatprep.subr.bf16.mxu0 0
      %1454 = vmatpush1.bf16.msra.mxu0 0
      %1455 = vmatprep.subr.bf16.mxu0 0
      %1456 = vmatpush1.bf16.msra.mxu0 0
      %1457 = vmatprep.subr.bf16.mxu0 0
      %1458 = vmatpush1.bf16.msra.mxu0 0
      %1459 = vmatprep.subr.bf16.mxu0 0
      %1460 = vmatpush1.bf16.msra.mxu0 0
      %1461 = vmatprep.subr.bf16.mxu0 0
      %1462 = vmatpush1.bf16.msra.mxu0 0
      %1463 = vmatprep.subr.bf16.mxu0 0
      %1464 = vmatpush1.bf16.msra.mxu0 0
      %1465 = vmatprep.subr.bf16.mxu0 0
      %1466 = vmatpush1.bf16.msra.mxu0 0
      %1467 = vmatprep.subr.bf16.mxu0 0
      %1468 = vmatpush1.bf16.msra.mxu0 0
      %1469 = vmatprep.mubr.bf16.mxu0 0
      %1470 = vmatmul.mubr.bf16.gmra.mrb[0].mxu0 %v739
      %v1471 = vpop.f32.mrb[0].mxu0
      %v1472 = vadd.f32 %v1423, %v1471
      %v1473 = vpop.f32.mrb[0].mxu0
      %v1474 = vpop.f32.mrb[0].mxu0
      %v1475 = vpop.f32.mrb[0].mxu0
      %1476 = vdwg.mxu0
      %v1477 = vpack.c.bf16 %v1409, %v1409
      %v1478 = vpack.c.bf16 %v1472, %v1472
      %v1480 = vsel %vm785, %v1477, 0
      %v1483 = vsel %vm785, %v1478, 0
      %1485 = vmatprep.subr.bf16.mxu0 0
      %1486 = vmatpush1.bf16.xpose.msra.mxu0 %v1483
      %1487 = vmatprep.subr.bf16.mxu0 0
      %1488 = vmatpush1.bf16.xpose.msra.mxu0 0
      %1489 = vmatprep.subr.bf16.mxu0 0
      %1490 = vmatpush1.bf16.xpose.msra.mxu0 0
      %1491 = vmatprep.subr.bf16.mxu0 0
      %1492 = vmatpush1.bf16.xpose.msra.mxu0 0
      %1493 = vmatprep.subr.bf16.mxu0 0
      %1494 = vmatpush1.bf16.xpose.msra.mxu0 0
      %1495 = vmatprep.subr.bf16.mxu0 0
      %1496 = vmatpush1.bf16.xpose.msra.mxu0 0
      %1497 = vmatprep.subr.bf16.mxu0 0
      %1498 = vmatpush1.bf16.xpose.msra.mxu0 0
      %1499 = vmatprep.subr.bf16.mxu0 0
      %1500 = vmatpush1.bf16.xpose.msra.mxu0 0
      %1501 = vmatprep.subr.bf16.mxu0 0
      %1502 = vmatpush1.bf16.xpose.msra.mxu0 0
      %1503 = vmatprep.subr.bf16.mxu0 0
      %1504 = vmatpush1.bf16.xpose.msra.mxu0 0
      %1505 = vmatprep.subr.bf16.mxu0 0
      %1506 = vmatpush1.bf16.xpose.msra.mxu0 0
      %1507 = vmatprep.subr.bf16.mxu0 0
      %1508 = vmatpush1.bf16.xpose.msra.mxu0 0
      %1509 = vmatprep.subr.bf16.mxu0 0
      %1510 = vmatpush1.bf16.xpose.msra.mxu0 0
      %1511 = vmatprep.subr.bf16.mxu0 0
      %1512 = vmatpush1.bf16.xpose.msra.mxu0 0
      %1513 = vmatprep.subr.bf16.mxu0 0
      %1514 = vmatpush1.bf16.xpose.msra.mxu0 0
      %1515 = vmatprep.subr.bf16.mxu0 0
      %1516 = vmatpush1.bf16.xpose.msra.mxu0 0
      %1517 = vmatprep.mubr.bf16.mxu0 0
      %1518 = vmatmul.mubr.bf16.gmra.mrb[0].mxu0 %v1480
      %v1519 = vpop.f32.mrb[0].mxu0
      %v1520 = vadd.f32 0.0, %v1519
      %v1521 = vpop.f32.mrb[0].mxu0
      %v1522 = vpop.f32.mrb[0].mxu0
      %v1523 = vpop.f32.mrb[0].mxu0
      %1524 = vdwg.mxu0
      %v1525 = vmul.f32 %v1520, 0.35355338
      %v1526 = vsel %vm785, %v1525, -inf
      %1527 = vmax.xlane.f32.xlu0 %v1526
      %v1528 = vpop.xlane.xlu0 %1527
      %v1529 = vsub.f32 %v1525, %v1528
      %v1530 = vmul.f32 %v1529, 1.442695
      %v1531 = vpow.pop %v1530
      %v1532 = vsel %vm785, %v1531, 0.0
      %1533 = vadd.xlane.f32.xlu0 %v1532
      %v1534 = vpop.xlane.xlu0 %1533
      %v1535 = vrcp.pop %v1534
      %v1536 = vmul.f32 %v1531, %v1535
      %v1537 = vpack.c.bf16 %v1536, %v1536
      %1539 = vrot.lane.b32.xlu0 %v1478, 96
      %v1540 = vpop.permute.xlu0 %1539
      %v1542 = vsel %vm785, %v1537, 0
      %v1545 = vsel %vm851, %v1540, 0
      %1547 = vmatprep.subr.bf16.mxu0 0
      %1548 = vmatpush1.bf16.msra.mxu0 %v1545
      %1549 = vmatprep.subr.bf16.mxu0 0
      %1550 = vmatpush1.bf16.msra.mxu0 0
      %1551 = vmatprep.subr.bf16.mxu0 0
      %1552 = vmatpush1.bf16.msra.mxu0 0
      %1553 = vmatprep.subr.bf16.mxu0 0
      %1554 = vmatpush1.bf16.msra.mxu0 0
      %1555 = vmatprep.subr.bf16.mxu0 0
      %1556 = vmatpush1.bf16.msra.mxu0 0
      %1557 = vmatprep.subr.bf16.mxu0 0
      %1558 = vmatpush1.bf16.msra.mxu0 0
      %1559 = vmatprep.subr.bf16.mxu0 0
      %1560 = vmatpush1.bf16.msra.mxu0 0
      %1561 = vmatprep.subr.bf16.mxu0 0
      %1562 = vmatpush1.bf16.msra.mxu0 0
      %1563 = vmatprep.subr.bf16.mxu0 0
      %1564 = vmatpush1.bf16.msra.mxu0 0
      %1565 = vmatprep.subr.bf16.mxu0 0
      %1566 = vmatpush1.bf16.msra.mxu0 0
      %1567 = vmatprep.subr.bf16.mxu0 0
      %1568 = vmatpush1.bf16.msra.mxu0 0
      %1569 = vmatprep.subr.bf16.mxu0 0
      %1570 = vmatpush1.bf16.msra.mxu0 0
      %1571 = vmatprep.subr.bf16.mxu0 0
      %1572 = vmatpush1.bf16.msra.mxu0 0
      %1573 = vmatprep.subr.bf16.mxu0 0
      %1574 = vmatpush1.bf16.msra.mxu0 0
      %1575 = vmatprep.subr.bf16.mxu0 0
      %1576 = vmatpush1.bf16.msra.mxu0 0
      %1577 = vmatprep.subr.bf16.mxu0 0
      %1578 = vmatpush1.bf16.msra.mxu0 0
      %1579 = vmatprep.mubr.bf16.mxu0 0
      %1580 = vmatmul.mubr.bf16.gmra.mrb[0].mxu0 %v1542
      %v1581 = vpop.f32.mrb[0].mxu0
      %v1582 = vadd.f32 0.0, %v1581
      %v1583 = vpop.f32.mrb[0].mxu0
      %v1584 = vpop.f32.mrb[0].mxu0
      %v1585 = vpop.f32.mrb[0].mxu0
      %1586 = vdwg.mxu0
      %1588 = vrot.lane.b32.xlu0 %v1477, 120
      %v1589 = vpop.permute.xlu0 %1588
      %1590 = vrot.lane.b32.xlu0 %v1478, 120
      %v1591 = vpop.permute.xlu0 %1590
      %v1593 = vsel %vm785, %v1589, 0
      %v1596 = vsel %vm785, %v1591, 0
      %1598 = vmatprep.subr.bf16.mxu0 0
      %1599 = vmatpush1.bf16.xpose.msra.mxu0 %v1596
      %1600 = vmatprep.subr.bf16.mxu0 0
      %1601 = vmatpush1.bf16.xpose.msra.mxu0 0
      %1602 = vmatprep.subr.bf16.mxu0 0
      %1603 = vmatpush1.bf16.xpose.msra.mxu0 0
      %1604 = vmatprep.subr.bf16.mxu0 0
      %1605 = vmatpush1.bf16.xpose.msra.mxu0 0
      %1606 = vmatprep.subr.bf16.mxu0 0
      %1607 = vmatpush1.bf16.xpose.msra.mxu0 0
      %1608 = vmatprep.subr.bf16.mxu0 0
      %1609 = vmatpush1.bf16.xpose.msra.mxu0 0
      %1610 = vmatprep.subr.bf16.mxu0 0
      %1611 = vmatpush1.bf16.xpose.msra.mxu0 0
      %1612 = vmatprep.subr.bf16.mxu0 0
      %1613 = vmatpush1.bf16.xpose.msra.mxu0 0
      %1614 = vmatprep.subr.bf16.mxu0 0
      %1615 = vmatpush1.bf16.xpose.msra.mxu0 0
      %1616 = vmatprep.subr.bf16.mxu0 0
      %1617 = vmatpush1.bf16.xpose.msra.mxu0 0
      %1618 = vmatprep.subr.bf16.mxu0 0
      %1619 = vmatpush1.bf16.xpose.msra.mxu0 0
      %1620 = vmatprep.subr.bf16.mxu0 0
      %1621 = vmatpush1.bf16.xpose.msra.mxu0 0
      %1622 = vmatprep.subr.bf16.mxu0 0
      %1623 = vmatpush1.bf16.xpose.msra.mxu0 0
      %1624 = vmatprep.subr.bf16.mxu0 0
      %1625 = vmatpush1.bf16.xpose.msra.mxu0 0
      %1626 = vmatprep.subr.bf16.mxu0 0
      %1627 = vmatpush1.bf16.xpose.msra.mxu0 0
      %1628 = vmatprep.subr.bf16.mxu0 0
      %1629 = vmatpush1.bf16.xpose.msra.mxu0 0
      %1630 = vmatprep.mubr.bf16.mxu0 0
      %1631 = vmatmul.mubr.bf16.gmra.mrb[0].mxu0 %v1593
      %v1632 = vpop.f32.mrb[0].mxu0
      %v1633 = vadd.f32 0.0, %v1632
      %v1634 = vpop.f32.mrb[0].mxu0
      %v1635 = vpop.f32.mrb[0].mxu0
      %v1636 = vpop.f32.mrb[0].mxu0
      %1637 = vdwg.mxu0
      %v1638 = vmul.f32 %v1633, 0.35355338
      %v1639 = vsel %vm785, %v1638, -inf
      %1640 = vmax.xlane.f32.xlu0 %v1639
      %v1641 = vpop.xlane.xlu0 %1640
      %v1642 = vsub.f32 %v1638, %v1641
      %v1643 = vmul.f32 %v1642, 1.442695
      %v1644 = vpow.pop %v1643
      %v1645 = vsel %vm785, %v1644, 0.0
      %1646 = vadd.xlane.f32.xlu0 %v1645
      %v1647 = vpop.xlane.xlu0 %1646
      %v1648 = vrcp.pop %v1647
      %v1649 = vmul.f32 %v1644, %v1648
      %v1650 = vpack.c.bf16 %v1649, %v1649
      %1651 = vrot.lane.b32.xlu0 %v1478, 88
      %v1652 = vpop.permute.xlu0 %1651
      %v1654 = vsel %vm785, %v1650, 0
      %v1657 = vsel %vm851, %v1652, 0
      %1659 = vmatprep.subr.bf16.mxu0 0
      %1660 = vmatpush1.bf16.msra.mxu0 %v1657
      %1661 = vmatprep.subr.bf16.mxu0 0
      %1662 = vmatpush1.bf16.msra.mxu0 0
      %1663 = vmatprep.subr.bf16.mxu0 0
      %1664 = vmatpush1.bf16.msra.mxu0 0
      %1665 = vmatprep.subr.bf16.mxu0 0
      %1666 = vmatpush1.bf16.msra.mxu0 0
      %1667 = vmatprep.subr.bf16.mxu0 0
      %1668 = vmatpush1.bf16.msra.mxu0 0
      %1669 = vmatprep.subr.bf16.mxu0 0
      %1670 = vmatpush1.bf16.msra.mxu0 0
      %1671 = vmatprep.subr.bf16.mxu0 0
      %1672 = vmatpush1.bf16.msra.mxu0 0
      %1673 = vmatprep.subr.bf16.mxu0 0
      %1674 = vmatpush1.bf16.msra.mxu0 0
      %1675 = vmatprep.subr.bf16.mxu0 0
      %1676 = vmatpush1.bf16.msra.mxu0 0
      %1677 = vmatprep.subr.bf16.mxu0 0
      %1678 = vmatpush1.bf16.msra.mxu0 0
      %1679 = vmatprep.subr.bf16.mxu0 0
      %1680 = vmatpush1.bf16.msra.mxu0 0
      %1681 = vmatprep.subr.bf16.mxu0 0
      %1682 = vmatpush1.bf16.msra.mxu0 0
      %1683 = vmatprep.subr.bf16.mxu0 0
      %1684 = vmatpush1.bf16.msra.mxu0 0
      %1685 = vmatprep.subr.bf16.mxu0 0
      %1686 = vmatpush1.bf16.msra.mxu0 0
      %1687 = vmatprep.subr.bf16.mxu0 0
      %1688 = vmatpush1.bf16.msra.mxu0 0
      %1689 = vmatprep.subr.bf16.mxu0 0
      %1690 = vmatpush1.bf16.msra.mxu0 0
      %1691 = vmatprep.mubr.bf16.mxu0 0
      %1692 = vmatmul.mubr.bf16.gmra.mrb[0].mxu0 %v1654
      %v1693 = vpop.f32.mrb[0].mxu0
      %v1694 = vadd.f32 0.0, %v1693
      %v1695 = vpop.f32.mrb[0].mxu0
      %v1696 = vpop.f32.mrb[0].mxu0
      %v1697 = vpop.f32.mrb[0].mxu0
      %1698 = vdwg.mxu0
      %1699 = vrot.lane.b32.xlu0 %v1477, 112
      %v1700 = vpop.permute.xlu0 %1699
      %1701 = vrot.lane.b32.xlu0 %v1478, 112
      %v1702 = vpop.permute.xlu0 %1701
      %v1704 = vsel %vm785, %v1700, 0
      %v1707 = vsel %vm785, %v1702, 0
      %1709 = vmatprep.subr.bf16.mxu0 0
      %1710 = vmatpush1.bf16.xpose.msra.mxu0 %v1707
      %1711 = vmatprep.subr.bf16.mxu0 0
      %1712 = vmatpush1.bf16.xpose.msra.mxu0 0
      %1713 = vmatprep.subr.bf16.mxu0 0
      %1714 = vmatpush1.bf16.xpose.msra.mxu0 0
      %1715 = vmatprep.subr.bf16.mxu0 0
      %1716 = vmatpush1.bf16.xpose.msra.mxu0 0
      %1717 = vmatprep.subr.bf16.mxu0 0
      %1718 = vmatpush1.bf16.xpose.msra.mxu0 0
      %1719 = vmatprep.subr.bf16.mxu0 0
      %1720 = vmatpush1.bf16.xpose.msra.mxu0 0
      %1721 = vmatprep.subr.bf16.mxu0 0
      %1722 = vmatpush1.bf16.xpose.msra.mxu0 0
      %1723 = vmatprep.subr.bf16.mxu0 0
      %1724 = vmatpush1.bf16.xpose.msra.mxu0 0
      %1725 = vmatprep.subr.bf16.mxu0 0
      %1726 = vmatpush1.bf16.xpose.msra.mxu0 0
      %1727 = vmatprep.subr.bf16.mxu0 0
      %1728 = vmatpush1.bf16.xpose.msra.mxu0 0
      %1729 = vmatprep.subr.bf16.mxu0 0
      %1730 = vmatpush1.bf16.xpose.msra.mxu0 0
      %1731 = vmatprep.subr.bf16.mxu0 0
      %1732 = vmatpush1.bf16.xpose.msra.mxu0 0
      %1733 = vmatprep.subr.bf16.mxu0 0
      %1734 = vmatpush1.bf16.xpose.msra.mxu0 0
      %1735 = vmatprep.subr.bf16.mxu0 0
      %1736 = vmatpush1.bf16.xpose.msra.mxu0 0
      %1737 = vmatprep.subr.bf16.mxu0 0
      %1738 = vmatpush1.bf16.xpose.msra.mxu0 0
      %1739 = vmatprep.subr.bf16.mxu0 0
      %1740 = vmatpush1.bf16.xpose.msra.mxu0 0
      %1741 = vmatprep.mubr.bf16.mxu0 0
      %1742 = vmatmul.mubr.bf16.gmra.mrb[0].mxu0 %v1704
      %v1743 = vpop.f32.mrb[0].mxu0
      %v1744 = vadd.f32 0.0, %v1743
      %v1745 = vpop.f32.mrb[0].mxu0
      %v1746 = vpop.f32.mrb[0].mxu0
      %v1747 = vpop.f32.mrb[0].mxu0
      %1748 = vdwg.mxu0
      %v1749 = vmul.f32 %v1744, 0.35355338
      %v1750 = vsel %vm785, %v1749, -inf
      %1751 = vmax.xlane.f32.xlu0 %v1750
      %v1752 = vpop.xlane.xlu0 %1751
      %v1753 = vsub.f32 %v1749, %v1752
      %v1754 = vmul.f32 %v1753, 1.442695
      %v1755 = vpow.pop %v1754
      %v1756 = vsel %vm785, %v1755, 0.0
      %1757 = vadd.xlane.f32.xlu0 %v1756
      %v1758 = vpop.xlane.xlu0 %1757
      %v1759 = vrcp.pop %v1758
      %v1760 = vmul.f32 %v1755, %v1759
      %v1761 = vpack.c.bf16 %v1760, %v1760
      %1762 = vrot.lane.b32.xlu0 %v1478, 80
      %v1763 = vpop.permute.xlu0 %1762
      %v1765 = vsel %vm785, %v1761, 0
      %v1768 = vsel %vm851, %v1763, 0
      %1770 = vmatprep.subr.bf16.mxu0 0
      %1771 = vmatpush1.bf16.msra.mxu0 %v1768
      %1772 = vmatprep.subr.bf16.mxu0 0
      %1773 = vmatpush1.bf16.msra.mxu0 0
      %1774 = vmatprep.subr.bf16.mxu0 0
      %1775 = vmatpush1.bf16.msra.mxu0 0
      %1776 = vmatprep.subr.bf16.mxu0 0
      %1777 = vmatpush1.bf16.msra.mxu0 0
      %1778 = vmatprep.subr.bf16.mxu0 0
      %1779 = vmatpush1.bf16.msra.mxu0 0
      %1780 = vmatprep.subr.bf16.mxu0 0
      %1781 = vmatpush1.bf16.msra.mxu0 0
      %1782 = vmatprep.subr.bf16.mxu0 0
      %1783 = vmatpush1.bf16.msra.mxu0 0
      %1784 = vmatprep.subr.bf16.mxu0 0
      %1785 = vmatpush1.bf16.msra.mxu0 0
      %1786 = vmatprep.subr.bf16.mxu0 0
      %1787 = vmatpush1.bf16.msra.mxu0 0
      %1788 = vmatprep.subr.bf16.mxu0 0
      %1789 = vmatpush1.bf16.msra.mxu0 0
      %1790 = vmatprep.subr.bf16.mxu0 0
      %1791 = vmatpush1.bf16.msra.mxu0 0
      %1792 = vmatprep.subr.bf16.mxu0 0
      %1793 = vmatpush1.bf16.msra.mxu0 0
      %1794 = vmatprep.subr.bf16.mxu0 0
      %1795 = vmatpush1.bf16.msra.mxu0 0
      %1796 = vmatprep.subr.bf16.mxu0 0
      %1797 = vmatpush1.bf16.msra.mxu0 0
      %1798 = vmatprep.subr.bf16.mxu0 0
      %1799 = vmatpush1.bf16.msra.mxu0 0
      %1800 = vmatprep.subr.bf16.mxu0 0
      %1801 = vmatpush1.bf16.msra.mxu0 0
      %1802 = vmatprep.mubr.bf16.mxu0 0
      %1803 = vmatmul.mubr.bf16.gmra.mrb[0].mxu0 %v1765
      %v1804 = vpop.f32.mrb[0].mxu0
      %v1805 = vadd.f32 0.0, %v1804
      %v1806 = vpop.f32.mrb[0].mxu0
      %v1807 = vpop.f32.mrb[0].mxu0
      %v1808 = vpop.f32.mrb[0].mxu0
      %1809 = vdwg.mxu0
      %1810 = vrot.lane.b32.xlu0 %v1477, 104
      %v1811 = vpop.permute.xlu0 %1810
      %1812 = vrot.lane.b32.xlu0 %v1478, 104
      %v1813 = vpop.permute.xlu0 %1812
      %v1815 = vsel %vm785, %v1811, 0
      %v1818 = vsel %vm785, %v1813, 0
      %1820 = vmatprep.subr.bf16.mxu0 0
      %1821 = vmatpush1.bf16.xpose.msra.mxu0 %v1818
      %1822 = vmatprep.subr.bf16.mxu0 0
      %1823 = vmatpush1.bf16.xpose.msra.mxu0 0
      %1824 = vmatprep.subr.bf16.mxu0 0
      %1825 = vmatpush1.bf16.xpose.msra.mxu0 0
      %1826 = vmatprep.subr.bf16.mxu0 0
      %1827 = vmatpush1.bf16.xpose.msra.mxu0 0
      %1828 = vmatprep.subr.bf16.mxu0 0
      %1829 = vmatpush1.bf16.xpose.msra.mxu0 0
      %1830 = vmatprep.subr.bf16.mxu0 0
      %1831 = vmatpush1.bf16.xpose.msra.mxu0 0
      %1832 = vmatprep.subr.bf16.mxu0 0
      %1833 = vmatpush1.bf16.xpose.msra.mxu0 0
      %1834 = vmatprep.subr.bf16.mxu0 0
      %1835 = vmatpush1.bf16.xpose.msra.mxu0 0
      %1836 = vmatprep.subr.bf16.mxu0 0
      %1837 = vmatpush1.bf16.xpose.msra.mxu0 0
      %1838 = vmatprep.subr.bf16.mxu0 0
      %1839 = vmatpush1.bf16.xpose.msra.mxu0 0
      %1840 = vmatprep.subr.bf16.mxu0 0
      %1841 = vmatpush1.bf16.xpose.msra.mxu0 0
      %1842 = vmatprep.subr.bf16.mxu0 0
      %1843 = vmatpush1.bf16.xpose.msra.mxu0 0
      %1844 = vmatprep.subr.bf16.mxu0 0
      %1845 = vmatpush1.bf16.xpose.msra.mxu0 0
      %1846 = vmatprep.subr.bf16.mxu0 0
      %1847 = vmatpush1.bf16.xpose.msra.mxu0 0
      %1848 = vmatprep.subr.bf16.mxu0 0
      %1849 = vmatpush1.bf16.xpose.msra.mxu0 0
      %1850 = vmatprep.subr.bf16.mxu0 0
      %1851 = vmatpush1.bf16.xpose.msra.mxu0 0
      %1852 = vmatprep.mubr.bf16.mxu0 0
      %1853 = vmatmul.mubr.bf16.gmra.mrb[0].mxu0 %v1815
      %v1854 = vpop.f32.mrb[0].mxu0
      %v1855 = vadd.f32 0.0, %v1854
      %v1856 = vpop.f32.mrb[0].mxu0
      %v1857 = vpop.f32.mrb[0].mxu0
      %v1858 = vpop.f32.mrb[0].mxu0
      %1859 = vdwg.mxu0
      %v1860 = vmul.f32 %v1855, 0.35355338
      %v1861 = vsel %vm785, %v1860, -inf
      %1862 = vmax.xlane.f32.xlu0 %v1861
      %v1863 = vpop.xlane.xlu0 %1862
      %v1864 = vsub.f32 %v1860, %v1863
      %v1865 = vmul.f32 %v1864, 1.442695
      %v1866 = vpow.pop %v1865
      %v1867 = vsel %vm785, %v1866, 0.0
      %1868 = vadd.xlane.f32.xlu0 %v1867
      %v1869 = vpop.xlane.xlu0 %1868
      %v1870 = vrcp.pop %v1869
      %v1871 = vmul.f32 %v1866, %v1870
      %v1872 = vpack.c.bf16 %v1871, %v1871
      %1873 = vrot.lane.b32.xlu0 %v1478, 72
      %v1874 = vpop.permute.xlu0 %1873
      %v1876 = vsel %vm785, %v1872, 0
      %v1879 = vsel %vm851, %v1874, 0
      %1881 = vmatprep.subr.bf16.mxu0 0
      %1882 = vmatpush1.bf16.msra.mxu0 %v1879
      %1883 = vmatprep.subr.bf16.mxu0 0
      %1884 = vmatpush1.bf16.msra.mxu0 0
      %1885 = vmatprep.subr.bf16.mxu0 0
      %1886 = vmatpush1.bf16.msra.mxu0 0
      %1887 = vmatprep.subr.bf16.mxu0 0
      %1888 = vmatpush1.bf16.msra.mxu0 0
      %1889 = vmatprep.subr.bf16.mxu0 0
      %1890 = vmatpush1.bf16.msra.mxu0 0
      %1891 = vmatprep.subr.bf16.mxu0 0
      %1892 = vmatpush1.bf16.msra.mxu0 0
      %1893 = vmatprep.subr.bf16.mxu0 0
      %1894 = vmatpush1.bf16.msra.mxu0 0
      %1895 = vmatprep.subr.bf16.mxu0 0
      %1896 = vmatpush1.bf16.msra.mxu0 0
      %1897 = vmatprep.subr.bf16.mxu0 0
      %1898 = vmatpush1.bf16.msra.mxu0 0
      %1899 = vmatprep.subr.bf16.mxu0 0
      %1900 = vmatpush1.bf16.msra.mxu0 0
      %1901 = vmatprep.subr.bf16.mxu0 0
      %1902 = vmatpush1.bf16.msra.mxu0 0
      %1903 = vmatprep.subr.bf16.mxu0 0
      %1904 = vmatpush1.bf16.msra.mxu0 0
      %1905 = vmatprep.subr.bf16.mxu0 0
      %1906 = vmatpush1.bf16.msra.mxu0 0
      %1907 = vmatprep.subr.bf16.mxu0 0
      %1908 = vmatpush1.bf16.msra.mxu0 0
      %1909 = vmatprep.subr.bf16.mxu0 0
      %1910 = vmatpush1.bf16.msra.mxu0 0
      %1911 = vmatprep.subr.bf16.mxu0 0
      %1912 = vmatpush1.bf16.msra.mxu0 0
      %1913 = vmatprep.mubr.bf16.mxu0 0
      %1914 = vmatmul.mubr.bf16.gmra.mrb[0].mxu0 %v1876
      %v1915 = vpop.f32.mrb[0].mxu0
      %v1916 = vadd.f32 0.0, %v1915
      %v1917 = vpop.f32.mrb[0].mxu0
      %v1918 = vpop.f32.mrb[0].mxu0
      %v1919 = vpop.f32.mrb[0].mxu0
      %1920 = vdwg.mxu0
      %1922 = vrot.lane.b32.xlu0 %v1694, 8
      %v1923 = vpop.permute.xlu0 %1922
      %1926 = vrot.lane.b32.xlu0 %v1805, 16
      %v1927 = vpop.permute.xlu0 %1926
      %1930 = vrot.lane.b32.xlu0 %v1916, 24
      %v1931 = vpop.permute.xlu0 %1930
      %v1933 = vsel %vm785, %v1582, %v1923
      %v1934 = vsel %vm1244, %v1933, %v1927
      %v1935 = vsel %vm1246, %v1934, %v1931
      %v1936 = vld [vmem:[%s11] sm:$0xf]
      %v1937 = vld [vmem:[%s11 + $0x4] sm:$0xf]
      %v1938 = vld [vmem:[%s11 + $0x8] sm:$0xf]
      %v1939 = vld [vmem:[%s11 + $0xc] sm:$0xf]
      %v1940 = vpack.c.bf16 %v1935, %v1935
      %v1945 = vunpack.c.l.b16 %v1936
      %v1946 = vunpack.c.l.b16 %v1937
      %v1947 = vunpack.c.l.b16 %v1938
      %v1948 = vunpack.c.l.b16 %v1939
      %v1949 = vpack.c.b16 %v1946, %v1945
      %v1950 = vpack.c.b16 %v1948, %v1947
      %v1954 = vsel %vm737, %v1940, 0
      %1956 = vmatprep.subr.bf16.mxu0 0
      %1957 = vmatpush1.bf16.msra.mxu0 %v1949
      %1958 = vmatprep.subr.bf16.mxu0 0
      %1959 = vmatpush1.bf16.msra.mxu0 %v1950
      %1960 = vmatprep.subr.bf16.mxu0 0
      %1961 = vmatpush1.bf16.msra.mxu0 0
      %1962 = vmatprep.subr.bf16.mxu0 0
      %1963 = vmatpush1.bf16.msra.mxu0 0
      %1964 = vmatprep.subr.bf16.mxu0 0
      %1965 = vmatpush1.bf16.msra.mxu0 0
      %1966 = vmatprep.subr.bf16.mxu0 0
      %1967 = vmatpush1.bf16.msra.mxu0 0
      %1968 = vmatprep.subr.bf16.mxu0 0
      %1969 = vmatpush1.bf16.msra.mxu0 0
      %1970 = vmatprep.subr.bf16.mxu0 0
      %1971 = vmatpush1.bf16.msra.mxu0 0
      %1972 = vmatprep.subr.bf16.mxu0 0
      %1973 = vmatpush1.bf16.msra.mxu0 0
      %1974 = vmatprep.subr.bf16.mxu0 0
      %1975 = vmatpush1.bf16.msra.mxu0 0
      %1976 = vmatprep.subr.bf16.mxu0 0
      %1977 = vmatpush1.bf16.msra.mxu0 0
      %1978 = vmatprep.subr.bf16.mxu0 0
      %1979 = vmatpush1.bf16.msra.mxu0 0
      %1980 = vmatprep.subr.bf16.mxu0 0
      %1981 = vmatpush1.bf16.msra.mxu0 0
      %1982 = vmatprep.subr.bf16.mxu0 0
      %1983 = vmatpush1.bf16.msra.mxu0 0
      %1984 = vmatprep.subr.bf16.mxu0 0
      %1985 = vmatpush1.bf16.msra.mxu0 0
      %1986 = vmatprep.subr.bf16.mxu0 0
      %1987 = vmatpush1.bf16.msra.mxu0 0
      %1988 = vmatprep.mubr.bf16.mxu0 0
      %1989 = vmatmul.mubr.bf16.gmra.mrb[0].mxu0 %v1954
      %v1990 = vpop.f32.mrb[0].mxu0
      %v1991 = vadd.f32 0.0, %v1990
      %v1992 = vpop.f32.mrb[0].mxu0
      %v1993 = vpop.f32.mrb[0].mxu0
      %v1994 = vpop.f32.mrb[0].mxu0
      %1995 = vdwg.mxu0
      %v1996 = vadd.f32 %v1346, %v1991
      %v1997 = vld [vmem:[%s12] sm:$0x1]
      %v1999 = vlaneseq
      %v2000 = vshrl.u32 %v1999, 7
      %v2001 = vsub.s32 0, %v2000
      %v2002 = vrot.slane %v1997, %v2001
      %v2004 = vadd.f32 %v1996, %v2002
      %v2005 = vld [vmem:[%s13] sm:$0x1]
      %v2006 = vld [vmem:[%s14] sm:$0x1]
      %v2007 = vsel %vm737, %v2004, 0.0
      %2008 = vadd.xlane.f32.xlu0 %v2007
      %v2009 = vpop.xlane.xlu0 %2008
      %v2010 = vmul.f32 %v2009, %v1322
      %v2011 = vsub.f32 %v2004, %v2010
      %v2012 = vmul.f32 %v2011, %v2011
      %v2013 = vsel %vm737, %v2012, 0.0
      %2014 = vadd.xlane.f32.xlu0 %v2013
      %v2015 = vpop.xlane.xlu0 %2014
      %v2016 = vmul.f32 %v2015, %v1322
      %v2017 = vadd.f32 %v2016, 1e-05
      %v2018 = vrsqrt.pop %v2017
      %v2019 = vmul.f32 %v2011, %v2018
      %v2021 = vlaneseq
      %v2022 = vshrl.u32 %v2021, 7
      %v2023 = vsub.s32 0, %v2022
      %v2024 = vrot.slane %v2005, %v2023
      %v2026 = vmul.f32 %v2019, %v2024
      %v2028 = vlaneseq
      %v2029 = vshrl.u32 %v2028, 7
      %v2030 = vsub.s32 0, %v2029
      %v2031 = vrot.slane %v2006, %v2030
      %v2033 = vadd.f32 %v2026, %v2031
      %v2034 = vld [vmem:[%s15] sm:$0xf]
      %v2035 = vld [vmem:[%s15 + $0x4] sm:$0xf]
      %v2036 = vld [vmem:[%s15 + $0x8] sm:$0xf]
      %v2037 = vld [vmem:[%s15 + $0xc] sm:$0xf]
      %v2038 = vpack.c.bf16 %v2033, %v2033
      %v2039 = vld [vmem:[%s16] sm:$0x1]
      %v2041 = vlaneseq
      %v2042 = vshrl.u32 %v2041, 7
      %v2043 = vsub.s32 0, %v2042
      %v2044 = vrot.slane %v2039, %v2043
      %v2050 = vunpack.c.l.b16 %v2034
      %v2051 = vunpack.c.l.b16 %v2035
      %v2052 = vunpack.c.l.b16 %v2036
      %v2053 = vunpack.c.l.b16 %v2037
      %v2054 = vpack.c.b16 %v2051, %v2050
      %v2055 = vpack.c.b16 %v2053, %v2052
      %v2059 = vsel %vm737, %v2038, 0
      %2061 = vmatprep.subr.bf16.mxu0 0
      %2062 = vmatpush1.bf16.msra.mxu0 %v2054
      %2063 = vmatprep.subr.bf16.mxu0 0
      %2064 = vmatpush1.bf16.msra.mxu0 %v2055
      %2065 = vmatprep.subr.bf16.mxu0 0
      %2066 = vmatpush1.bf16.msra.mxu0 0
      %2067 = vmatprep.subr.bf16.mxu0 0
      %2068 = vmatpush1.bf16.msra.mxu0 0
      %2069 = vmatprep.subr.bf16.mxu0 0
      %2070 = vmatpush1.bf16.msra.mxu0 0
      %2071 = vmatprep.subr.bf16.mxu0 0
      %2072 = vmatpush1.bf16.msra.mxu0 0
      %2073 = vmatprep.subr.bf16.mxu0 0
      %2074 = vmatpush1.bf16.msra.mxu0 0
      %2075 = vmatprep.subr.bf16.mxu0 0
      %2076 = vmatpush1.bf16.msra.mxu0 0
      %2077 = vmatprep.subr.bf16.mxu0 0
      %2078 = vmatpush1.bf16.msra.mxu0 0
      %2079 = vmatprep.subr.bf16.mxu0 0
      %2080 = vmatpush1.bf16.msra.mxu0 0
      %2081 = vmatprep.subr.bf16.mxu0 0
      %2082 = vmatpush1.bf16.msra.mxu0 0
      %2083 = vmatprep.subr.bf16.mxu0 0
      %2084 = vmatpush1.bf16.msra.mxu0 0
      %2085 = vmatprep.subr.bf16.mxu0 0
      %2086 = vmatpush1.bf16.msra.mxu0 0
      %2087 = vmatprep.subr.bf16.mxu0 0
      %2088 = vmatpush1.bf16.msra.mxu0 0
      %2089 = vmatprep.subr.bf16.mxu0 0
      %2090 = vmatpush1.bf16.msra.mxu0 0
      %2091 = vmatprep.subr.bf16.mxu0 0
      %2092 = vmatpush1.bf16.msra.mxu0 0
      %2093 = vmatprep.mubr.bf16.mxu0 0
      %2094 = vmatmul.mubr.bf16.gmra.mrb[0].mxu0 %v2059
      %v2095 = vpop.f32.mrb[0].mxu0
      %v2096 = vadd.f32 %v2044, %v2095
      %v2097 = vpop.f32.mrb[0].mxu0
      %v2098 = vpop.f32.mrb[0].mxu0
      %v2099 = vpop.f32.mrb[0].mxu0
      %2100 = vdwg.mxu0
      %v2101 = vmax.f32 %v2096, 0.0
      %v2102 = vld [vmem:[%s17] sm:$0xf]
      %v2103 = vld [vmem:[%s17 + $0x4] sm:$0xf]
      %v2104 = vld [vmem:[%s17 + $0x8] sm:$0xf]
      %v2105 = vld [vmem:[%s17 + $0xc] sm:$0xf]
      %v2106 = vld [vmem:[%s17 + $0x10] sm:$0xf]
      %v2107 = vld [vmem:[%s17 + $0x14] sm:$0xf]
      %v2108 = vld [vmem:[%s17 + $0x18] sm:$0xf]
      %v2109 = vld [vmem:[%s17 + $0x1c] sm:$0xf]
      %v2110 = vpack.c.bf16 %v2101, %v2101
      %v2119 = vunpack.c.l.b16 %v2102
      %v2120 = vunpack.c.l.b16 %v2103
      %v2121 = vunpack.c.l.b16 %v2104
      %v2122 = vunpack.c.l.b16 %v2105
      %v2123 = vunpack.c.l.b16 %v2106
      %v2124 = vunpack.c.l.b16 %v2107
      %v2125 = vunpack.c.l.b16 %v2108
      %v2126 = vunpack.c.l.b16 %v2109
      %v2127 = vpack.c.b16 %v2120, %v2119
      %v2128 = vpack.c.b16 %v2122, %v2121
      %v2129 = vpack.c.b16 %v2124, %v2123
      %v2130 = vpack.c.b16 %v2126, %v2125
      %vm2135 = vcmask 523264
      %v2137 = vsel %vm2135, %v2110, 0
      %2139 = vmatprep.subr.bf16.mxu0 0
      %2140 = vmatpush1.bf16.msra.mxu0 %v2127
      %2141 = vmatprep.subr.bf16.mxu0 0
      %2142 = vmatpush1.bf16.msra.mxu0 %v2128
      %2143 = vmatprep.subr.bf16.mxu0 0
      %2144 = vmatpush1.bf16.msra.mxu0 %v2129
      %2145 = vmatprep.subr.bf16.mxu0 0
      %2146 = vmatpush1.bf16.msra.mxu0 %v2130
      %2147 = vmatprep.subr.bf16.mxu0 0
      %2148 = vmatpush1.bf16.msra.mxu0 0
      %2149 = vmatprep.subr.bf16.mxu0 0
      %2150 = vmatpush1.bf16.msra.mxu0 0
      %2151 = vmatprep.subr.bf16.mxu0 0
      %2152 = vmatpush1.bf16.msra.mxu0 0
      %2153 = vmatprep.subr.bf16.mxu0 0
      %2154 = vmatpush1.bf16.msra.mxu0 0
      %2155 = vmatprep.subr.bf16.mxu0 0
      %2156 = vmatpush1.bf16.msra.mxu0 0
      %2157 = vmatprep.subr.bf16.mxu0 0
      %2158 = vmatpush1.bf16.msra.mxu0 0
      %2159 = vmatprep.subr.bf16.mxu0 0
      %2160 = vmatpush1.bf16.msra.mxu0 0
      %2161 = vmatprep.subr.bf16.mxu0 0
      %2162 = vmatpush1.bf16.msra.mxu0 0
      %2163 = vmatprep.subr.bf16.mxu0 0
      %2164 = vmatpush1.bf16.msra.mxu0 0
      %2165 = vmatprep.subr.bf16.mxu0 0
      %2166 = vmatpush1.bf16.msra.mxu0 0
      %2167 = vmatprep.subr.bf16.mxu0 0
      %2168 = vmatpush1.bf16.msra.mxu0 0
      %2169 = vmatprep.subr.bf16.mxu0 0
      %2170 = vmatpush1.bf16.msra.mxu0 0
      %2171 = vmatprep.mubr.bf16.mxu0 0
      %2172 = vmatmul.mubr.bf16.gmra.mrb[0].mxu0 %v2137
      %v2173 = vpop.f32.mrb[0].mxu0
      %v2174 = vadd.f32 0.0, %v2173
      %v2175 = vpop.f32.mrb[0].mxu0
      %v2176 = vpop.f32.mrb[0].mxu0
      %v2177 = vpop.f32.mrb[0].mxu0
      %2178 = vdwg.mxu0
      %v2179 = vadd.f32 %v2033, %v2174
      %v2180 = vld [vmem:[%s18] sm:$0x1]
      %v2182 = vlaneseq
      %v2183 = vshrl.u32 %v2182, 7
      %v2184 = vsub.s32 0, %v2183
      %v2185 = vrot.slane %v2180, %v2184
      %v2187 = vadd.f32 %v2179, %v2185
      %v2188 = vld [vmem:[%s19] sm:$0x1]
      %v2189 = vld [vmem:[%s20] sm:$0x1]
      %v2190 = vsel %vm737, %v2187, 0.0
      %2191 = vadd.xlane.f32.xlu0 %v2190
      %v2192 = vpop.xlane.xlu0 %2191
      %v2193 = vmul.f32 %v2192, %v1322
      %v2194 = vsub.f32 %v2187, %v2193
      %v2195 = vmul.f32 %v2194, %v2194
      %v2196 = vsel %vm737, %v2195, 0.0
      %2197 = vadd.xlane.f32.xlu0 %v2196
      %v2198 = vpop.xlane.xlu0 %2197
      %v2199 = vmul.f32 %v2198, %v1322
      %v2200 = vadd.f32 %v2199, 1e-05
      %v2201 = vrsqrt.pop %v2200
      %v2202 = vmul.f32 %v2194, %v2201
      %v2204 = vlaneseq
      %v2205 = vshrl.u32 %v2204, 7
      %v2206 = vsub.s32 0, %v2205
      %v2207 = vrot.slane %v2188, %v2206
      %v2209 = vmul.f32 %v2202, %v2207
      %v2211 = vlaneseq
      %v2212 = vshrl.u32 %v2211, 7
      %v2213 = vsub.s32 0, %v2212
      %v2214 = vrot.slane %v2189, %v2213
      %v2216 = vadd.f32 %v2209, %v2214
      %s2217 = scalar_lea.vmem %s1, 16
      %v2218 = vld [vmem:[%s2217] sm:$0xf]
      %v2219 = vld [vmem:[%s2217 + $0x4] sm:$0xf]
      %v2220 = vld [vmem:[%s2217 + $0x8] sm:$0xf]
      %v2221 = vld [vmem:[%s2217 + $0xc] sm:$0xf]
      %v2222 = vpack.c.bf16 %v2216, %v2216
      %s2223 = scalar_lea.vmem %s2, 1
      %v2224 = vld [vmem:[%s2223] sm:$0x1]
      %v2226 = vlaneseq
      %v2227 = vshrl.u32 %v2226, 7
      %v2228 = vsub.s32 0, %v2227
      %v2229 = vrot.slane %v2224, %v2228
      %v2235 = vunpack.c.l.b16 %v2218
      %v2236 = vunpack.c.l.b16 %v2219
      %v2237 = vunpack.c.l.b16 %v2220
      %v2238 = vunpack.c.l.b16 %v2221
      %v2239 = vpack.c.b16 %v2236, %v2235
      %v2240 = vpack.c.b16 %v2238, %v2237
      %v2244 = vsel %vm737, %v2222, 0
      %2246 = vmatprep.subr.bf16.mxu0 0
      %2247 = vmatpush1.bf16.msra.mxu0 %v2239
      %2248 = vmatprep.subr.bf16.mxu0 0
      %2249 = vmatpush1.bf16.msra.mxu0 %v2240
      %2250 = vmatprep.subr.bf16.mxu0 0
      %2251 = vmatpush1.bf16.msra.mxu0 0
      %2252 = vmatprep.subr.bf16.mxu0 0
      %2253 = vmatpush1.bf16.msra.mxu0 0
      %2254 = vmatprep.subr.bf16.mxu0 0
      %2255 = vmatpush1.bf16.msra.mxu0 0
      %2256 = vmatprep.subr.bf16.mxu0 0
      %2257 = vmatpush1.bf16.msra.mxu0 0
      %2258 = vmatprep.subr.bf16.mxu0 0
      %2259 = vmatpush1.bf16.msra.mxu0 0
      %2260 = vmatprep.subr.bf16.mxu0 0
      %2261 = vmatpush1.bf16.msra.mxu0 0
      %2262 = vmatprep.subr.bf16.mxu0 0
      %2263 = vmatpush1.bf16.msra.mxu0 0
      %2264 = vmatprep.subr.bf16.mxu0 0
      %2265 = vmatpush1.bf16.msra.mxu0 0
      %2266 = vmatprep.subr.bf16.mxu0 0
      %2267 = vmatpush1.bf16.msra.mxu0 0
      %2268 = vmatprep.subr.bf16.mxu0 0
      %2269 = vmatpush1.bf16.msra.mxu0 0
      %2270 = vmatprep.subr.bf16.mxu0 0
      %2271 = vmatpush1.bf16.msra.mxu0 0
      %2272 = vmatprep.subr.bf16.mxu0 0
      %2273 = vmatpush1.bf16.msra.mxu0 0
      %2274 = vmatprep.subr.bf16.mxu0 0
      %2275 = vmatpush1.bf16.msra.mxu0 0
      %2276 = vmatprep.subr.bf16.mxu0 0
      %2277 = vmatpush1.bf16.msra.mxu0 0
      %2278 = vmatprep.mubr.bf16.mxu0 0
      %2279 = vmatmul.mubr.bf16.gmra.mrb[0].mxu0 %v2244
      %v2280 = vpop.f32.mrb[0].mxu0
      %v2281 = vadd.f32 %v2229, %v2280
      %v2282 = vpop.f32.mrb[0].mxu0
      %v2283 = vpop.f32.mrb[0].mxu0
      %v2284 = vpop.f32.mrb[0].mxu0
      %2285 = vdwg.mxu0
      %v2286 = vpack.c.bf16 %v2281, %v2281
      %2288 = vrot.lane.b32.xlu0 %v2286, 96
      %v2289 = vpop.permute.xlu0 %2288
      %v2291 = vsel %vm785, %v2286, 0
      %v2294 = vsel %vm785, %v2289, 0
      %2296 = vmatprep.subr.bf16.mxu0 0
      %2297 = vmatpush1.bf16.xpose.msra.mxu0 %v2294
      %2298 = vmatprep.subr.bf16.mxu0 0
      %2299 = vmatpush1.bf16.xpose.msra.mxu0 0
      %2300 = vmatprep.subr.bf16.mxu0 0
      %2301 = vmatpush1.bf16.xpose.msra.mxu0 0
      %2302 = vmatprep.subr.bf16.mxu0 0
      %2303 = vmatpush1.bf16.xpose.msra.mxu0 0
      %2304 = vmatprep.subr.bf16.mxu0 0
      %2305 = vmatpush1.bf16.xpose.msra.mxu0 0
      %2306 = vmatprep.subr.bf16.mxu0 0
      %2307 = vmatpush1.bf16.xpose.msra.mxu0 0
      %2308 = vmatprep.subr.bf16.mxu0 0
      %2309 = vmatpush1.bf16.xpose.msra.mxu0 0
      %2310 = vmatprep.subr.bf16.mxu0 0
      %2311 = vmatpush1.bf16.xpose.msra.mxu0 0
      %2312 = vmatprep.subr.bf16.mxu0 0
      %2313 = vmatpush1.bf16.xpose.msra.mxu0 0
      %2314 = vmatprep.subr.bf16.mxu0 0
      %2315 = vmatpush1.bf16.xpose.msra.mxu0 0
      %2316 = vmatprep.subr.bf16.mxu0 0
      %2317 = vmatpush1.bf16.xpose.msra.mxu0 0
      %2318 = vmatprep.subr.bf16.mxu0 0
      %2319 = vmatpush1.bf16.xpose.msra.mxu0 0
      %2320 = vmatprep.subr.bf16.mxu0 0
      %2321 = vmatpush1.bf16.xpose.msra.mxu0 0
      %2322 = vmatprep.subr.bf16.mxu0 0
      %2323 = vmatpush1.bf16.xpose.msra.mxu0 0
      %2324 = vmatprep.subr.bf16.mxu0 0
      %2325 = vmatpush1.bf16.xpose.msra.mxu0 0
      %2326 = vmatprep.subr.bf16.mxu0 0
      %2327 = vmatpush1.bf16.xpose.msra.mxu0 0
      %2328 = vmatprep.mubr.bf16.mxu0 0
      %2329 = vmatmul.mubr.bf16.gmra.mrb[0].mxu0 %v2291
      %v2330 = vpop.f32.mrb[0].mxu0
      %v2331 = vadd.f32 0.0, %v2330
      %v2332 = vpop.f32.mrb[0].mxu0
      %v2333 = vpop.f32.mrb[0].mxu0
      %v2334 = vpop.f32.mrb[0].mxu0
      %2335 = vdwg.mxu0
      %v2336 = vmul.f32 %v2331, 0.35355338
      %v2337 = vsel %vm712, %v2336, -1e+30
      %v2338 = vsel %vm785, %v2337, -inf
      %2339 = vmax.xlane.f32.xlu0 %v2338
      %v2340 = vpop.xlane.xlu0 %2339
      %v2341 = vsub.f32 %v2337, %v2340
      %v2342 = vmul.f32 %v2341, 1.442695
      %v2343 = vpow.pop %v2342
      %v2344 = vsel %vm785, %v2343, 0.0
      %2345 = vadd.xlane.f32.xlu0 %v2344
      %v2346 = vpop.xlane.xlu0 %2345
      %v2347 = vrcp.pop %v2346
      %v2348 = vmul.f32 %v2343, %v2347
      %v2349 = vpack.c.bf16 %v2348, %v2348
      %2350 = vrot.lane.b32.xlu0 %v2286, 64
      %v2351 = vpop.permute.xlu0 %2350
      %v2353 = vsel %vm785, %v2349, 0
      %v2356 = vsel %vm851, %v2351, 0
      %2358 = vmatprep.subr.bf16.mxu0 0
      %2359 = vmatpush1.bf16.msra.mxu0 %v2356
      %2360 = vmatprep.subr.bf16.mxu0 0
      %2361 = vmatpush1.bf16.msra.mxu0 0
      %2362 = vmatprep.subr.bf16.mxu0 0
      %2363 = vmatpush1.bf16.msra.mxu0 0
      %2364 = vmatprep.subr.bf16.mxu0 0
      %2365 = vmatpush1.bf16.msra.mxu0 0
      %2366 = vmatprep.subr.bf16.mxu0 0
      %2367 = vmatpush1.bf16.msra.mxu0 0
      %2368 = vmatprep.subr.bf16.mxu0 0
      %2369 = vmatpush1.bf16.msra.mxu0 0
      %2370 = vmatprep.subr.bf16.mxu0 0
      %2371 = vmatpush1.bf16.msra.mxu0 0
      %2372 = vmatprep.subr.bf16.mxu0 0
      %2373 = vmatpush1.bf16.msra.mxu0 0
      %2374 = vmatprep.subr.bf16.mxu0 0
      %2375 = vmatpush1.bf16.msra.mxu0 0
      %2376 = vmatprep.subr.bf16.mxu0 0
      %2377 = vmatpush1.bf16.msra.mxu0 0
      %2378 = vmatprep.subr.bf16.mxu0 0
      %2379 = vmatpush1.bf16.msra.mxu0 0
      %2380 = vmatprep.subr.bf16.mxu0 0
      %2381 = vmatpush1.bf16.msra.mxu0 0
      %2382 = vmatprep.subr.bf16.mxu0 0
      %2383 = vmatpush1.bf16.msra.mxu0 0
      %2384 = vmatprep.subr.bf16.mxu0 0
      %2385 = vmatpush1.bf16.msra.mxu0 0
      %2386 = vmatprep.subr.bf16.mxu0 0
      %2387 = vmatpush1.bf16.msra.mxu0 0
      %2388 = vmatprep.subr.bf16.mxu0 0
      %2389 = vmatpush1.bf16.msra.mxu0 0
      %2390 = vmatprep.mubr.bf16.mxu0 0
      %2391 = vmatmul.mubr.bf16.gmra.mrb[0].mxu0 %v2353
      %v2392 = vpop.f32.mrb[0].mxu0
      %v2393 = vadd.f32 0.0, %v2392
      %v2394 = vpop.f32.mrb[0].mxu0
      %v2395 = vpop.f32.mrb[0].mxu0
      %v2396 = vpop.f32.mrb[0].mxu0
      %2397 = vdwg.mxu0
      %2398 = vrot.lane.b32.xlu0 %v2286, 120
      %v2399 = vpop.permute.xlu0 %2398
      %2400 = vrot.lane.b32.xlu0 %v2286, 88
      %v2401 = vpop.permute.xlu0 %2400
      %v2403 = vsel %vm785, %v2399, 0
      %v2406 = vsel %vm785, %v2401, 0
      %2408 = vmatprep.subr.bf16.mxu0 0
      %2409 = vmatpush1.bf16.xpose.msra.mxu0 %v2406
      %2410 = vmatprep.subr.bf16.mxu0 0
      %2411 = vmatpush1.bf16.xpose.msra.mxu0 0
      %2412 = vmatprep.subr.bf16.mxu0 0
      %2413 = vmatpush1.bf16.xpose.msra.mxu0 0
      %2414 = vmatprep.subr.bf16.mxu0 0
      %2415 = vmatpush1.bf16.xpose.msra.mxu0 0
      %2416 = vmatprep.subr.bf16.mxu0 0
      %2417 = vmatpush1.bf16.xpose.msra.mxu0 0
      %2418 = vmatprep.subr.bf16.mxu0 0
      %2419 = vmatpush1.bf16.xpose.msra.mxu0 0
      %2420 = vmatprep.subr.bf16.mxu0 0
      %2421 = vmatpush1.bf16.xpose.msra.mxu0 0
      %2422 = vmatprep.subr.bf16.mxu0 0
      %2423 = vmatpush1.bf16.xpose.msra.mxu0 0
      %2424 = vmatprep.subr.bf16.mxu0 0
      %2425 = vmatpush1.bf16.xpose.msra.mxu0 0
      %2426 = vmatprep.subr.bf16.mxu0 0
      %2427 = vmatpush1.bf16.xpose.msra.mxu0 0
      %2428 = vmatprep.subr.bf16.mxu0 0
      %2429 = vmatpush1.bf16.xpose.msra.mxu0 0
      %2430 = vmatprep.subr.bf16.mxu0 0
      %2431 = vmatpush1.bf16.xpose.msra.mxu0 0
      %2432 = vmatprep.subr.bf16.mxu0 0
      %2433 = vmatpush1.bf16.xpose.msra.mxu0 0
      %2434 = vmatprep.subr.bf16.mxu0 0
      %2435 = vmatpush1.bf16.xpose.msra.mxu0 0
      %2436 = vmatprep.subr.bf16.mxu0 0
      %2437 = vmatpush1.bf16.xpose.msra.mxu0 0
      %2438 = vmatprep.subr.bf16.mxu0 0
      %2439 = vmatpush1.bf16.xpose.msra.mxu0 0
      %2440 = vmatprep.mubr.bf16.mxu0 0
      %2441 = vmatmul.mubr.bf16.gmra.mrb[0].mxu0 %v2403
      %v2442 = vpop.f32.mrb[0].mxu0
      %v2443 = vadd.f32 0.0, %v2442
      %v2444 = vpop.f32.mrb[0].mxu0
      %v2445 = vpop.f32.mrb[0].mxu0
      %v2446 = vpop.f32.mrb[0].mxu0
      %2447 = vdwg.mxu0
      %v2448 = vmul.f32 %v2443, 0.35355338
      %v2449 = vsel %vm712, %v2448, -1e+30
      %v2450 = vsel %vm785, %v2449, -inf
      %2451 = vmax.xlane.f32.xlu0 %v2450
      %v2452 = vpop.xlane.xlu0 %2451
      %v2453 = vsub.f32 %v2449, %v2452
      %v2454 = vmul.f32 %v2453, 1.442695
      %v2455 = vpow.pop %v2454
      %v2456 = vsel %vm785, %v2455, 0.0
      %2457 = vadd.xlane.f32.xlu0 %v2456
      %v2458 = vpop.xlane.xlu0 %2457
      %v2459 = vrcp.pop %v2458
      %v2460 = vmul.f32 %v2455, %v2459
      %v2461 = vpack.c.bf16 %v2460, %v2460
      %2462 = vrot.lane.b32.xlu0 %v2286, 56
      %v2463 = vpop.permute.xlu0 %2462
      %v2465 = vsel %vm785, %v2461, 0
      %v2468 = vsel %vm851, %v2463, 0
      %2470 = vmatprep.subr.bf16.mxu0 0
      %2471 = vmatpush1.bf16.msra.mxu0 %v2468
      %2472 = vmatprep.subr.bf16.mxu0 0
      %2473 = vmatpush1.bf16.msra.mxu0 0
      %2474 = vmatprep.subr.bf16.mxu0 0
      %2475 = vmatpush1.bf16.msra.mxu0 0
      %2476 = vmatprep.subr.bf16.mxu0 0
      %2477 = vmatpush1.bf16.msra.mxu0 0
      %2478 = vmatprep.subr.bf16.mxu0 0
      %2479 = vmatpush1.bf16.msra.mxu0 0
      %2480 = vmatprep.subr.bf16.mxu0 0
      %2481 = vmatpush1.bf16.msra.mxu0 0
      %2482 = vmatprep.subr.bf16.mxu0 0
      %2483 = vmatpush1.bf16.msra.mxu0 0
      %2484 = vmatprep.subr.bf16.mxu0 0
      %2485 = vmatpush1.bf16.msra.mxu0 0
      %2486 = vmatprep.subr.bf16.mxu0 0
      %2487 = vmatpush1.bf16.msra.mxu0 0
      %2488 = vmatprep.subr.bf16.mxu0 0
      %2489 = vmatpush1.bf16.msra.mxu0 0
      %2490 = vmatprep.subr.bf16.mxu0 0
      %2491 = vmatpush1.bf16.msra.mxu0 0
      %2492 = vmatprep.subr.bf16.mxu0 0
      %2493 = vmatpush1.bf16.msra.mxu0 0
      %2494 = vmatprep.subr.bf16.mxu0 0
      %2495 = vmatpush1.bf16.msra.mxu0 0
      %2496 = vmatprep.subr.bf16.mxu0 0
      %2497 = vmatpush1.bf16.msra.mxu0 0
      %2498 = vmatprep.subr.bf16.mxu0 0
      %2499 = vmatpush1.bf16.msra.mxu0 0
      %2500 = vmatprep.subr.bf16.mxu0 0
      %2501 = vmatpush1.bf16.msra.mxu0 0
      %2502 = vmatprep.mubr.bf16.mxu0 0
      %2503 = vmatmul.mubr.bf16.gmra.mrb[0].mxu0 %v2465
      %v2504 = vpop.f32.mrb[0].mxu0
      %v2505 = vadd.f32 0.0, %v2504
      %v2506 = vpop.f32.mrb[0].mxu0
      %v2507 = vpop.f32.mrb[0].mxu0
      %v2508 = vpop.f32.mrb[0].mxu0
      %2509 = vdwg.mxu0
      %2510 = vrot.lane.b32.xlu0 %v2286, 112
      %v2511 = vpop.permute.xlu0 %2510
      %2512 = vrot.lane.b32.xlu0 %v2286, 80
      %v2513 = vpop.permute.xlu0 %2512
      %v2515 = vsel %vm785, %v2511, 0
      %v2518 = vsel %vm785, %v2513, 0
      %2520 = vmatprep.subr.bf16.mxu0 0
      %2521 = vmatpush1.bf16.xpose.msra.mxu0 %v2518
      %2522 = vmatprep.subr.bf16.mxu0 0
      %2523 = vmatpush1.bf16.xpose.msra.mxu0 0
      %2524 = vmatprep.subr.bf16.mxu0 0
      %2525 = vmatpush1.bf16.xpose.msra.mxu0 0
      %2526 = vmatprep.subr.bf16.mxu0 0
      %2527 = vmatpush1.bf16.xpose.msra.mxu0 0
      %2528 = vmatprep.subr.bf16.mxu0 0
      %2529 = vmatpush1.bf16.xpose.msra.mxu0 0
      %2530 = vmatprep.subr.bf16.mxu0 0
      %2531 = vmatpush1.bf16.xpose.msra.mxu0 0
      %2532 = vmatprep.subr.bf16.mxu0 0
      %2533 = vmatpush1.bf16.xpose.msra.mxu0 0
      %2534 = vmatprep.subr.bf16.mxu0 0
      %2535 = vmatpush1.bf16.xpose.msra.mxu0 0
      %2536 = vmatprep.subr.bf16.mxu0 0
      %2537 = vmatpush1.bf16.xpose.msra.mxu0 0
      %2538 = vmatprep.subr.bf16.mxu0 0
      %2539 = vmatpush1.bf16.xpose.msra.mxu0 0
      %2540 = vmatprep.subr.bf16.mxu0 0
      %2541 = vmatpush1.bf16.xpose.msra.mxu0 0
      %2542 = vmatprep.subr.bf16.mxu0 0
      %2543 = vmatpush1.bf16.xpose.msra.mxu0 0
      %2544 = vmatprep.subr.bf16.mxu0 0
      %2545 = vmatpush1.bf16.xpose.msra.mxu0 0
      %2546 = vmatprep.subr.bf16.mxu0 0
      %2547 = vmatpush1.bf16.xpose.msra.mxu0 0
      %2548 = vmatprep.subr.bf16.mxu0 0
      %2549 = vmatpush1.bf16.xpose.msra.mxu0 0
      %2550 = vmatprep.subr.bf16.mxu0 0
      %2551 = vmatpush1.bf16.xpose.msra.mxu0 0
      %2552 = vmatprep.mubr.bf16.mxu0 0
      %2553 = vmatmul.mubr.bf16.gmra.mrb[0].mxu0 %v2515
      %v2554 = vpop.f32.mrb[0].mxu0
      %v2555 = vadd.f32 0.0, %v2554
      %v2556 = vpop.f32.mrb[0].mxu0
      %v2557 = vpop.f32.mrb[0].mxu0
      %v2558 = vpop.f32.mrb[0].mxu0
      %2559 = vdwg.mxu0
      %v2560 = vmul.f32 %v2555, 0.35355338
      %v2561 = vsel %vm712, %v2560, -1e+30
      %v2562 = vsel %vm785, %v2561, -inf
      %2563 = vmax.xlane.f32.xlu0 %v2562
      %v2564 = vpop.xlane.xlu0 %2563
      %v2565 = vsub.f32 %v2561, %v2564
      %v2566 = vmul.f32 %v2565, 1.442695
      %v2567 = vpow.pop %v2566
      %v2568 = vsel %vm785, %v2567, 0.0
      %2569 = vadd.xlane.f32.xlu0 %v2568
      %v2570 = vpop.xlane.xlu0 %2569
      %v2571 = vrcp.pop %v2570
      %v2572 = vmul.f32 %v2567, %v2571
      %v2573 = vpack.c.bf16 %v2572, %v2572
      %2574 = vrot.lane.b32.xlu0 %v2286, 48
      %v2575 = vpop.permute.xlu0 %2574
      %v2577 = vsel %vm785, %v2573, 0
      %v2580 = vsel %vm851, %v2575, 0
      %2582 = vmatprep.subr.bf16.mxu0 0
      %2583 = vmatpush1.bf16.msra.mxu0 %v2580
      %2584 = vmatprep.subr.bf16.mxu0 0
      %2585 = vmatpush1.bf16.msra.mxu0 0
      %2586 = vmatprep.subr.bf16.mxu0 0
      %2587 = vmatpush1.bf16.msra.mxu0 0
      %2588 = vmatprep.subr.bf16.mxu0 0
      %2589 = vmatpush1.bf16.msra.mxu0 0
      %2590 = vmatprep.subr.bf16.mxu0 0
      %2591 = vmatpush1.bf16.msra.mxu0 0
      %2592 = vmatprep.subr.bf16.mxu0 0
      %2593 = vmatpush1.bf16.msra.mxu0 0
      %2594 = vmatprep.subr.bf16.mxu0 0
      %2595 = vmatpush1.bf16.msra.mxu0 0
      %2596 = vmatprep.subr.bf16.mxu0 0
      %2597 = vmatpush1.bf16.msra.mxu0 0
      %2598 = vmatprep.subr.bf16.mxu0 0
      %2599 = vmatpush1.bf16.msra.mxu0 0
      %2600 = vmatprep.subr.bf16.mxu0 0
      %2601 = vmatpush1.bf16.msra.mxu0 0
      %2602 = vmatprep.subr.bf16.mxu0 0
      %2603 = vmatpush1.bf16.msra.mxu0 0
      %2604 = vmatprep.subr.bf16.mxu0 0
      %2605 = vmatpush1.bf16.msra.mxu0 0
      %2606 = vmatprep.subr.bf16.mxu0 0
      %2607 = vmatpush1.bf16.msra.mxu0 0
      %2608 = vmatprep.subr.bf16.mxu0 0
      %2609 = vmatpush1.bf16.msra.mxu0 0
      %2610 = vmatprep.subr.bf16.mxu0 0
      %2611 = vmatpush1.bf16.msra.mxu0 0
      %2612 = vmatprep.subr.bf16.mxu0 0
      %2613 = vmatpush1.bf16.msra.mxu0 0
      %2614 = vmatprep.mubr.bf16.mxu0 0
      %2615 = vmatmul.mubr.bf16.gmra.mrb[0].mxu0 %v2577
      %v2616 = vpop.f32.mrb[0].mxu0
      %v2617 = vadd.f32 0.0, %v2616
      %v2618 = vpop.f32.mrb[0].mxu0
      %v2619 = vpop.f32.mrb[0].mxu0
      %v2620 = vpop.f32.mrb[0].mxu0
      %2621 = vdwg.mxu0
      %2622 = vrot.lane.b32.xlu0 %v2286, 104
      %v2623 = vpop.permute.xlu0 %2622
      %2624 = vrot.lane.b32.xlu0 %v2286, 72
      %v2625 = vpop.permute.xlu0 %2624
      %v2627 = vsel %vm785, %v2623, 0
      %v2630 = vsel %vm785, %v2625, 0
      %2632 = vmatprep.subr.bf16.mxu0 0
      %2633 = vmatpush1.bf16.xpose.msra.mxu0 %v2630
      %2634 = vmatprep.subr.bf16.mxu0 0
      %2635 = vmatpush1.bf16.xpose.msra.mxu0 0
      %2636 = vmatprep.subr.bf16.mxu0 0
      %2637 = vmatpush1.bf16.xpose.msra.mxu0 0
      %2638 = vmatprep.subr.bf16.mxu0 0
      %2639 = vmatpush1.bf16.xpose.msra.mxu0 0
      %2640 = vmatprep.subr.bf16.mxu0 0
      %2641 = vmatpush1.bf16.xpose.msra.mxu0 0
      %2642 = vmatprep.subr.bf16.mxu0 0
      %2643 = vmatpush1.bf16.xpose.msra.mxu0 0
      %2644 = vmatprep.subr.bf16.mxu0 0
      %2645 = vmatpush1.bf16.xpose.msra.mxu0 0
      %2646 = vmatprep.subr.bf16.mxu0 0
      %2647 = vmatpush1.bf16.xpose.msra.mxu0 0
      %2648 = vmatprep.subr.bf16.mxu0 0
      %2649 = vmatpush1.bf16.xpose.msra.mxu0 0
      %2650 = vmatprep.subr.bf16.mxu0 0
      %2651 = vmatpush1.bf16.xpose.msra.mxu0 0
      %2652 = vmatprep.subr.bf16.mxu0 0
      %2653 = vmatpush1.bf16.xpose.msra.mxu0 0
      %2654 = vmatprep.subr.bf16.mxu0 0
      %2655 = vmatpush1.bf16.xpose.msra.mxu0 0
      %2656 = vmatprep.subr.bf16.mxu0 0
      %2657 = vmatpush1.bf16.xpose.msra.mxu0 0
      %2658 = vmatprep.subr.bf16.mxu0 0
      %2659 = vmatpush1.bf16.xpose.msra.mxu0 0
      %2660 = vmatprep.subr.bf16.mxu0 0
      %2661 = vmatpush1.bf16.xpose.msra.mxu0 0
      %2662 = vmatprep.subr.bf16.mxu0 0
      %2663 = vmatpush1.bf16.xpose.msra.mxu0 0
      %2664 = vmatprep.mubr.bf16.mxu0 0
      %2665 = vmatmul.mubr.bf16.gmra.mrb[0].mxu0 %v2627
      %v2666 = vpop.f32.mrb[0].mxu0
      %v2667 = vadd.f32 0.0, %v2666
      %v2668 = vpop.f32.mrb[0].mxu0
      %v2669 = vpop.f32.mrb[0].mxu0
      %v2670 = vpop.f32.mrb[0].mxu0
      %2671 = vdwg.mxu0
      %v2672 = vmul.f32 %v2667, 0.35355338
      %v2673 = vsel %vm712, %v2672, -1e+30
      %v2674 = vsel %vm785, %v2673, -inf
      %2675 = vmax.xlane.f32.xlu0 %v2674
      %v2676 = vpop.xlane.xlu0 %2675
      %v2677 = vsub.f32 %v2673, %v2676
      %v2678 = vmul.f32 %v2677, 1.442695
      %v2679 = vpow.pop %v2678
      %v2680 = vsel %vm785, %v2679, 0.0
      %2681 = vadd.xlane.f32.xlu0 %v2680
      %v2682 = vpop.xlane.xlu0 %2681
      %v2683 = vrcp.pop %v2682
      %v2684 = vmul.f32 %v2679, %v2683
      %v2685 = vpack.c.bf16 %v2684, %v2684
      %2686 = vrot.lane.b32.xlu0 %v2286, 40
      %v2687 = vpop.permute.xlu0 %2686
      %v2689 = vsel %vm785, %v2685, 0
      %v2692 = vsel %vm851, %v2687, 0
      %2694 = vmatprep.subr.bf16.mxu0 0
      %2695 = vmatpush1.bf16.msra.mxu0 %v2692
      %2696 = vmatprep.subr.bf16.mxu0 0
      %2697 = vmatpush1.bf16.msra.mxu0 0
      %2698 = vmatprep.subr.bf16.mxu0 0
      %2699 = vmatpush1.bf16.msra.mxu0 0
      %2700 = vmatprep.subr.bf16.mxu0 0
      %2701 = vmatpush1.bf16.msra.mxu0 0
      %2702 = vmatprep.subr.bf16.mxu0 0
      %2703 = vmatpush1.bf16.msra.mxu0 0
      %2704 = vmatprep.subr.bf16.mxu0 0
      %2705 = vmatpush1.bf16.msra.mxu0 0
      %2706 = vmatprep.subr.bf16.mxu0 0
      %2707 = vmatpush1.bf16.msra.mxu0 0
      %2708 = vmatprep.subr.bf16.mxu0 0
      %2709 = vmatpush1.bf16.msra.mxu0 0
      %2710 = vmatprep.subr.bf16.mxu0 0
      %2711 = vmatpush1.bf16.msra.mxu0 0
      %2712 = vmatprep.subr.bf16.mxu0 0
      %2713 = vmatpush1.bf16.msra.mxu0 0
      %2714 = vmatprep.subr.bf16.mxu0 0
      %2715 = vmatpush1.bf16.msra.mxu0 0
      %2716 = vmatprep.subr.bf16.mxu0 0
      %2717 = vmatpush1.bf16.msra.mxu0 0
      %2718 = vmatprep.subr.bf16.mxu0 0
      %2719 = vmatpush1.bf16.msra.mxu0 0
      %2720 = vmatprep.subr.bf16.mxu0 0
      %2721 = vmatpush1.bf16.msra.mxu0 0
      %2722 = vmatprep.subr.bf16.mxu0 0
      %2723 = vmatpush1.bf16.msra.mxu0 0
      %2724 = vmatprep.subr.bf16.mxu0 0
      %2725 = vmatpush1.bf16.msra.mxu0 0
      %2726 = vmatprep.mubr.bf16.mxu0 0
      %2727 = vmatmul.mubr.bf16.gmra.mrb[0].mxu0 %v2689
      %v2728 = vpop.f32.mrb[0].mxu0
      %v2729 = vadd.f32 0.0, %v2728
      %v2730 = vpop.f32.mrb[0].mxu0
      %v2731 = vpop.f32.mrb[0].mxu0
      %v2732 = vpop.f32.mrb[0].mxu0
      %2733 = vdwg.mxu0
      %2735 = vrot.lane.b32.xlu0 %v2505, 8
      %v2736 = vpop.permute.xlu0 %2735
      %2739 = vrot.lane.b32.xlu0 %v2617, 16
      %v2740 = vpop.permute.xlu0 %2739
      %2743 = vrot.lane.b32.xlu0 %v2729, 24
      %v2744 = vpop.permute.xlu0 %2743
      %v2746 = vsel %vm785, %v2393, %v2736
      %v2747 = vsel %vm1244, %v2746, %v2740
      %v2748 = vsel %vm1246, %v2747, %v2744
      %s2749 = scalar_lea.vmem %s3, 16
      %v2750 = vld [vmem:[%s2749] sm:$0xf]
      %v2751 = vld [vmem:[%s2749 + $0x4] sm:$0xf]
      %v2752 = vld [vmem:[%s2749 + $0x8] sm:$0xf]
      %v2753 = vld [vmem:[%s2749 + $0xc] sm:$0xf]
      %v2754 = vpack.c.bf16 %v2748, %v2748
      %v2759 = vunpack.c.l.b16 %v2750
      %v2760 = vunpack.c.l.b16 %v2751
      %v2761 = vunpack.c.l.b16 %v2752
      %v2762 = vunpack.c.l.b16 %v2753
      %v2763 = vpack.c.b16 %v2760, %v2759
      %v2764 = vpack.c.b16 %v2762, %v2761
      %v2768 = vsel %vm737, %v2754, 0
      %2770 = vmatprep.subr.bf16.mxu0 0
      %2771 = vmatpush1.bf16.msra.mxu0 %v2763
      %2772 = vmatprep.subr.bf16.mxu0 0
      %2773 = vmatpush1.bf16.msra.mxu0 %v2764
      %2774 = vmatprep.subr.bf16.mxu0 0
      %2775 = vmatpush1.bf16.msra.mxu0 0
      %2776 = vmatprep.subr.bf16.mxu0 0
      %2777 = vmatpush1.bf16.msra.mxu0 0
      %2778 = vmatprep.subr.bf16.mxu0 0
      %2779 = vmatpush1.bf16.msra.mxu0 0
      %2780 = vmatprep.subr.bf16.mxu0 0
      %2781 = vmatpush1.bf16.msra.mxu0 0
      %2782 = vmatprep.subr.bf16.mxu0 0
      %2783 = vmatpush1.bf16.msra.mxu0 0
      %2784 = vmatprep.subr.bf16.mxu0 0
      %2785 = vmatpush1.bf16.msra.mxu0 0
      %2786 = vmatprep.subr.bf16.mxu0 0
      %2787 = vmatpush1.bf16.msra.mxu0 0
      %2788 = vmatprep.subr.bf16.mxu0 0
      %2789 = vmatpush1.bf16.msra.mxu0 0
      %2790 = vmatprep.subr.bf16.mxu0 0
      %2791 = vmatpush1.bf16.msra.mxu0 0
      %2792 = vmatprep.subr.bf16.mxu0 0
      %2793 = vmatpush1.bf16.msra.mxu0 0
      %2794 = vmatprep.subr.bf16.mxu0 0
      %2795 = vmatpush1.bf16.msra.mxu0 0
      %2796 = vmatprep.subr.bf16.mxu0 0
      %2797 = vmatpush1.bf16.msra.mxu0 0
      %2798 = vmatprep.subr.bf16.mxu0 0
      %2799 = vmatpush1.bf16.msra.mxu0 0
      %2800 = vmatprep.subr.bf16.mxu0 0
      %2801 = vmatpush1.bf16.msra.mxu0 0
      %2802 = vmatprep.mubr.bf16.mxu0 0
      %2803 = vmatmul.mubr.bf16.gmra.mrb[0].mxu0 %v2768
      %v2804 = vpop.f32.mrb[0].mxu0
      %v2805 = vadd.f32 0.0, %v2804
      %v2806 = vpop.f32.mrb[0].mxu0
      %v2807 = vpop.f32.mrb[0].mxu0
      %v2808 = vpop.f32.mrb[0].mxu0
      %2809 = vdwg.mxu0
      %v2810 = vadd.f32 %v2216, %v2805
      %s2811 = scalar_lea.vmem %s4, 1
      %v2812 = vld [vmem:[%s2811] sm:$0x1]
      %v2814 = vlaneseq
      %v2815 = vshrl.u32 %v2814, 7
      %v2816 = vsub.s32 0, %v2815
      %v2817 = vrot.slane %v2812, %v2816
      %v2819 = vadd.f32 %v2810, %v2817
      %s2820 = scalar_lea.vmem %s5, 1
      %v2821 = vld [vmem:[%s2820] sm:$0x1]
      %s2822 = scalar_lea.vmem %s6, 1
      %v2823 = vld [vmem:[%s2822] sm:$0x1]
      %v2824 = vsel %vm737, %v2819, 0.0
      %2825 = vadd.xlane.f32.xlu0 %v2824
      %v2826 = vpop.xlane.xlu0 %2825
      %v2827 = vmul.f32 %v2826, %v1322
      %v2828 = vsub.f32 %v2819, %v2827
      %v2829 = vmul.f32 %v2828, %v2828
      %v2830 = vsel %vm737, %v2829, 0.0
      %2831 = vadd.xlane.f32.xlu0 %v2830
      %v2832 = vpop.xlane.xlu0 %2831
      %v2833 = vmul.f32 %v2832, %v1322
      %v2834 = vadd.f32 %v2833, 1e-05
      %v2835 = vrsqrt.pop %v2834
      %v2836 = vmul.f32 %v2828, %v2835
      %v2838 = vlaneseq
      %v2839 = vshrl.u32 %v2838, 7
      %v2840 = vsub.s32 0, %v2839
      %v2841 = vrot.slane %v2821, %v2840
      %v2843 = vmul.f32 %v2836, %v2841
      %v2845 = vlaneseq
      %v2846 = vshrl.u32 %v2845, 7
      %v2847 = vsub.s32 0, %v2846
      %v2848 = vrot.slane %v2823, %v2847
      %v2850 = vadd.f32 %v2843, %v2848
      %s2851 = scalar_lea.vmem %s7, 16
      %v2852 = vld [vmem:[%s2851] sm:$0xf]
      %v2853 = vld [vmem:[%s2851 + $0x4] sm:$0xf]
      %v2854 = vld [vmem:[%s2851 + $0x8] sm:$0xf]
      %v2855 = vld [vmem:[%s2851 + $0xc] sm:$0xf]
      %v2856 = vpack.c.bf16 %v2850, %v2850
      %s2857 = scalar_lea.vmem %s8, 1
      %v2858 = vld [vmem:[%s2857] sm:$0x1]
      %v2860 = vlaneseq
      %v2861 = vshrl.u32 %v2860, 7
      %v2862 = vsub.s32 0, %v2861
      %v2863 = vrot.slane %v2858, %v2862
      %v2869 = vunpack.c.l.b16 %v2852
      %v2870 = vunpack.c.l.b16 %v2853
      %v2871 = vunpack.c.l.b16 %v2854
      %v2872 = vunpack.c.l.b16 %v2855
      %v2873 = vpack.c.b16 %v2870, %v2869
      %v2874 = vpack.c.b16 %v2872, %v2871
      %v2878 = vsel %vm737, %v2856, 0
      %2880 = vmatprep.subr.bf16.mxu0 0
      %2881 = vmatpush1.bf16.msra.mxu0 %v2873
      %2882 = vmatprep.subr.bf16.mxu0 0
      %2883 = vmatpush1.bf16.msra.mxu0 %v2874
      %2884 = vmatprep.subr.bf16.mxu0 0
      %2885 = vmatpush1.bf16.msra.mxu0 0
      %2886 = vmatprep.subr.bf16.mxu0 0
      %2887 = vmatpush1.bf16.msra.mxu0 0
      %2888 = vmatprep.subr.bf16.mxu0 0
      %2889 = vmatpush1.bf16.msra.mxu0 0
      %2890 = vmatprep.subr.bf16.mxu0 0
      %2891 = vmatpush1.bf16.msra.mxu0 0
      %2892 = vmatprep.subr.bf16.mxu0 0
      %2893 = vmatpush1.bf16.msra.mxu0 0
      %2894 = vmatprep.subr.bf16.mxu0 0
      %2895 = vmatpush1.bf16.msra.mxu0 0
      %2896 = vmatprep.subr.bf16.mxu0 0
      %2897 = vmatpush1.bf16.msra.mxu0 0
      %2898 = vmatprep.subr.bf16.mxu0 0
      %2899 = vmatpush1.bf16.msra.mxu0 0
      %2900 = vmatprep.subr.bf16.mxu0 0
      %2901 = vmatpush1.bf16.msra.mxu0 0
      %2902 = vmatprep.subr.bf16.mxu0 0
      %2903 = vmatpush1.bf16.msra.mxu0 0
      %2904 = vmatprep.subr.bf16.mxu0 0
      %2905 = vmatpush1.bf16.msra.mxu0 0
      %2906 = vmatprep.subr.bf16.mxu0 0
      %2907 = vmatpush1.bf16.msra.mxu0 0
      %2908 = vmatprep.subr.bf16.mxu0 0
      %2909 = vmatpush1.bf16.msra.mxu0 0
      %2910 = vmatprep.subr.bf16.mxu0 0
      %2911 = vmatpush1.bf16.msra.mxu0 0
      %2912 = vmatprep.mubr.bf16.mxu0 0
      %2913 = vmatmul.mubr.bf16.gmra.mrb[0].mxu0 %v2878
      %v2914 = vpop.f32.mrb[0].mxu0
      %v2915 = vadd.f32 %v2863, %v2914
      %v2916 = vpop.f32.mrb[0].mxu0
      %v2917 = vpop.f32.mrb[0].mxu0
      %v2918 = vpop.f32.mrb[0].mxu0
      %2919 = vdwg.mxu0
      %s2920 = scalar_lea.vmem %s9, 16
      %v2921 = vld [vmem:[%s2920] sm:$0xf]
      %v2922 = vld [vmem:[%s2920 + $0x4] sm:$0xf]
      %v2923 = vld [vmem:[%s2920 + $0x8] sm:$0xf]
      %v2924 = vld [vmem:[%s2920 + $0xc] sm:$0xf]
      %s2925 = scalar_lea.vmem %s10, 1
      %v2926 = vld [vmem:[%s2925] sm:$0x1]
      %v2928 = vlaneseq
      %v2929 = vshrl.u32 %v2928, 7
      %v2930 = vsub.s32 0, %v2929
      %v2931 = vrot.slane %v2926, %v2930
      %v2937 = vunpack.c.l.b16 %v2921
      %v2938 = vunpack.c.l.b16 %v2922
      %v2939 = vunpack.c.l.b16 %v2923
      %v2940 = vunpack.c.l.b16 %v2924
      %v2941 = vpack.c.b16 %v2938, %v2937
      %v2942 = vpack.c.b16 %v2940, %v2939
      %2945 = vmatprep.subr.bf16.mxu0 0
      %2946 = vmatpush1.bf16.msra.mxu0 %v2941
      %2947 = vmatprep.subr.bf16.mxu0 0
      %2948 = vmatpush1.bf16.msra.mxu0 %v2942
      %2949 = vmatprep.subr.bf16.mxu0 0
      %2950 = vmatpush1.bf16.msra.mxu0 0
      %2951 = vmatprep.subr.bf16.mxu0 0
      %2952 = vmatpush1.bf16.msra.mxu0 0
      %2953 = vmatprep.subr.bf16.mxu0 0
      %2954 = vmatpush1.bf16.msra.mxu0 0
      %2955 = vmatprep.subr.bf16.mxu0 0
      %2956 = vmatpush1.bf16.msra.mxu0 0
      %2957 = vmatprep.subr.bf16.mxu0 0
      %2958 = vmatpush1.bf16.msra.mxu0 0
      %2959 = vmatprep.subr.bf16.mxu0 0
      %2960 = vmatpush1.bf16.msra.mxu0 0
      %2961 = vmatprep.subr.bf16.mxu0 0
      %2962 = vmatpush1.bf16.msra.mxu0 0
      %2963 = vmatprep.subr.bf16.mxu0 0
      %2964 = vmatpush1.bf16.msra.mxu0 0
      %2965 = vmatprep.subr.bf16.mxu0 0
      %2966 = vmatpush1.bf16.msra.mxu0 0
      %2967 = vmatprep.subr.bf16.mxu0 0
      %2968 = vmatpush1.bf16.msra.mxu0 0
      %2969 = vmatprep.subr.bf16.mxu0 0
      %2970 = vmatpush1.bf16.msra.mxu0 0
      %2971 = vmatprep.subr.bf16.mxu0 0
      %2972 = vmatpush1.bf16.msra.mxu0 0
      %2973 = vmatprep.subr.bf16.mxu0 0
      %2974 = vmatpush1.bf16.msra.mxu0 0
      %2975 = vmatprep.subr.bf16.mxu0 0
      %2976 = vmatpush1.bf16.msra.mxu0 0
      %2977 = vmatprep.mubr.bf16.mxu0 0
      %2978 = vmatmul.mubr.bf16.gmra.mrb[0].mxu0 %v739
      %v2979 = vpop.f32.mrb[0].mxu0
      %v2980 = vadd.f32 %v2931, %v2979
      %v2981 = vpop.f32.mrb[0].mxu0
      %v2982 = vpop.f32.mrb[0].mxu0
      %v2983 = vpop.f32.mrb[0].mxu0
      %2984 = vdwg.mxu0
      %v2985 = vpack.c.bf16 %v2915, %v2915
      %v2986 = vpack.c.bf16 %v2980, %v2980
      %v2988 = vsel %vm785, %v2985, 0
      %v2991 = vsel %vm785, %v2986, 0
      %2993 = vmatprep.subr.bf16.mxu0 0
      %2994 = vmatpush1.bf16.xpose.msra.mxu0 %v2991
      %2995 = vmatprep.subr.bf16.mxu0 0
      %2996 = vmatpush1.bf16.xpose.msra.mxu0 0
      %2997 = vmatprep.subr.bf16.mxu0 0
      %2998 = vmatpush1.bf16.xpose.msra.mxu0 0
      %2999 = vmatprep.subr.bf16.mxu0 0
      %3000 = vmatpush1.bf16.xpose.msra.mxu0 0
      %3001 = vmatprep.subr.bf16.mxu0 0
      %3002 = vmatpush1.bf16.xpose.msra.mxu0 0
      %3003 = vmatprep.subr.bf16.mxu0 0
      %3004 = vmatpush1.bf16.xpose.msra.mxu0 0
      %3005 = vmatprep.subr.bf16.mxu0 0
      %3006 = vmatpush1.bf16.xpose.msra.mxu0 0
      %3007 = vmatprep.subr.bf16.mxu0 0
      %3008 = vmatpush1.bf16.xpose.msra.mxu0 0
      %3009 = vmatprep.subr.bf16.mxu0 0
      %3010 = vmatpush1.bf16.xpose.msra.mxu0 0
      %3011 = vmatprep.subr.bf16.mxu0 0
      %3012 = vmatpush1.bf16.xpose.msra.mxu0 0
      %3013 = vmatprep.subr.bf16.mxu0 0
      %3014 = vmatpush1.bf16.xpose.msra.mxu0 0
      %3015 = vmatprep.subr.bf16.mxu0 0
      %3016 = vmatpush1.bf16.xpose.msra.mxu0 0
      %3017 = vmatprep.subr.bf16.mxu0 0
      %3018 = vmatpush1.bf16.xpose.msra.mxu0 0
      %3019 = vmatprep.subr.bf16.mxu0 0
      %3020 = vmatpush1.bf16.xpose.msra.mxu0 0
      %3021 = vmatprep.subr.bf16.mxu0 0
      %3022 = vmatpush1.bf16.xpose.msra.mxu0 0
      %3023 = vmatprep.subr.bf16.mxu0 0
      %3024 = vmatpush1.bf16.xpose.msra.mxu0 0
      %3025 = vmatprep.mubr.bf16.mxu0 0
      %3026 = vmatmul.mubr.bf16.gmra.mrb[0].mxu0 %v2988
      %v3027 = vpop.f32.mrb[0].mxu0
      %v3028 = vadd.f32 0.0, %v3027
      %v3029 = vpop.f32.mrb[0].mxu0
      %v3030 = vpop.f32.mrb[0].mxu0
      %v3031 = vpop.f32.mrb[0].mxu0
      %3032 = vdwg.mxu0
      %v3033 = vmul.f32 %v3028, 0.35355338
      %v3034 = vsel %vm785, %v3033, -inf
      %3035 = vmax.xlane.f32.xlu0 %v3034
      %v3036 = vpop.xlane.xlu0 %3035
      %v3037 = vsub.f32 %v3033, %v3036
      %v3038 = vmul.f32 %v3037, 1.442695
      %v3039 = vpow.pop %v3038
      %v3040 = vsel %vm785, %v3039, 0.0
      %3041 = vadd.xlane.f32.xlu0 %v3040
      %v3042 = vpop.xlane.xlu0 %3041
      %v3043 = vrcp.pop %v3042
      %v3044 = vmul.f32 %v3039, %v3043
      %v3045 = vpack.c.bf16 %v3044, %v3044
      %3047 = vrot.lane.b32.xlu0 %v2986, 96
      %v3048 = vpop.permute.xlu0 %3047
      %v3050 = vsel %vm785, %v3045, 0
      %v3053 = vsel %vm851, %v3048, 0
      %3055 = vmatprep.subr.bf16.mxu0 0
      %3056 = vmatpush1.bf16.msra.mxu0 %v3053
      %3057 = vmatprep.subr.bf16.mxu0 0
      %3058 = vmatpush1.bf16.msra.mxu0 0
      %3059 = vmatprep.subr.bf16.mxu0 0
      %3060 = vmatpush1.bf16.msra.mxu0 0
      %3061 = vmatprep.subr.bf16.mxu0 0
      %3062 = vmatpush1.bf16.msra.mxu0 0
      %3063 = vmatprep.subr.bf16.mxu0 0
      %3064 = vmatpush1.bf16.msra.mxu0 0
      %3065 = vmatprep.subr.bf16.mxu0 0
      %3066 = vmatpush1.bf16.msra.mxu0 0
      %3067 = vmatprep.subr.bf16.mxu0 0
      %3068 = vmatpush1.bf16.msra.mxu0 0
      %3069 = vmatprep.subr.bf16.mxu0 0
      %3070 = vmatpush1.bf16.msra.mxu0 0
      %3071 = vmatprep.subr.bf16.mxu0 0
      %3072 = vmatpush1.bf16.msra.mxu0 0
      %3073 = vmatprep.subr.bf16.mxu0 0
      %3074 = vmatpush1.bf16.msra.mxu0 0
      %3075 = vmatprep.subr.bf16.mxu0 0
      %3076 = vmatpush1.bf16.msra.mxu0 0
      %3077 = vmatprep.subr.bf16.mxu0 0
      %3078 = vmatpush1.bf16.msra.mxu0 0
      %3079 = vmatprep.subr.bf16.mxu0 0
      %3080 = vmatpush1.bf16.msra.mxu0 0
      %3081 = vmatprep.subr.bf16.mxu0 0
      %3082 = vmatpush1.bf16.msra.mxu0 0
      %3083 = vmatprep.subr.bf16.mxu0 0
      %3084 = vmatpush1.bf16.msra.mxu0 0
      %3085 = vmatprep.subr.bf16.mxu0 0
      %3086 = vmatpush1.bf16.msra.mxu0 0
      %3087 = vmatprep.mubr.bf16.mxu0 0
      %3088 = vmatmul.mubr.bf16.gmra.mrb[0].mxu0 %v3050
      %v3089 = vpop.f32.mrb[0].mxu0
      %v3090 = vadd.f32 0.0, %v3089
      %v3091 = vpop.f32.mrb[0].mxu0
      %v3092 = vpop.f32.mrb[0].mxu0
      %v3093 = vpop.f32.mrb[0].mxu0
      %3094 = vdwg.mxu0
      %3096 = vrot.lane.b32.xlu0 %v2985, 120
      %v3097 = vpop.permute.xlu0 %3096
      %3098 = vrot.lane.b32.xlu0 %v2986, 120
      %v3099 = vpop.permute.xlu0 %3098
      %v3101 = vsel %vm785, %v3097, 0
      %v3104 = vsel %vm785, %v3099, 0
      %3106 = vmatprep.subr.bf16.mxu0 0
      %3107 = vmatpush1.bf16.xpose.msra.mxu0 %v3104
      %3108 = vmatprep.subr.bf16.mxu0 0
      %3109 = vmatpush1.bf16.xpose.msra.mxu0 0
      %3110 = vmatprep.subr.bf16.mxu0 0
      %3111 = vmatpush1.bf16.xpose.msra.mxu0 0
      %3112 = vmatprep.subr.bf16.mxu0 0
      %3113 = vmatpush1.bf16.xpose.msra.mxu0 0
      %3114 = vmatprep.subr.bf16.mxu0 0
      %3115 = vmatpush1.bf16.xpose.msra.mxu0 0
      %3116 = vmatprep.subr.bf16.mxu0 0
      %3117 = vmatpush1.bf16.xpose.msra.mxu0 0
      %3118 = vmatprep.subr.bf16.mxu0 0
      %3119 = vmatpush1.bf16.xpose.msra.mxu0 0
      %3120 = vmatprep.subr.bf16.mxu0 0
      %3121 = vmatpush1.bf16.xpose.msra.mxu0 0
      %3122 = vmatprep.subr.bf16.mxu0 0
      %3123 = vmatpush1.bf16.xpose.msra.mxu0 0
      %3124 = vmatprep.subr.bf16.mxu0 0
      %3125 = vmatpush1.bf16.xpose.msra.mxu0 0
      %3126 = vmatprep.subr.bf16.mxu0 0
      %3127 = vmatpush1.bf16.xpose.msra.mxu0 0
      %3128 = vmatprep.subr.bf16.mxu0 0
      %3129 = vmatpush1.bf16.xpose.msra.mxu0 0
      %3130 = vmatprep.subr.bf16.mxu0 0
      %3131 = vmatpush1.bf16.xpose.msra.mxu0 0
      %3132 = vmatprep.subr.bf16.mxu0 0
      %3133 = vmatpush1.bf16.xpose.msra.mxu0 0
      %3134 = vmatprep.subr.bf16.mxu0 0
      %3135 = vmatpush1.bf16.xpose.msra.mxu0 0
      %3136 = vmatprep.subr.bf16.mxu0 0
      %3137 = vmatpush1.bf16.xpose.msra.mxu0 0
      %3138 = vmatprep.mubr.bf16.mxu0 0
      %3139 = vmatmul.mubr.bf16.gmra.mrb[0].mxu0 %v3101
      %v3140 = vpop.f32.mrb[0].mxu0
      %v3141 = vadd.f32 0.0, %v3140
      %v3142 = vpop.f32.mrb[0].mxu0
      %v3143 = vpop.f32.mrb[0].mxu0
      %v3144 = vpop.f32.mrb[0].mxu0
      %3145 = vdwg.mxu0
      %v3146 = vmul.f32 %v3141, 0.35355338
      %v3147 = vsel %vm785, %v3146, -inf
      %3148 = vmax.xlane.f32.xlu0 %v3147
      %v3149 = vpop.xlane.xlu0 %3148
      %v3150 = vsub.f32 %v3146, %v3149
      %v3151 = vmul.f32 %v3150, 1.442695
      %v3152 = vpow.pop %v3151
      %v3153 = vsel %vm785, %v3152, 0.0
      %3154 = vadd.xlane.f32.xlu0 %v3153
      %v3155 = vpop.xlane.xlu0 %3154
      %v3156 = vrcp.pop %v3155
      %v3157 = vmul.f32 %v3152, %v3156
      %v3158 = vpack.c.bf16 %v3157, %v3157
      %3159 = vrot.lane.b32.xlu0 %v2986, 88
      %v3160 = vpop.permute.xlu0 %3159
      %v3162 = vsel %vm785, %v3158, 0
      %v3165 = vsel %vm851, %v3160, 0
      %3167 = vmatprep.subr.bf16.mxu0 0
      %3168 = vmatpush1.bf16.msra.mxu0 %v3165
      %3169 = vmatprep.subr.bf16.mxu0 0
      %3170 = vmatpush1.bf16.msra.mxu0 0
      %3171 = vmatprep.subr.bf16.mxu0 0
      %3172 = vmatpush1.bf16.msra.mxu0 0
      %3173 = vmatprep.subr.bf16.mxu0 0
      %3174 = vmatpush1.bf16.msra.mxu0 0
      %3175 = vmatprep.subr.bf16.mxu0 0
      %3176 = vmatpush1.bf16.msra.mxu0 0
      %3177 = vmatprep.subr.bf16.mxu0 0
      %3178 = vmatpush1.bf16.msra.mxu0 0
      %3179 = vmatprep.subr.bf16.mxu0 0
      %3180 = vmatpush1.bf16.msra.mxu0 0
      %3181 = vmatprep.subr.bf16.mxu0 0
      %3182 = vmatpush1.bf16.msra.mxu0 0
      %3183 = vmatprep.subr.bf16.mxu0 0
      %3184 = vmatpush1.bf16.msra.mxu0 0
      %3185 = vmatprep.subr.bf16.mxu0 0
      %3186 = vmatpush1.bf16.msra.mxu0 0
      %3187 = vmatprep.subr.bf16.mxu0 0
      %3188 = vmatpush1.bf16.msra.mxu0 0
      %3189 = vmatprep.subr.bf16.mxu0 0
      %3190 = vmatpush1.bf16.msra.mxu0 0
      %3191 = vmatprep.subr.bf16.mxu0 0
      %3192 = vmatpush1.bf16.msra.mxu0 0
      %3193 = vmatprep.subr.bf16.mxu0 0
      %3194 = vmatpush1.bf16.msra.mxu0 0
      %3195 = vmatprep.subr.bf16.mxu0 0
      %3196 = vmatpush1.bf16.msra.mxu0 0
      %3197 = vmatprep.subr.bf16.mxu0 0
      %3198 = vmatpush1.bf16.msra.mxu0 0
      %3199 = vmatprep.mubr.bf16.mxu0 0
      %3200 = vmatmul.mubr.bf16.gmra.mrb[0].mxu0 %v3162
      %v3201 = vpop.f32.mrb[0].mxu0
      %v3202 = vadd.f32 0.0, %v3201
      %v3203 = vpop.f32.mrb[0].mxu0
      %v3204 = vpop.f32.mrb[0].mxu0
      %v3205 = vpop.f32.mrb[0].mxu0
      %3206 = vdwg.mxu0
      %3207 = vrot.lane.b32.xlu0 %v2985, 112
      %v3208 = vpop.permute.xlu0 %3207
      %3209 = vrot.lane.b32.xlu0 %v2986, 112
      %v3210 = vpop.permute.xlu0 %3209
      %v3212 = vsel %vm785, %v3208, 0
      %v3215 = vsel %vm785, %v3210, 0
      %3217 = vmatprep.subr.bf16.mxu0 0
      %3218 = vmatpush1.bf16.xpose.msra.mxu0 %v3215
      %3219 = vmatprep.subr.bf16.mxu0 0
      %3220 = vmatpush1.bf16.xpose.msra.mxu0 0
      %3221 = vmatprep.subr.bf16.mxu0 0
      %3222 = vmatpush1.bf16.xpose.msra.mxu0 0
      %3223 = vmatprep.subr.bf16.mxu0 0
      %3224 = vmatpush1.bf16.xpose.msra.mxu0 0
      %3225 = vmatprep.subr.bf16.mxu0 0
      %3226 = vmatpush1.bf16.xpose.msra.mxu0 0
      %3227 = vmatprep.subr.bf16.mxu0 0
      %3228 = vmatpush1.bf16.xpose.msra.mxu0 0
      %3229 = vmatprep.subr.bf16.mxu0 0
      %3230 = vmatpush1.bf16.xpose.msra.mxu0 0
      %3231 = vmatprep.subr.bf16.mxu0 0
      %3232 = vmatpush1.bf16.xpose.msra.mxu0 0
      %3233 = vmatprep.subr.bf16.mxu0 0
      %3234 = vmatpush1.bf16.xpose.msra.mxu0 0
      %3235 = vmatprep.subr.bf16.mxu0 0
      %3236 = vmatpush1.bf16.xpose.msra.mxu0 0
      %3237 = vmatprep.subr.bf16.mxu0 0
      %3238 = vmatpush1.bf16.xpose.msra.mxu0 0
      %3239 = vmatprep.subr.bf16.mxu0 0
      %3240 = vmatpush1.bf16.xpose.msra.mxu0 0
      %3241 = vmatprep.subr.bf16.mxu0 0
      %3242 = vmatpush1.bf16.xpose.msra.mxu0 0
      %3243 = vmatprep.subr.bf16.mxu0 0
      %3244 = vmatpush1.bf16.xpose.msra.mxu0 0
      %3245 = vmatprep.subr.bf16.mxu0 0
      %3246 = vmatpush1.bf16.xpose.msra.mxu0 0
      %3247 = vmatprep.subr.bf16.mxu0 0
      %3248 = vmatpush1.bf16.xpose.msra.mxu0 0
      %3249 = vmatprep.mubr.bf16.mxu0 0
      %3250 = vmatmul.mubr.bf16.gmra.mrb[0].mxu0 %v3212
      %v3251 = vpop.f32.mrb[0].mxu0
      %v3252 = vadd.f32 0.0, %v3251
      %v3253 = vpop.f32.mrb[0].mxu0
      %v3254 = vpop.f32.mrb[0].mxu0
      %v3255 = vpop.f32.mrb[0].mxu0
      %3256 = vdwg.mxu0
      %v3257 = vmul.f32 %v3252, 0.35355338
      %v3258 = vsel %vm785, %v3257, -inf
      %3259 = vmax.xlane.f32.xlu0 %v3258
      %v3260 = vpop.xlane.xlu0 %3259
      %v3261 = vsub.f32 %v3257, %v3260
      %v3262 = vmul.f32 %v3261, 1.442695
      %v3263 = vpow.pop %v3262
      %v3264 = vsel %vm785, %v3263, 0.0
      %3265 = vadd.xlane.f32.xlu0 %v3264
      %v3266 = vpop.xlane.xlu0 %3265
      %v3267 = vrcp.pop %v3266
      %v3268 = vmul.f32 %v3263, %v3267
      %v3269 = vpack.c.bf16 %v3268, %v3268
      %3270 = vrot.lane.b32.xlu0 %v2986, 80
      %v3271 = vpop.permute.xlu0 %3270
      %v3273 = vsel %vm785, %v3269, 0
      %v3276 = vsel %vm851, %v3271, 0
      %3278 = vmatprep.subr.bf16.mxu0 0
      %3279 = vmatpush1.bf16.msra.mxu0 %v3276
      %3280 = vmatprep.subr.bf16.mxu0 0
      %3281 = vmatpush1.bf16.msra.mxu0 0
      %3282 = vmatprep.subr.bf16.mxu0 0
      %3283 = vmatpush1.bf16.msra.mxu0 0
      %3284 = vmatprep.subr.bf16.mxu0 0
      %3285 = vmatpush1.bf16.msra.mxu0 0
      %3286 = vmatprep.subr.bf16.mxu0 0
      %3287 = vmatpush1.bf16.msra.mxu0 0
      %3288 = vmatprep.subr.bf16.mxu0 0
      %3289 = vmatpush1.bf16.msra.mxu0 0
      %3290 = vmatprep.subr.bf16.mxu0 0
      %3291 = vmatpush1.bf16.msra.mxu0 0
      %3292 = vmatprep.subr.bf16.mxu0 0
      %3293 = vmatpush1.bf16.msra.mxu0 0
      %3294 = vmatprep.subr.bf16.mxu0 0
      %3295 = vmatpush1.bf16.msra.mxu0 0
      %3296 = vmatprep.subr.bf16.mxu0 0
      %3297 = vmatpush1.bf16.msra.mxu0 0
      %3298 = vmatprep.subr.bf16.mxu0 0
      %3299 = vmatpush1.bf16.msra.mxu0 0
      %3300 = vmatprep.subr.bf16.mxu0 0
      %3301 = vmatpush1.bf16.msra.mxu0 0
      %3302 = vmatprep.subr.bf16.mxu0 0
      %3303 = vmatpush1.bf16.msra.mxu0 0
      %3304 = vmatprep.subr.bf16.mxu0 0
      %3305 = vmatpush1.bf16.msra.mxu0 0
      %3306 = vmatprep.subr.bf16.mxu0 0
      %3307 = vmatpush1.bf16.msra.mxu0 0
      %3308 = vmatprep.subr.bf16.mxu0 0
      %3309 = vmatpush1.bf16.msra.mxu0 0
      %3310 = vmatprep.mubr.bf16.mxu0 0
      %3311 = vmatmul.mubr.bf16.gmra.mrb[0].mxu0 %v3273
      %v3312 = vpop.f32.mrb[0].mxu0
      %v3313 = vadd.f32 0.0, %v3312
      %v3314 = vpop.f32.mrb[0].mxu0
      %v3315 = vpop.f32.mrb[0].mxu0
      %v3316 = vpop.f32.mrb[0].mxu0
      %3317 = vdwg.mxu0
      %3318 = vrot.lane.b32.xlu0 %v2985, 104
      %v3319 = vpop.permute.xlu0 %3318
      %3320 = vrot.lane.b32.xlu0 %v2986, 104
      %v3321 = vpop.permute.xlu0 %3320
      %v3323 = vsel %vm785, %v3319, 0
      %v3326 = vsel %vm785, %v3321, 0
      %3328 = vmatprep.subr.bf16.mxu0 0
      %3329 = vmatpush1.bf16.xpose.msra.mxu0 %v3326
      %3330 = vmatprep.subr.bf16.mxu0 0
      %3331 = vmatpush1.bf16.xpose.msra.mxu0 0
      %3332 = vmatprep.subr.bf16.mxu0 0
      %3333 = vmatpush1.bf16.xpose.msra.mxu0 0
      %3334 = vmatprep.subr.bf16.mxu0 0
      %3335 = vmatpush1.bf16.xpose.msra.mxu0 0
      %3336 = vmatprep.subr.bf16.mxu0 0
      %3337 = vmatpush1.bf16.xpose.msra.mxu0 0
      %3338 = vmatprep.subr.bf16.mxu0 0
      %3339 = vmatpush1.bf16.xpose.msra.mxu0 0
      %3340 = vmatprep.subr.bf16.mxu0 0
      %3341 = vmatpush1.bf16.xpose.msra.mxu0 0
      %3342 = vmatprep.subr.bf16.mxu0 0
      %3343 = vmatpush1.bf16.xpose.msra.mxu0 0
      %3344 = vmatprep.subr.bf16.mxu0 0
      %3345 = vmatpush1.bf16.xpose.msra.mxu0 0
      %3346 = vmatprep.subr.bf16.mxu0 0
      %3347 = vmatpush1.bf16.xpose.msra.mxu0 0
      %3348 = vmatprep.subr.bf16.mxu0 0
      %3349 = vmatpush1.bf16.xpose.msra.mxu0 0
      %3350 = vmatprep.subr.bf16.mxu0 0
      %3351 = vmatpush1.bf16.xpose.msra.mxu0 0
      %3352 = vmatprep.subr.bf16.mxu0 0
      %3353 = vmatpush1.bf16.xpose.msra.mxu0 0
      %3354 = vmatprep.subr.bf16.mxu0 0
      %3355 = vmatpush1.bf16.xpose.msra.mxu0 0
      %3356 = vmatprep.subr.bf16.mxu0 0
      %3357 = vmatpush1.bf16.xpose.msra.mxu0 0
      %3358 = vmatprep.subr.bf16.mxu0 0
      %3359 = vmatpush1.bf16.xpose.msra.mxu0 0
      %3360 = vmatprep.mubr.bf16.mxu0 0
      %3361 = vmatmul.mubr.bf16.gmra.mrb[0].mxu0 %v3323
      %v3362 = vpop.f32.mrb[0].mxu0
      %v3363 = vadd.f32 0.0, %v3362
      %v3364 = vpop.f32.mrb[0].mxu0
      %v3365 = vpop.f32.mrb[0].mxu0
      %v3366 = vpop.f32.mrb[0].mxu0
      %3367 = vdwg.mxu0
      %v3368 = vmul.f32 %v3363, 0.35355338
      %v3369 = vsel %vm785, %v3368, -inf
      %3370 = vmax.xlane.f32.xlu0 %v3369
      %v3371 = vpop.xlane.xlu0 %3370
      %v3372 = vsub.f32 %v3368, %v3371
      %v3373 = vmul.f32 %v3372, 1.442695
      %v3374 = vpow.pop %v3373
      %v3375 = vsel %vm785, %v3374, 0.0
      %3376 = vadd.xlane.f32.xlu0 %v3375
      %v3377 = vpop.xlane.xlu0 %3376
      %v3378 = vrcp.pop %v3377
      %v3379 = vmul.f32 %v3374, %v3378
      %v3380 = vpack.c.bf16 %v3379, %v3379
      %3381 = vrot.lane.b32.xlu0 %v2986, 72
      %v3382 = vpop.permute.xlu0 %3381
      %v3384 = vsel %vm785, %v3380, 0
      %v3387 = vsel %vm851, %v3382, 0
      %3389 = vmatprep.subr.bf16.mxu0 0
      %3390 = vmatpush1.bf16.msra.mxu0 %v3387
      %3391 = vmatprep.subr.bf16.mxu0 0
      %3392 = vmatpush1.bf16.msra.mxu0 0
      %3393 = vmatprep.subr.bf16.mxu0 0
      %3394 = vmatpush1.bf16.msra.mxu0 0
      %3395 = vmatprep.subr.bf16.mxu0 0
      %3396 = vmatpush1.bf16.msra.mxu0 0
      %3397 = vmatprep.subr.bf16.mxu0 0
      %3398 = vmatpush1.bf16.msra.mxu0 0
      %3399 = vmatprep.subr.bf16.mxu0 0
      %3400 = vmatpush1.bf16.msra.mxu0 0
      %3401 = vmatprep.subr.bf16.mxu0 0
      %3402 = vmatpush1.bf16.msra.mxu0 0
      %3403 = vmatprep.subr.bf16.mxu0 0
      %3404 = vmatpush1.bf16.msra.mxu0 0
      %3405 = vmatprep.subr.bf16.mxu0 0
      %3406 = vmatpush1.bf16.msra.mxu0 0
      %3407 = vmatprep.subr.bf16.mxu0 0
      %3408 = vmatpush1.bf16.msra.mxu0 0
      %3409 = vmatprep.subr.bf16.mxu0 0
      %3410 = vmatpush1.bf16.msra.mxu0 0
      %3411 = vmatprep.subr.bf16.mxu0 0
      %3412 = vmatpush1.bf16.msra.mxu0 0
      %3413 = vmatprep.subr.bf16.mxu0 0
      %3414 = vmatpush1.bf16.msra.mxu0 0
      %3415 = vmatprep.subr.bf16.mxu0 0
      %3416 = vmatpush1.bf16.msra.mxu0 0
      %3417 = vmatprep.subr.bf16.mxu0 0
      %3418 = vmatpush1.bf16.msra.mxu0 0
      %3419 = vmatprep.subr.bf16.mxu0 0
      %3420 = vmatpush1.bf16.msra.mxu0 0
      %3421 = vmatprep.mubr.bf16.mxu0 0
      %3422 = vmatmul.mubr.bf16.gmra.mrb[0].mxu0 %v3384
      %v3423 = vpop.f32.mrb[0].mxu0
      %v3424 = vadd.f32 0.0, %v3423
      %v3425 = vpop.f32.mrb[0].mxu0
      %v3426 = vpop.f32.mrb[0].mxu0
      %v3427 = vpop.f32.mrb[0].mxu0
      %3428 = vdwg.mxu0
      %3430 = vrot.lane.b32.xlu0 %v3202, 8
      %v3431 = vpop.permute.xlu0 %3430
      %3434 = vrot.lane.b32.xlu0 %v3313, 16
      %v3435 = vpop.permute.xlu0 %3434
      %3438 = vrot.lane.b32.xlu0 %v3424, 24
      %v3439 = vpop.permute.xlu0 %3438
      %v3441 = vsel %vm785, %v3090, %v3431
      %v3442 = vsel %vm1244, %v3441, %v3435
      %v3443 = vsel %vm1246, %v3442, %v3439
      %s3444 = scalar_lea.vmem %s11, 16
      %v3445 = vld [vmem:[%s3444] sm:$0xf]
      %v3446 = vld [vmem:[%s3444 + $0x4] sm:$0xf]
      %v3447 = vld [vmem:[%s3444 + $0x8] sm:$0xf]
      %v3448 = vld [vmem:[%s3444 + $0xc] sm:$0xf]
      %v3449 = vpack.c.bf16 %v3443, %v3443
      %v3454 = vunpack.c.l.b16 %v3445
      %v3455 = vunpack.c.l.b16 %v3446
      %v3456 = vunpack.c.l.b16 %v3447
      %v3457 = vunpack.c.l.b16 %v3448
      %v3458 = vpack.c.b16 %v3455, %v3454
      %v3459 = vpack.c.b16 %v3457, %v3456
      %v3463 = vsel %vm737, %v3449, 0
      %3465 = vmatprep.subr.bf16.mxu0 0
      %3466 = vmatpush1.bf16.msra.mxu0 %v3458
      %3467 = vmatprep.subr.bf16.mxu0 0
      %3468 = vmatpush1.bf16.msra.mxu0 %v3459
      %3469 = vmatprep.subr.bf16.mxu0 0
      %3470 = vmatpush1.bf16.msra.mxu0 0
      %3471 = vmatprep.subr.bf16.mxu0 0
      %3472 = vmatpush1.bf16.msra.mxu0 0
      %3473 = vmatprep.subr.bf16.mxu0 0
      %3474 = vmatpush1.bf16.msra.mxu0 0
      %3475 = vmatprep.subr.bf16.mxu0 0
      %3476 = vmatpush1.bf16.msra.mxu0 0
      %3477 = vmatprep.subr.bf16.mxu0 0
      %3478 = vmatpush1.bf16.msra.mxu0 0
      %3479 = vmatprep.subr.bf16.mxu0 0
      %3480 = vmatpush1.bf16.msra.mxu0 0
      %3481 = vmatprep.subr.bf16.mxu0 0
      %3482 = vmatpush1.bf16.msra.mxu0 0
      %3483 = vmatprep.subr.bf16.mxu0 0
      %3484 = vmatpush1.bf16.msra.mxu0 0
      %3485 = vmatprep.subr.bf16.mxu0 0
      %3486 = vmatpush1.bf16.msra.mxu0 0
      %3487 = vmatprep.subr.bf16.mxu0 0
      %3488 = vmatpush1.bf16.msra.mxu0 0
      %3489 = vmatprep.subr.bf16.mxu0 0
      %3490 = vmatpush1.bf16.msra.mxu0 0
      %3491 = vmatprep.subr.bf16.mxu0 0
      %3492 = vmatpush1.bf16.msra.mxu0 0
      %3493 = vmatprep.subr.bf16.mxu0 0
      %3494 = vmatpush1.bf16.msra.mxu0 0
      %3495 = vmatprep.subr.bf16.mxu0 0
      %3496 = vmatpush1.bf16.msra.mxu0 0
      %3497 = vmatprep.mubr.bf16.mxu0 0
      %3498 = vmatmul.mubr.bf16.gmra.mrb[0].mxu0 %v3463
      %v3499 = vpop.f32.mrb[0].mxu0
      %v3500 = vadd.f32 0.0, %v3499
      %v3501 = vpop.f32.mrb[0].mxu0
      %v3502 = vpop.f32.mrb[0].mxu0
      %v3503 = vpop.f32.mrb[0].mxu0
      %3504 = vdwg.mxu0
      %v3505 = vadd.f32 %v2850, %v3500
      %s3506 = scalar_lea.vmem %s12, 1
      %v3507 = vld [vmem:[%s3506] sm:$0x1]
      %v3509 = vlaneseq
      %v3510 = vshrl.u32 %v3509, 7
      %v3511 = vsub.s32 0, %v3510
      %v3512 = vrot.slane %v3507, %v3511
      %v3514 = vadd.f32 %v3505, %v3512
      %s3515 = scalar_lea.vmem %s13, 1
      %v3516 = vld [vmem:[%s3515] sm:$0x1]
      %s3517 = scalar_lea.vmem %s14, 1
      %v3518 = vld [vmem:[%s3517] sm:$0x1]
      %v3519 = vsel %vm737, %v3514, 0.0
      %3520 = vadd.xlane.f32.xlu0 %v3519
      %v3521 = vpop.xlane.xlu0 %3520
      %v3522 = vmul.f32 %v3521, %v1322
      %v3523 = vsub.f32 %v3514, %v3522
      %v3524 = vmul.f32 %v3523, %v3523
      %v3525 = vsel %vm737, %v3524, 0.0
      %3526 = vadd.xlane.f32.xlu0 %v3525
      %v3527 = vpop.xlane.xlu0 %3526
      %v3528 = vmul.f32 %v3527, %v1322
      %v3529 = vadd.f32 %v3528, 1e-05
      %v3530 = vrsqrt.pop %v3529
      %v3531 = vmul.f32 %v3523, %v3530
      %v3533 = vlaneseq
      %v3534 = vshrl.u32 %v3533, 7
      %v3535 = vsub.s32 0, %v3534
      %v3536 = vrot.slane %v3516, %v3535
      %v3538 = vmul.f32 %v3531, %v3536
      %v3540 = vlaneseq
      %v3541 = vshrl.u32 %v3540, 7
      %v3542 = vsub.s32 0, %v3541
      %v3543 = vrot.slane %v3518, %v3542
      %v3545 = vadd.f32 %v3538, %v3543
      %s3546 = scalar_lea.vmem %s15, 16
      %v3547 = vld [vmem:[%s3546] sm:$0xf]
      %v3548 = vld [vmem:[%s3546 + $0x4] sm:$0xf]
      %v3549 = vld [vmem:[%s3546 + $0x8] sm:$0xf]
      %v3550 = vld [vmem:[%s3546 + $0xc] sm:$0xf]
      %v3551 = vpack.c.bf16 %v3545, %v3545
      %s3552 = scalar_lea.vmem %s16, 1
      %v3553 = vld [vmem:[%s3552] sm:$0x1]
      %v3555 = vlaneseq
      %v3556 = vshrl.u32 %v3555, 7
      %v3557 = vsub.s32 0, %v3556
      %v3558 = vrot.slane %v3553, %v3557
      %v3564 = vunpack.c.l.b16 %v3547
      %v3565 = vunpack.c.l.b16 %v3548
      %v3566 = vunpack.c.l.b16 %v3549
      %v3567 = vunpack.c.l.b16 %v3550
      %v3568 = vpack.c.b16 %v3565, %v3564
      %v3569 = vpack.c.b16 %v3567, %v3566
      %v3573 = vsel %vm737, %v3551, 0
      %3575 = vmatprep.subr.bf16.mxu0 0
      %3576 = vmatpush1.bf16.msra.mxu0 %v3568
      %3577 = vmatprep.subr.bf16.mxu0 0
      %3578 = vmatpush1.bf16.msra.mxu0 %v3569
      %3579 = vmatprep.subr.bf16.mxu0 0
      %3580 = vmatpush1.bf16.msra.mxu0 0
      %3581 = vmatprep.subr.bf16.mxu0 0
      %3582 = vmatpush1.bf16.msra.mxu0 0
      %3583 = vmatprep.subr.bf16.mxu0 0
      %3584 = vmatpush1.bf16.msra.mxu0 0
      %3585 = vmatprep.subr.bf16.mxu0 0
      %3586 = vmatpush1.bf16.msra.mxu0 0
      %3587 = vmatprep.subr.bf16.mxu0 0
      %3588 = vmatpush1.bf16.msra.mxu0 0
      %3589 = vmatprep.subr.bf16.mxu0 0
      %3590 = vmatpush1.bf16.msra.mxu0 0
      %3591 = vmatprep.subr.bf16.mxu0 0
      %3592 = vmatpush1.bf16.msra.mxu0 0
      %3593 = vmatprep.subr.bf16.mxu0 0
      %3594 = vmatpush1.bf16.msra.mxu0 0
      %3595 = vmatprep.subr.bf16.mxu0 0
      %3596 = vmatpush1.bf16.msra.mxu0 0
      %3597 = vmatprep.subr.bf16.mxu0 0
      %3598 = vmatpush1.bf16.msra.mxu0 0
      %3599 = vmatprep.subr.bf16.mxu0 0
      %3600 = vmatpush1.bf16.msra.mxu0 0
      %3601 = vmatprep.subr.bf16.mxu0 0
      %3602 = vmatpush1.bf16.msra.mxu0 0
      %3603 = vmatprep.subr.bf16.mxu0 0
      %3604 = vmatpush1.bf16.msra.mxu0 0
      %3605 = vmatprep.subr.bf16.mxu0 0
      %3606 = vmatpush1.bf16.msra.mxu0 0
      %3607 = vmatprep.mubr.bf16.mxu0 0
      %3608 = vmatmul.mubr.bf16.gmra.mrb[0].mxu0 %v3573
      %v3609 = vpop.f32.mrb[0].mxu0
      %v3610 = vadd.f32 %v3558, %v3609
      %v3611 = vpop.f32.mrb[0].mxu0
      %v3612 = vpop.f32.mrb[0].mxu0
      %v3613 = vpop.f32.mrb[0].mxu0
      %3614 = vdwg.mxu0
      %v3615 = vmax.f32 %v3610, 0.0
      %s3616 = scalar_lea.vmem %s17, 32
      %v3617 = vld [vmem:[%s3616] sm:$0xf]
      %v3618 = vld [vmem:[%s3616 + $0x4] sm:$0xf]
      %v3619 = vld [vmem:[%s3616 + $0x8] sm:$0xf]
      %v3620 = vld [vmem:[%s3616 + $0xc] sm:$0xf]
      %v3621 = vld [vmem:[%s3616 + $0x10] sm:$0xf]
      %v3622 = vld [vmem:[%s3616 + $0x14] sm:$0xf]
      %v3623 = vld [vmem:[%s3616 + $0x18] sm:$0xf]
      %v3624 = vld [vmem:[%s3616 + $0x1c] sm:$0xf]
      %v3625 = vpack.c.bf16 %v3615, %v3615
      %v3634 = vunpack.c.l.b16 %v3617
      %v3635 = vunpack.c.l.b16 %v3618
      %v3636 = vunpack.c.l.b16 %v3619
      %v3637 = vunpack.c.l.b16 %v3620
      %v3638 = vunpack.c.l.b16 %v3621
      %v3639 = vunpack.c.l.b16 %v3622
      %v3640 = vunpack.c.l.b16 %v3623
      %v3641 = vunpack.c.l.b16 %v3624
      %v3642 = vpack.c.b16 %v3635, %v3634
      %v3643 = vpack.c.b16 %v3637, %v3636
      %v3644 = vpack.c.b16 %v3639, %v3638
      %v3645 = vpack.c.b16 %v3641, %v3640
      %v3651 = vsel %vm2135, %v3625, 0
      %3653 = vmatprep.subr.bf16.mxu0 0
      %3654 = vmatpush1.bf16.msra.mxu0 %v3642
      %3655 = vmatprep.subr.bf16.mxu0 0
      %3656 = vmatpush1.bf16.msra.mxu0 %v3643
      %3657 = vmatprep.subr.bf16.mxu0 0
      %3658 = vmatpush1.bf16.msra.mxu0 %v3644
      %3659 = vmatprep.subr.bf16.mxu0 0
      %3660 = vmatpush1.bf16.msra.mxu0 %v3645
      %3661 = vmatprep.subr.bf16.mxu0 0
      %3662 = vmatpush1.bf16.msra.mxu0 0
      %3663 = vmatprep.subr.bf16.mxu0 0
      %3664 = vmatpush1.bf16.msra.mxu0 0
      %3665 = vmatprep.subr.bf16.mxu0 0
      %3666 = vmatpush1.bf16.msra.mxu0 0
      %3667 = vmatprep.subr.bf16.mxu0 0
      %3668 = vmatpush1.bf16.msra.mxu0 0
      %3669 = vmatprep.subr.bf16.mxu0 0
      %3670 = vmatpush1.bf16.msra.mxu0 0
      %3671 = vmatprep.subr.bf16.mxu0 0
      %3672 = vmatpush1.bf16.msra.mxu0 0
      %3673 = vmatprep.subr.bf16.mxu0 0
      %3674 = vmatpush1.bf16.msra.mxu0 0
      %3675 = vmatprep.subr.bf16.mxu0 0
      %3676 = vmatpush1.bf16.msra.mxu0 0
      %3677 = vmatprep.subr.bf16.mxu0 0
      %3678 = vmatpush1.bf16.msra.mxu0 0
      %3679 = vmatprep.subr.bf16.mxu0 0
      %3680 = vmatpush1.bf16.msra.mxu0 0
      %3681 = vmatprep.subr.bf16.mxu0 0
      %3682 = vmatpush1.bf16.msra.mxu0 0
      %3683 = vmatprep.subr.bf16.mxu0 0
      %3684 = vmatpush1.bf16.msra.mxu0 0
      %3685 = vmatprep.mubr.bf16.mxu0 0
      %3686 = vmatmul.mubr.bf16.gmra.mrb[0].mxu0 %v3651
      %v3687 = vpop.f32.mrb[0].mxu0
      %v3688 = vadd.f32 0.0, %v3687
      %v3689 = vpop.f32.mrb[0].mxu0
      %v3690 = vpop.f32.mrb[0].mxu0
      %v3691 = vpop.f32.mrb[0].mxu0
      %3692 = vdwg.mxu0
      %v3693 = vadd.f32 %v3545, %v3688
      %s3694 = scalar_lea.vmem %s18, 1
      %v3695 = vld [vmem:[%s3694] sm:$0x1]
      %v3697 = vlaneseq
      %v3698 = vshrl.u32 %v3697, 7
      %v3699 = vsub.s32 0, %v3698
      %v3700 = vrot.slane %v3695, %v3699
      %v3702 = vadd.f32 %v3693, %v3700
      %s3703 = scalar_lea.vmem %s19, 1
      %v3704 = vld [vmem:[%s3703] sm:$0x1]
      %s3705 = scalar_lea.vmem %s20, 1
      %v3706 = vld [vmem:[%s3705] sm:$0x1]
      %v3707 = vsel %vm737, %v3702, 0.0
      %3708 = vadd.xlane.f32.xlu0 %v3707
      %v3709 = vpop.xlane.xlu0 %3708
      %v3710 = vmul.f32 %v3709, %v1322
      %v3711 = vsub.f32 %v3702, %v3710
      %v3712 = vmul.f32 %v3711, %v3711
      %v3713 = vsel %vm737, %v3712, 0.0
      %3714 = vadd.xlane.f32.xlu0 %v3713
      %v3715 = vpop.xlane.xlu0 %3714
      %v3716 = vmul.f32 %v3715, %v1322
      %v3717 = vadd.f32 %v3716, 1e-05
      %v3718 = vrsqrt.pop %v3717
      %v3719 = vmul.f32 %v3711, %v3718
      %v3721 = vlaneseq
      %v3722 = vshrl.u32 %v3721, 7
      %v3723 = vsub.s32 0, %v3722
      %v3724 = vrot.slane %v3704, %v3723
      %v3726 = vmul.f32 %v3719, %v3724
      %v3728 = vlaneseq
      %v3729 = vshrl.u32 %v3728, 7
      %v3730 = vsub.s32 0, %v3729
      %v3731 = vrot.slane %v3706, %v3730
      %v3733 = vadd.f32 %v3726, %v3731
      %v3734 = vld [vmem:[%s21] sm:$0xf]
      %v3735 = vld [vmem:[%s21 + $0x4] sm:$0xf]
      %v3736 = vld [vmem:[%s21 + $0x8] sm:$0xf]
      %v3737 = vld [vmem:[%s21 + $0xc] sm:$0xf]
      %v3738 = vpack.c.bf16 %v3733, %v3733
      %v3739 = vld [vmem:[%s22] sm:$0x1]
      %v3741 = vlaneseq
      %v3742 = vshrl.u32 %v3741, 7
      %v3743 = vsub.s32 0, %v3742
      %v3744 = vrot.slane %v3739, %v3743
      %v3750 = vunpack.c.l.b16 %v3734
      %v3751 = vunpack.c.l.b16 %v3735
      %v3752 = vunpack.c.l.b16 %v3736
      %v3753 = vunpack.c.l.b16 %v3737
      %v3754 = vpack.c.b16 %v3751, %v3750
      %v3755 = vpack.c.b16 %v3753, %v3752
      %v3759 = vsel %vm737, %v3738, 0
      %3761 = vmatprep.subr.bf16.mxu0 0
      %3762 = vmatpush1.bf16.msra.mxu0 %v3754
      %3763 = vmatprep.subr.bf16.mxu0 0
      %3764 = vmatpush1.bf16.msra.mxu0 %v3755
      %3765 = vmatprep.subr.bf16.mxu0 0
      %3766 = vmatpush1.bf16.msra.mxu0 0
      %3767 = vmatprep.subr.bf16.mxu0 0
      %3768 = vmatpush1.bf16.msra.mxu0 0
      %3769 = vmatprep.subr.bf16.mxu0 0
      %3770 = vmatpush1.bf16.msra.mxu0 0
      %3771 = vmatprep.subr.bf16.mxu0 0
      %3772 = vmatpush1.bf16.msra.mxu0 0
      %3773 = vmatprep.subr.bf16.mxu0 0
      %3774 = vmatpush1.bf16.msra.mxu0 0
      %3775 = vmatprep.subr.bf16.mxu0 0
      %3776 = vmatpush1.bf16.msra.mxu0 0
      %3777 = vmatprep.subr.bf16.mxu0 0
      %3778 = vmatpush1.bf16.msra.mxu0 0
      %3779 = vmatprep.subr.bf16.mxu0 0
      %3780 = vmatpush1.bf16.msra.mxu0 0
      %3781 = vmatprep.subr.bf16.mxu0 0
      %3782 = vmatpush1.bf16.msra.mxu0 0
      %3783 = vmatprep.subr.bf16.mxu0 0
      %3784 = vmatpush1.bf16.msra.mxu0 0
      %3785 = vmatprep.subr.bf16.mxu0 0
      %3786 = vmatpush1.bf16.msra.mxu0 0
      %3787 = vmatprep.subr.bf16.mxu0 0
      %3788 = vmatpush1.bf16.msra.mxu0 0
      %3789 = vmatprep.subr.bf16.mxu0 0
      %3790 = vmatpush1.bf16.msra.mxu0 0
      %3791 = vmatprep.subr.bf16.mxu0 0
      %3792 = vmatpush1.bf16.msra.mxu0 0
      %3793 = vmatprep.mubr.bf16.mxu0 0
      %3794 = vmatmul.mubr.bf16.gmra.mrb[0].mxu0 %v3759
      %v3795 = vpop.f32.mrb[0].mxu0
      %v3796 = vadd.f32 %v3744, %v3795
      %v3797 = vpop.f32.mrb[0].mxu0
      %v3798 = vpop.f32.mrb[0].mxu0
      %v3799 = vpop.f32.mrb[0].mxu0
      %3800 = vdwg.mxu0
      %vm3801 = vcmask 408576
      %3802 = vst.msk [vmem:[%s705] sm:$0xff] %vm3801, %v3796
      %p3803 = scmp.lt.s32.totalorder %s34, 1
      %s3804 = scalar_select %p3803, %s34, 1
      %s3805 = smul.addr %s3804, 8
      %s3806 = scalar_lea.vmem %s23, %s3805
      // Predicated region
      $region113: #{pallas_forward.1} parent=111 // pred_check
        %p3807 = pneg %p540
      $region114: #{pallas_forward.1} parent=111 // pred_check_branch
        %3809 = sbr.rel (%p3807) target = $region116
      $region115: #{pallas_forward.1} parent=111 // pred_region
        _
      $region116: #{pallas_forward.1} parent=111 // pred_fallthru
        _
    $region112: #{pallas_forward.1} parent=5 // pred_fallthru
      _
    %p3810 = scmp.le.s32.totalorder 2, %s29
    // Predicated region
    $region117: #{pallas_forward.1} parent=5 // pred_check
      %p3811 = pneg %p3810
    $region118: #{pallas_forward.1} parent=5 // pred_check_branch
      %3813 = sbr.rel (%p3811) target = $region120
    $region119: #{pallas_forward.1} parent=5 // pred_region
      %s3814 = ssub.s32 %s29, 2
      // Predicated region
      $region121: #{pallas_forward.1} parent=119 // pred_check
        %p3815 = pneg %p546
      $region122: #{pallas_forward.1} parent=119 // pred_check_branch
        %3817 = sbr.rel (%p3815) target = $region124
      $region123: #{pallas_forward.1} parent=119 // pred_region
        %p3818 = scmp.lt.s32.totalorder %s35, 1
        %s3819 = scalar_select %p3818, %s35, 1
        %s3820 = smul.addr %s3819, 8
        %s3821 = scalar_lea.vmem %s23, %s3820
      $region124: #{pallas_forward.1} parent=119 // pred_fallthru
        _
    $region120: #{pallas_forward.1} parent=5 // pred_fallthru
      _
  $region6: #{pallas_forward.1} parent=0 // loop_footer
    %s33 = sadd.s32 1, %s29
  $region7: #{pallas_forward.1} parent=0 // loop_footer_branch
    %28 = sbr.rel target = $region3
  $region8: #{pallas_forward.1} parent=0 // loop_exit
    _

</llo_original>
